<compile_context>
chip_gen: v6e
topology: v6e:2x2x1
jax: 0.10.0
libtpu: 0.0.40
codegen_flags: <defaults>
</compile_context>

<pallas_src>
import jax
import jax.numpy as jnp
from jax.experimental import pallas as pl
from jax.experimental.pallas import tpu as pltpu


def _round_up(x, m):
    return -(-x // m) * m


# ---- model config (small stand-in, structurally identical to Seq2Point) ----
SEQ_LEN = 16                        # stand-in for 599
CONV_KERNELS = [10, 8, 6, 5, 5]
IN_CHANNELS  = [1, 30, 30, 40, 50]
OUT_CHANNELS = [30, 30, 40, 50, 50]
LEFT_PAD  = [5, 4, 3, 2, 2]         # left+right == kernel-1 -> "same" length
RIGHT_PAD = [4, 3, 2, 2, 2]
N_CONV = len(CONV_KERNELS)
HIDDEN = 64                         # stand-in for 1024
C_LAST = OUT_CHANNELS[-1]           # 50

SLACK = 128                                           # zero slack strip (lanes) each side
LPW = _round_up(SEQ_LEN + max(l + r for l, r in zip(LEFT_PAD, RIGHT_PAD)), 128)
C_BUF = _round_up(max(OUT_CHANNELS), 8)               # activation scratch rows (56)
TAP_STRIDE = [_round_up(c, 16) for c in IN_CHANNELS]  # per-tap row stride (bf16 aligned)
KC_PAD = [k * s for k, s in zip(CONV_KERNELS, TAP_STRIDE)]   # im2col contraction depths
KC_MAX = max(KC_PAD)                                  # 320

F_PAD = C_LAST * LPW                # flattened (lane-padded) dense-head input size
F_TILE_CH = 5                       # conv channels per dense F tile (v7x 64MiB-safe;
F_TILE = F_TILE_CH * LPW            #   v6e/v5e could use 10-25 and/or pl.Buffered(3))


def _pick_batch_block(B, pref, multiple=1):
    # Prefer >= 2 grid blocks along the batch ("parallel") axis (v7x dual TC),
    # while keeping 2-D blocks sublane-aligned via `multiple`.
    half = -(-B // 2)
    bt = min(pref, max(half, multiple))
    return _round_up(bt, multiple)


# ---------------- Pallas kernels ----------------

def _fused_conv_kernel(x_ref, w0, b0, w1, b1, w2, b2, w3, b3, w4, b4,
                       o_ref, buf, ucol):
    # x_ref : (1, 1, W_BUF) f32   one batch block, one LPW-wide lane slab per example,
    #                             signal at lanes [SLACK + b*LPW, SLACK + b*LPW + L)
    # w_i   : (C_out_i, KC_PAD_i) bf16  im2col conv weights (exact-zero pad columns)
    # b_i   : (C_out_i, 1) f32
    # o_ref : (bt, C_LAST, LPW) bf16    lane-dense conv-stack output block
    # buf   : (C_BUF, W_BUF) bf16       current padded activation (flat lane slabs)
    # ucol  : (KC_MAX, bt*LPW) bf16     im2col scratch
    wrefs = (w0, w1, w2, w3, w4)
    brefs = (b0, b1, b2, b3, b4)
    bt = o_ref.shape[0]
    NW = bt * LPW
    L = SEQ_LEN

    # Per-slab lane-validity mask: columns [L, LPW) of every slab are padding.
    lane = jax.lax.broadcasted_iota(jnp.int32, (1, NW), 1)
    valid = (lane % LPW) < L

    # Once per grid step (NOT per layer / per example):
    #  * left slack strip = the left ConstantPad1d zeros read by every layer,
    #  * im2col pad rows must be finite (0-weight * NaN-garbage would poison acc).
    buf[:, 0:SLACK] = jnp.zeros((C_BUF, SLACK), jnp.bfloat16)
    ucol[...] = jnp.zeros_like(ucol)

    for i in range(N_CONV):
        cin, cout, ksz = IN_CHANNELS[i], OUT_CHANNELS[i], CONV_KERNELS[i]
        st, padl = TAP_STRIDE[i], LEFT_PAD[i]

        # im2col: K shifted full-width copies (16-aligned sublane offsets k*st).
        for k in range(ksz):
            c0 = SLACK + k - padl
            if i == 0:
                src = x_ref[0, 0:1, c0:c0 + NW].astype(jnp.bfloat16)
            else:
                src = buf[0:cin, c0:c0 + NW]
            ucol[k * st:k * st + cin, :] = src

        # ONE bf16 MXU matmul per layer, contraction depth K*C_in, f32 accumulate.
        acc = jnp.dot(wrefs[i][...], ucol[0:KC_PAD[i], :],
                      preferred_element_type=jnp.float32)
        # bias + ReLU in f32, zero the per-slab lane-padding columns.
        h = jnp.where(valid, jnp.maximum(acc + brefs[i][...], 0.0), 0.0)

        if i + 1 < N_CONV:
            # Next layer's padded activation: one aligned, full-width store.
            # Its left ConstantPad1d zeros come from the slack strip / the
            # previous slab's zeroed tail via the shifted im2col reads.
            buf[0:cout, SLACK:SLACK + NW] = h.astype(jnp.bfloat16)
        else:
            hb = h.astype(jnp.bfloat16)
            for b in range(bt):                 # bt unmasked (50, LPW) slab stores
                o_ref[b] = hb[:, b * LPW:(b + 1) * LPW]


def _dense_head_kernel(x_ref, w1_ref, b1_ref, w2_ref, b2_ref, o_ref, acc_ref):
    # grid = (batch blocks [parallel], F tiles [arbitrary / reduction])
    # x_ref: (bt, F_TILE) bf16   w1_ref: (F_TILE, H) bf16   acc_ref: (bt, H) f32
    j = pl.program_id(1)

    @pl.when(j == 0)
    def _init():
        acc_ref[...] = jnp.zeros_like(acc_ref)

    acc_ref[...] += jnp.dot(x_ref[...], w1_ref[...],
                            preferred_element_type=jnp.float32)

    @pl.when(j == pl.num_programs(1) - 1)
    def _finalize():
        h = jnp.maximum(acc_ref[...] + b1_ref[...], 0.0)
        y = jnp.dot(h, w2_ref[...], preferred_element_type=jnp.float32) + b2_ref[...]
        o_ref[...] = y.astype(o_ref.dtype)


# ---------------- wrappers ----------------

def conv_stack(x_ncw, conv_params, *, batch_block=8):
    # x_ncw: (B, 1, L) f32 (PyTorch NCW layout).
    B, _, L = x_ncw.shape
    bt = _pick_batch_block(B, batch_block)
    bp = _round_up(B, bt)
    n_blocks = bp // bt
    NW = bt * LPW
    W_BUF = NW + 2 * SLACK

    # Layout plumbing on the raw input (tiny): one LPW-wide lane slab per
    # example, flattened per batch block, zero slack strips on both sides.
    xs = x_ncw.reshape(B, L).astype(jnp.float32)
    xs = jnp.pad(xs, ((0, bp - B), (0, LPW - L)))
    xs = jnp.pad(xs.reshape(n_blocks, NW), ((0, 0), (SLACK, SLACK)))
    xs = xs[:, None, :]                                   # (n_blocks, 1, W_BUF)

    flat_params = []
    in_specs = [pl.BlockSpec((1, 1, W_BUF), lambda g: (g, 0, 0))]
    for (w, b) in conv_params:
        flat_params += [w, b]
        in_specs.append(pl.BlockSpec(tuple(w.shape), lambda g: (0, 0)))
        in_specs.append(pl.BlockSpec(tuple(b.shape), lambda g: (0, 0)))

    flops = 2 * bp * L * sum(CONV_KERNELS[i] * IN_CHANNELS[i] * OUT_CHANNELS[i]
                             for i in range(N_CONV))
    bytes_accessed = (n_blocks * W_BUF * 4 + bp * C_LAST * LPW * 2
                      + sum(w.size * 2 + b.size * 4 for w, b in conv_params))

    out = pl.pallas_call(
        _fused_conv_kernel,
        out_shape=jax.ShapeDtypeStruct((bp, C_LAST, LPW), jnp.bfloat16),
        grid=(n_blocks,),
        in_specs=in_specs,
        out_specs=pl.BlockSpec((bt, C_LAST, LPW), lambda g: (g, 0, 0)),
        scratch_shapes=[pltpu.VMEM((C_BUF, W_BUF), jnp.bfloat16),
                        pltpu.VMEM((KC_MAX, NW), jnp.bfloat16)],
        compiler_params=pltpu.CompilerParams(dimension_semantics=("parallel",)),
        cost_estimate=pl.CostEstimate(flops=int(flops), transcendentals=0,
                                      bytes_accessed=int(bytes_accessed)),
    )(xs, *flat_params)
    return out[:B] if bp != B else out


def dense_head(x, w1_bf16, b1, w2, b2, *, batch_block=128):
    # x: (B, F_PAD) bf16;  w1_bf16: (F_PAD, H) bf16;  w2: (H, 1) f32
    B, fp = x.shape
    H = w1_bf16.shape[1]
    O = w2.shape[1]
    assert fp % F_TILE == 0
    x = x.astype(jnp.bfloat16)
    bt = _pick_batch_block(B, batch_block, multiple=8)
    bp = _round_up(B, bt)
    if bp != B:
        x = jnp.pad(x, ((0, bp - B), (0, 0)))
    n_b = bp // bt
    n_f = fp // F_TILE

    flops = 2 * bp * fp * H + 2 * bp * H * O
    # w1 is re-streamed from HBM once per batch block.
    bytes_accessed = (bp * fp * 2 + n_b * fp * H * 2
                      + H * 4 + H * O * 4 + O * 4 + bp * O * 4)

    out = pl.pallas_call(
        _dense_head_kernel,
        out_shape=jax.ShapeDtypeStruct((bp, O), jnp.float32),
        grid=(n_b, n_f),
        in_specs=[
            pl.BlockSpec((bt, F_TILE), lambda bi, j: (bi, j)),
            pl.BlockSpec((F_TILE, H), lambda bi, j: (j, 0)),
            pl.BlockSpec((1, H), lambda bi, j: (0, 0)),
            pl.BlockSpec((H, O), lambda bi, j: (0, 0)),
            pl.BlockSpec((1, O), lambda bi, j: (0, 0)),
        ],
        out_specs=pl.BlockSpec((bt, O), lambda bi, j: (bi, 0)),
        scratch_shapes=[pltpu.VMEM((bt, H), jnp.float32)],
        compiler_params=pltpu.CompilerParams(
            dimension_semantics=("parallel", "arbitrary")),
        cost_estimate=pl.CostEstimate(flops=int(flops), transcendentals=0,
                                      bytes_accessed=int(bytes_accessed)),
    )(x, w1_bf16, b1.reshape(1, H), w2, b2.reshape(1, O))
    return out[:B] if bp != B else out


def init_params(seed=0):
    key = jax.random.PRNGKey(seed)
    keys = jax.random.split(key, 2 * N_CONV + 4)

    conv_kernel_params, conv_raw = [], []
    for i in range(N_CONV):
        ksz, cin, cout = CONV_KERNELS[i], IN_CHANNELS[i], OUT_CHANNELS[i]
        # PyTorch Conv1d layout: (C_out, C_in, K)
        w = 0.05 * jax.random.normal(keys[2 * i], (cout, cin, ksz), jnp.float32)
        b = 0.05 * jax.random.normal(keys[2 * i + 1], (cout,), jnp.float32)
        conv_raw.append((w, b))
        # im2col weight (C_out, K*TAP_STRIDE): tap k's C_in block at columns
        # [k*TAP_STRIDE, k*TAP_STRIDE + cin); the rest is exact zero.
        st = TAP_STRIDE[i]
        wu = jnp.transpose(w, (0, 2, 1))                    # (cout, K, cin)
        wu = jnp.pad(wu, ((0, 0), (0, 0), (0, st - cin)))   # (cout, K, st)
        wu = wu.reshape(cout, ksz * st).astype(jnp.bfloat16)
        conv_kernel_params.append((wu, b.reshape(cout, 1)))

    F = C_LAST * SEQ_LEN
    w1 = 0.05 * jax.random.normal(keys[-4], (F, HIDDEN), jnp.float32)
    b1 = 0.05 * jax.random.normal(keys[-3], (HIDDEN,), jnp.float32)
    w2 = 0.05 * jax.random.normal(keys[-2], (HIDDEN, 1), jnp.float32)
    b2 = 0.05 * jax.random.normal(keys[-1], (1,), jnp.float32)
    # Scatter w1's rows (PyTorch feature order c*L + l) to the lane-padded order
    # c*LPW + l; padded rows are zero, so the conv output's lane padding is
    # math-preserving.  Stored bf16 (the head matmul is HBM-bandwidth bound).
    w1_pad = jnp.pad(w1.reshape(C_LAST, SEQ_LEN, HIDDEN),
                     ((0, 0), (0, LPW - SEQ_LEN), (0, 0)))
    w1_bf16 = w1_pad.reshape(F_PAD, HIDDEN).astype(jnp.bfloat16)

    kernel_params = (conv_kernel_params, (w1_bf16, b1, w2, b2))
    raw_params = (conv_raw, (w1, b1, w2, b2))
    return kernel_params, raw_params


@jax.jit
def seq2point_forward(x_ncw, conv_params, dense_params):
    # x_ncw: (B, 1, L) -- same layout as the PyTorch module's input.
    feats = conv_stack(x_ncw, conv_params)          # (B, 50, LPW) bf16, lane-dense
    flat = feats.reshape(feats.shape[0], -1)        # free reshape == x.view(-1, 50*L)
    w1, b1, w2, b2 = dense_params
    return dense_head(flat, w1, b1, w2, b2)         # (B, 1) f32


def reference_forward(x_ncw, conv_raw, dense_raw):
    # Pure-JAX f32 replica of the PyTorch module, for validation.
    h = x_ncw.astype(jnp.float32)
    for i, (w, b) in enumerate(conv_raw):
        hp = jnp.pad(h, ((0, 0), (0, 0), (LEFT_PAD[i], RIGHT_PAD[i])))
        ksz = w.shape[2]
        L = hp.shape[2] - ksz + 1
        out = jnp.zeros((h.shape[0], w.shape[0], L), jnp.float32)
        for k in range(ksz):
            out = out + jnp.einsum('oc,bcl->bol', w[:, :, k], hp[:, :, k:k + L])
        h = jnp.maximum(out + b[None, :, None], 0.0)
    w1, b1, w2, b2 = dense_raw
    flat = h.reshape(h.shape[0], -1)                # (B, 50*L), PyTorch order
    hd = jnp.maximum(flat @ w1 + b1, 0.0)
    return hd @ w2 + b2


if __name__ == "__main__":
    B = 2
    xkey, _ = jax.random.split(jax.random.PRNGKey(0))
    x = jax.random.normal(xkey, (B, 1, SEQ_LEN), jnp.float32)
    (conv_params, dense_params), (conv_raw, dense_raw) = init_params(0)

    out = seq2point_forward(x, conv_params, dense_params)
    jax.block_until_ready(out)
    assert out.shape == (B, 1) and out.dtype == jnp.float32

    ref = reference_forward(x, conv_raw, dense_raw)
    err = float(jnp.max(jnp.abs(out - ref)))
    assert err < 3e-2, f"kernel/reference mismatch: max abs err = {err}"
    print("KERNEL_OK")
</pallas_src>

<mosaic_0001>
module attributes {stable_mosaic.version = 11 : i64} {
  func.func @_fused_conv_kernel(%arg0: i32, %arg1: memref<1x1x384xf32, #tpu.memory_space<vmem>>, %arg2: memref<30x160xbf16, #tpu.memory_space<vmem>>, %arg3: memref<30x1xf32, #tpu.memory_space<vmem>>, %arg4: memref<30x256xbf16, #tpu.memory_space<vmem>>, %arg5: memref<30x1xf32, #tpu.memory_space<vmem>>, %arg6: memref<40x192xbf16, #tpu.memory_space<vmem>>, %arg7: memref<40x1xf32, #tpu.memory_space<vmem>>, %arg8: memref<50x240xbf16, #tpu.memory_space<vmem>>, %arg9: memref<50x1xf32, #tpu.memory_space<vmem>>, %arg10: memref<50x320xbf16, #tpu.memory_space<vmem>>, %arg11: memref<50x1xf32, #tpu.memory_space<vmem>>, %arg12: memref<1x50x128xbf16, #tpu.memory_space<vmem>>, %arg13: memref<56x384xbf16, #tpu.memory_space<vmem>>, %arg14: memref<320x128xbf16, #tpu.memory_space<vmem>>) attributes {dimension_semantics = [#tpu.dimension_semantics<parallel>], iteration_bounds = array<i64: 2>, scalar_prefetch = 0 : i64, scratch_operands = 2 : i64, tpu.core_type = #tpu.core_type<tc>, window_params = [{transform_indices = @transform_0, window_bounds = array<i64: 1, 1, 384>}, {pipeline_mode = #tpu.pipeline_mode<synchronous>, transform_indices = @transform_1, window_bounds = array<i64: 30, 160>}, {pipeline_mode = #tpu.pipeline_mode<synchronous>, transform_indices = @transform_2, window_bounds = array<i64: 30, 1>}, {pipeline_mode = #tpu.pipeline_mode<synchronous>, transform_indices = @transform_3, window_bounds = array<i64: 30, 256>}, {pipeline_mode = #tpu.pipeline_mode<synchronous>, transform_indices = @transform_4, window_bounds = array<i64: 30, 1>}, {pipeline_mode = #tpu.pipeline_mode<synchronous>, transform_indices = @transform_5, window_bounds = array<i64: 40, 192>}, {pipeline_mode = #tpu.pipeline_mode<synchronous>, transform_indices = @transform_6, window_bounds = array<i64: 40, 1>}, {pipeline_mode = #tpu.pipeline_mode<synchronous>, transform_indices = @transform_7, window_bounds = array<i64: 50, 240>}, {pipeline_mode = #tpu.pipeline_mode<synchronous>, transform_indices = @transform_8, window_bounds = array<i64: 50, 1>}, {pipeline_mode = #tpu.pipeline_mode<synchronous>, transform_indices = @transform_9, window_bounds = array<i64: 50, 320>}, {pipeline_mode = #tpu.pipeline_mode<synchronous>, transform_indices = @transform_10, window_bounds = array<i64: 50, 1>}, {transform_indices = @transform_11, window_bounds = array<i64: 1, 50, 128>}]} {
    %0 = tpu.iota {dimensions = array<i32: 1>} : vector<1x128xi32>
    %c128_i32 = arith.constant 128 : i32
    %c0_i32 = arith.constant 0 : i32
    %1 = arith.cmpi eq, %c128_i32, %c0_i32 : i32
    %c1_i32 = arith.constant 1 : i32
    %2 = arith.select %1, %c1_i32, %c128_i32 : i32
    %3 = vector.broadcast %2 : i32 to vector<1x128xi32>
    %4 = arith.remsi %0, %3 : vector<1x128xi32>
    %c0_i32_0 = arith.constant 0 : i32
    %5 = vector.broadcast %c0_i32_0 : i32 to vector<1x128xi32>
    %6 = arith.cmpi ne, %4, %5 : vector<1x128xi32>
    %c0_i32_1 = arith.constant 0 : i32
    %7 = vector.broadcast %c0_i32_1 : i32 to vector<1x128xi32>
    %8 = arith.cmpi slt, %4, %7 : vector<1x128xi32>
    %c0_i32_2 = arith.constant 0 : i32
    %9 = arith.cmpi slt, %2, %c0_i32_2 : i32
    %10 = vector.broadcast %9 : i1 to vector<1x128xi1>
    %11 = vector.broadcast %10 : vector<1x128xi1> to vector<1x128xi1>
    %12 = arith.xori %8, %11 : vector<1x128xi1>
    %13 = arith.andi %12, %6 : vector<1x128xi1>
    %14 = vector.broadcast %2 : i32 to vector<1x128xi32>
    %15 = arith.addi %4, %14 : vector<1x128xi32>
    %16 = arith.select %13, %15, %4 : vector<1x128xi1>, vector<1x128xi32>
    %c16_i32 = arith.constant 16 : i32
    %17 = vector.broadcast %c16_i32 : i32 to vector<1x128xi32>
    %18 = arith.cmpi slt, %16, %17 : vector<1x128xi32>
    %cst = arith.constant 0.000000e+00 : bf16
    %19 = vector.broadcast %cst : bf16 to vector<56x128xbf16>
    %c0 = arith.constant 0 : index
    %c0_3 = arith.constant 0 : index
    %20 = vector.load %arg13[%c0, %c0_3] : memref<56x384xbf16, #tpu.memory_space<vmem>>, vector<56x128xbf16>
    tpu.vector_store %arg13[%c0, %c0_3], %19 {strides = array<i32>} : memref<56x384xbf16, #tpu.memory_space<vmem>>, vector<56x128xbf16>,
    %cst_4 = arith.constant 0.000000e+00 : bf16
    %21 = vector.broadcast %cst_4 : bf16 to vector<320x128xbf16>
    %c0_5 = arith.constant 0 : index
    %c0_6 = arith.constant 0 : index
    %22 = vector.load %arg14[%c0_5, %c0_6] : memref<320x128xbf16, #tpu.memory_space<vmem>>, vector<320x128xbf16>
    tpu.vector_store %arg14[%c0_5, %c0_6], %21 {strides = array<i32>} : memref<320x128xbf16, #tpu.memory_space<vmem>>, vector<320x128xbf16>,
    %c0_7 = arith.constant 0 : index
    %c0_8 = arith.constant 0 : index
    %c123 = arith.constant 123 : index
    %23 = vector.load %arg1[%c0_7, %c0_8, %c123] : memref<1x1x384xf32, #tpu.memory_space<vmem>>, vector<1x1x128xf32>
    %24 = vector.shape_cast %23 : vector<1x1x128xf32> to vector<1x128xf32>
    %25 = arith.truncf %24 : vector<1x128xf32> to vector<1x128xbf16>
    %c0_9 = arith.constant 0 : index
    %c0_10 = arith.constant 0 : index
    %26 = vector.load %arg14[%c0_9, %c0_10] : memref<320x128xbf16, #tpu.memory_space<vmem>>, vector<1x128xbf16>
    tpu.vector_store %arg14[%c0_9, %c0_10], %25 {strides = array<i32>} : memref<320x128xbf16, #tpu.memory_space<vmem>>, vector<1x128xbf16>,
    %c0_11 = arith.constant 0 : index
    %c0_12 = arith.constant 0 : index
    %c124 = arith.constant 124 : index
    %27 = vector.load %arg1[%c0_11, %c0_12, %c124] : memref<1x1x384xf32, #tpu.memory_space<vmem>>, vector<1x1x128xf32>
    %28 = vector.shape_cast %27 : vector<1x1x128xf32> to vector<1x128xf32>
    %29 = arith.truncf %28 : vector<1x128xf32> to vector<1x128xbf16>
    %c16 = arith.constant 16 : index
    %c0_13 = arith.constant 0 : index
    %30 = vector.load %arg14[%c16, %c0_13] : memref<320x128xbf16, #tpu.memory_space<vmem>>, vector<1x128xbf16>
    tpu.vector_store %arg14[%c16, %c0_13], %29 {strides = array<i32>} : memref<320x128xbf16, #tpu.memory_space<vmem>>, vector<1x128xbf16>,
    %c0_14 = arith.constant 0 : index
    %c0_15 = arith.constant 0 : index
    %c125 = arith.constant 125 : index
    %31 = vector.load %arg1[%c0_14, %c0_15, %c125] : memref<1x1x384xf32, #tpu.memory_space<vmem>>, vector<1x1x128xf32>
    %32 = vector.shape_cast %31 : vector<1x1x128xf32> to vector<1x128xf32>
    %33 = arith.truncf %32 : vector<1x128xf32> to vector<1x128xbf16>
    %c32 = arith.constant 32 : index
    %c0_16 = arith.constant 0 : index
    %34 = vector.load %arg14[%c32, %c0_16] : memref<320x128xbf16, #tpu.memory_space<vmem>>, vector<1x128xbf16>
    tpu.vector_store %arg14[%c32, %c0_16], %33 {strides = array<i32>} : memref<320x128xbf16, #tpu.memory_space<vmem>>, vector<1x128xbf16>,
    %c0_17 = arith.constant 0 : index
    %c0_18 = arith.constant 0 : index
    %c126 = arith.constant 126 : index
    %35 = vector.load %arg1[%c0_17, %c0_18, %c126] : memref<1x1x384xf32, #tpu.memory_space<vmem>>, vector<1x1x128xf32>
    %36 = vector.shape_cast %35 : vector<1x1x128xf32> to vector<1x128xf32>
    %37 = arith.truncf %36 : vector<1x128xf32> to vector<1x128xbf16>
    %c48 = arith.constant 48 : index
    %c0_19 = arith.constant 0 : index
    %38 = vector.load %arg14[%c48, %c0_19] : memref<320x128xbf16, #tpu.memory_space<vmem>>, vector<1x128xbf16>
    tpu.vector_store %arg14[%c48, %c0_19], %37 {strides = array<i32>} : memref<320x128xbf16, #tpu.memory_space<vmem>>, vector<1x128xbf16>,
    %c0_20 = arith.constant 0 : index
    %c0_21 = arith.constant 0 : index
    %c127 = arith.constant 127 : index
    %39 = vector.load %arg1[%c0_20, %c0_21, %c127] : memref<1x1x384xf32, #tpu.memory_space<vmem>>, vector<1x1x128xf32>
    %40 = vector.shape_cast %39 : vector<1x1x128xf32> to vector<1x128xf32>
    %41 = arith.truncf %40 : vector<1x128xf32> to vector<1x128xbf16>
    %c64 = arith.constant 64 : index
    %c0_22 = arith.constant 0 : index
    %42 = vector.load %arg14[%c64, %c0_22] : memref<320x128xbf16, #tpu.memory_space<vmem>>, vector<1x128xbf16>
    tpu.vector_store %arg14[%c64, %c0_22], %41 {strides = array<i32>} : memref<320x128xbf16, #tpu.memory_space<vmem>>, vector<1x128xbf16>,
    %c0_23 = arith.constant 0 : index
    %c0_24 = arith.constant 0 : index
    %c128 = arith.constant 128 : index
    %43 = vector.load %arg1[%c0_23, %c0_24, %c128] : memref<1x1x384xf32, #tpu.memory_space<vmem>>, vector<1x1x128xf32>
    %44 = vector.shape_cast %43 : vector<1x1x128xf32> to vector<1x128xf32>
    %45 = arith.truncf %44 : vector<1x128xf32> to vector<1x128xbf16>
    %c80 = arith.constant 80 : index
    %c0_25 = arith.constant 0 : index
    %46 = vector.load %arg14[%c80, %c0_25] : memref<320x128xbf16, #tpu.memory_space<vmem>>, vector<1x128xbf16>
    tpu.vector_store %arg14[%c80, %c0_25], %45 {strides = array<i32>} : memref<320x128xbf16, #tpu.memory_space<vmem>>, vector<1x128xbf16>,
    %c0_26 = arith.constant 0 : index
    %c0_27 = arith.constant 0 : index
    %c129 = arith.constant 129 : index
    %47 = vector.load %arg1[%c0_26, %c0_27, %c129] : memref<1x1x384xf32, #tpu.memory_space<vmem>>, vector<1x1x128xf32>
    %48 = vector.shape_cast %47 : vector<1x1x128xf32> to vector<1x128xf32>
    %49 = arith.truncf %48 : vector<1x128xf32> to vector<1x128xbf16>
    %c96 = arith.constant 96 : index
    %c0_28 = arith.constant 0 : index
    %50 = vector.load %arg14[%c96, %c0_28] : memref<320x128xbf16, #tpu.memory_space<vmem>>, vector<1x128xbf16>
    tpu.vector_store %arg14[%c96, %c0_28], %49 {strides = array<i32>} : memref<320x128xbf16, #tpu.memory_space<vmem>>, vector<1x128xbf16>,
    %c0_29 = arith.constant 0 : index
    %c0_30 = arith.constant 0 : index
    %c130 = arith.constant 130 : index
    %51 = vector.load %arg1[%c0_29, %c0_30, %c130] : memref<1x1x384xf32, #tpu.memory_space<vmem>>, vector<1x1x128xf32>
    %52 = vector.shape_cast %51 : vector<1x1x128xf32> to vector<1x128xf32>
    %53 = arith.truncf %52 : vector<1x128xf32> to vector<1x128xbf16>
    %c112 = arith.constant 112 : index
    %c0_31 = arith.constant 0 : index
    %54 = vector.load %arg14[%c112, %c0_31] : memref<320x128xbf16, #tpu.memory_space<vmem>>, vector<1x128xbf16>
    tpu.vector_store %arg14[%c112, %c0_31], %53 {strides = array<i32>} : memref<320x128xbf16, #tpu.memory_space<vmem>>, vector<1x128xbf16>,
    %c0_32 = arith.constant 0 : index
    %c0_33 = arith.constant 0 : index
    %c131 = arith.constant 131 : index
    %55 = vector.load %arg1[%c0_32, %c0_33, %c131] : memref<1x1x384xf32, #tpu.memory_space<vmem>>, vector<1x1x128xf32>
    %56 = vector.shape_cast %55 : vector<1x1x128xf32> to vector<1x128xf32>
    %57 = arith.truncf %56 : vector<1x128xf32> to vector<1x128xbf16>
    %c128_34 = arith.constant 128 : index
    %c0_35 = arith.constant 0 : index
    %58 = vector.load %arg14[%c128_34, %c0_35] : memref<320x128xbf16, #tpu.memory_space<vmem>>, vector<1x128xbf16>
    tpu.vector_store %arg14[%c128_34, %c0_35], %57 {strides = array<i32>} : memref<320x128xbf16, #tpu.memory_space<vmem>>, vector<1x128xbf16>,
    %c0_36 = arith.constant 0 : index
    %c0_37 = arith.constant 0 : index
    %c132 = arith.constant 132 : index
    %59 = vector.load %arg1[%c0_36, %c0_37, %c132] : memref<1x1x384xf32, #tpu.memory_space<vmem>>, vector<1x1x128xf32>
    %60 = vector.shape_cast %59 : vector<1x1x128xf32> to vector<1x128xf32>
    %61 = arith.truncf %60 : vector<1x128xf32> to vector<1x128xbf16>
    %c144 = arith.constant 144 : index
    %c0_38 = arith.constant 0 : index
    %62 = vector.load %arg14[%c144, %c0_38] : memref<320x128xbf16, #tpu.memory_space<vmem>>, vector<1x128xbf16>
    tpu.vector_store %arg14[%c144, %c0_38], %61 {strides = array<i32>} : memref<320x128xbf16, #tpu.memory_space<vmem>>, vector<1x128xbf16>,
    %c0_39 = arith.constant 0 : index
    %c0_40 = arith.constant 0 : index
    %63 = vector.load %arg2[%c0_39, %c0_40] : memref<30x160xbf16, #tpu.memory_space<vmem>>, vector<30x160xbf16>
    %c0_41 = arith.constant 0 : index
    %c0_42 = arith.constant 0 : index
    %64 = vector.load %arg14[%c0_41, %c0_42] : memref<320x128xbf16, #tpu.memory_space<vmem>>, vector<160x128xbf16>
    %cst_43 = arith.constant dense<0.000000e+00> : vector<30x128xf32>
    %65 = tpu.matmul %63, %64, %cst_43 {dimension_numbers = #tpu.dot_dimension_numbers<[1], [0], [0], [1], [0, 0, 1, 1], [], []>} : vector<30x160xbf16>, vector<160x128xbf16>, vector<30x128xf32> -> vector<30x128xf32>
    %c0_44 = arith.constant 0 : index
    %c0_45 = arith.constant 0 : index
    %66 = vector.load %arg3[%c0_44, %c0_45] : memref<30x1xf32, #tpu.memory_space<vmem>>, vector<30x1xf32>
    %67 = vector.broadcast %66 : vector<30x1xf32> to vector<30x128xf32>
    %68 = arith.addf %65, %67 : vector<30x128xf32>
    %cst_46 = arith.constant 0.000000e+00 : f32
    %69 = vector.broadcast %cst_46 : f32 to vector<30x128xf32>
    %70 = arith.maximumf %68, %69 : vector<30x128xf32>
    %cst_47 = arith.constant 0.000000e+00 : f32
    %71 = vector.shape_cast %18 : vector<1x128xi1> to vector<1x128xi1>
    %72 = vector.broadcast %71 : vector<1x128xi1> to vector<30x128xi1>
    %73 = vector.broadcast %cst_47 : f32 to vector<30x128xf32>
    %74 = arith.select %72, %70, %73 : vector<30x128xi1>, vector<30x128xf32>
    %75 = arith.truncf %74 : vector<30x128xf32> to vector<30x128xbf16>
    %c0_48 = arith.constant 0 : index
    %c128_49 = arith.constant 128 : index
    %76 = vector.load %arg13[%c0_48, %c128_49] : memref<56x384xbf16, #tpu.memory_space<vmem>>, vector<30x128xbf16>
    tpu.vector_store %arg13[%c0_48, %c128_49], %75 {strides = array<i32>} : memref<56x384xbf16, #tpu.memory_space<vmem>>, vector<30x128xbf16>,
    %c0_50 = arith.constant 0 : index
    %c124_51 = arith.constant 124 : index
    %77 = vector.load %arg13[%c0_50, %c124_51] : memref<56x384xbf16, #tpu.memory_space<vmem>>, vector<30x128xbf16>
    %c0_52 = arith.constant 0 : index
    %c0_53 = arith.constant 0 : index
    %78 = vector.load %arg14[%c0_52, %c0_53] : memref<320x128xbf16, #tpu.memory_space<vmem>>, vector<30x128xbf16>
    tpu.vector_store %arg14[%c0_52, %c0_53], %77 {strides = array<i32>} : memref<320x128xbf16, #tpu.memory_space<vmem>>, vector<30x128xbf16>,
    %c0_54 = arith.constant 0 : index
    %c125_55 = arith.constant 125 : index
    %79 = vector.load %arg13[%c0_54, %c125_55] : memref<56x384xbf16, #tpu.memory_space<vmem>>, vector<30x128xbf16>
    %c32_56 = arith.constant 32 : index
    %c0_57 = arith.constant 0 : index
    %80 = vector.load %arg14[%c32_56, %c0_57] : memref<320x128xbf16, #tpu.memory_space<vmem>>, vector<30x128xbf16>
    tpu.vector_store %arg14[%c32_56, %c0_57], %79 {strides = array<i32>} : memref<320x128xbf16, #tpu.memory_space<vmem>>, vector<30x128xbf16>,
    %c0_58 = arith.constant 0 : index
    %c126_59 = arith.constant 126 : index
    %81 = vector.load %arg13[%c0_58, %c126_59] : memref<56x384xbf16, #tpu.memory_space<vmem>>, vector<30x128xbf16>
    %c64_60 = arith.constant 64 : index
    %c0_61 = arith.constant 0 : index
    %82 = vector.load %arg14[%c64_60, %c0_61] : memref<320x128xbf16, #tpu.memory_space<vmem>>, vector<30x128xbf16>
    tpu.vector_store %arg14[%c64_60, %c0_61], %81 {strides = array<i32>} : memref<320x128xbf16, #tpu.memory_space<vmem>>, vector<30x128xbf16>,
    %c0_62 = arith.constant 0 : index
    %c127_63 = arith.constant 127 : index
    %83 = vector.load %arg13[%c0_62, %c127_63] : memref<56x384xbf16, #tpu.memory_space<vmem>>, vector<30x128xbf16>
    %c96_64 = arith.constant 96 : index
    %c0_65 = arith.constant 0 : index
    %84 = vector.load %arg14[%c96_64, %c0_65] : memref<320x128xbf16, #tpu.memory_space<vmem>>, vector<30x128xbf16>
    tpu.vector_store %arg14[%c96_64, %c0_65], %83 {strides = array<i32>} : memref<320x128xbf16, #tpu.memory_space<vmem>>, vector<30x128xbf16>,
    %c0_66 = arith.constant 0 : index
    %c128_67 = arith.constant 128 : index
    %85 = vector.load %arg13[%c0_66, %c128_67] : memref<56x384xbf16, #tpu.memory_space<vmem>>, vector<30x128xbf16>
    %c128_68 = arith.constant 128 : index
    %c0_69 = arith.constant 0 : index
    %86 = vector.load %arg14[%c128_68, %c0_69] : memref<320x128xbf16, #tpu.memory_space<vmem>>, vector<30x128xbf16>
    tpu.vector_store %arg14[%c128_68, %c0_69], %85 {strides = array<i32>} : memref<320x128xbf16, #tpu.memory_space<vmem>>, vector<30x128xbf16>,
    %c0_70 = arith.constant 0 : index
    %c129_71 = arith.constant 129 : index
    %87 = vector.load %arg13[%c0_70, %c129_71] : memref<56x384xbf16, #tpu.memory_space<vmem>>, vector<30x128xbf16>
    %c160 = arith.constant 160 : index
    %c0_72 = arith.constant 0 : index
    %88 = vector.load %arg14[%c160, %c0_72] : memref<320x128xbf16, #tpu.memory_space<vmem>>, vector<30x128xbf16>
    tpu.vector_store %arg14[%c160, %c0_72], %87 {strides = array<i32>} : memref<320x128xbf16, #tpu.memory_space<vmem>>, vector<30x128xbf16>,
    %c0_73 = arith.constant 0 : index
    %c130_74 = arith.constant 130 : index
    %89 = vector.load %arg13[%c0_73, %c130_74] : memref<56x384xbf16, #tpu.memory_space<vmem>>, vector<30x128xbf16>
    %c192 = arith.constant 192 : index
    %c0_75 = arith.constant 0 : index
    %90 = vector.load %arg14[%c192, %c0_75] : memref<320x128xbf16, #tpu.memory_space<vmem>>, vector<30x128xbf16>
    tpu.vector_store %arg14[%c192, %c0_75], %89 {strides = array<i32>} : memref<320x128xbf16, #tpu.memory_space<vmem>>, vector<30x128xbf16>,
    %c0_76 = arith.constant 0 : index
    %c131_77 = arith.constant 131 : index
    %91 = vector.load %arg13[%c0_76, %c131_77] : memref<56x384xbf16, #tpu.memory_space<vmem>>, vector<30x128xbf16>
    %c224 = arith.constant 224 : index
    %c0_78 = arith.constant 0 : index
    %92 = vector.load %arg14[%c224, %c0_78] : memref<320x128xbf16, #tpu.memory_space<vmem>>, vector<30x128xbf16>
    tpu.vector_store %arg14[%c224, %c0_78], %91 {strides = array<i32>} : memref<320x128xbf16, #tpu.memory_space<vmem>>, vector<30x128xbf16>,
    %c0_79 = arith.constant 0 : index
    %c0_80 = arith.constant 0 : index
    %93 = vector.load %arg4[%c0_79, %c0_80] : memref<30x256xbf16, #tpu.memory_space<vmem>>, vector<30x256xbf16>
    %c0_81 = arith.constant 0 : index
    %c0_82 = arith.constant 0 : index
    %94 = vector.load %arg14[%c0_81, %c0_82] : memref<320x128xbf16, #tpu.memory_space<vmem>>, vector<256x128xbf16>
    %cst_83 = arith.constant dense<0.000000e+00> : vector<30x128xf32>
    %95 = tpu.matmul %93, %94, %cst_83 {dimension_numbers = #tpu.dot_dimension_numbers<[1], [0], [0], [1], [0, 0, 1, 1], [], []>} : vector<30x256xbf16>, vector<256x128xbf16>, vector<30x128xf32> -> vector<30x128xf32>
    %c0_84 = arith.constant 0 : index
    %c0_85 = arith.constant 0 : index
    %96 = vector.load %arg5[%c0_84, %c0_85] : memref<30x1xf32, #tpu.memory_space<vmem>>, vector<30x1xf32>
    %97 = vector.broadcast %96 : vector<30x1xf32> to vector<30x128xf32>
    %98 = arith.addf %95, %97 : vector<30x128xf32>
    %cst_86 = arith.constant 0.000000e+00 : f32
    %99 = vector.broadcast %cst_86 : f32 to vector<30x128xf32>
    %100 = arith.maximumf %98, %99 : vector<30x128xf32>
    %cst_87 = arith.constant 0.000000e+00 : f32
    %101 = vector.shape_cast %18 : vector<1x128xi1> to vector<1x128xi1>
    %102 = vector.broadcast %101 : vector<1x128xi1> to vector<30x128xi1>
    %103 = vector.broadcast %cst_87 : f32 to vector<30x128xf32>
    %104 = arith.select %102, %100, %103 : vector<30x128xi1>, vector<30x128xf32>
    %105 = arith.truncf %104 : vector<30x128xf32> to vector<30x128xbf16>
    %c0_88 = arith.constant 0 : index
    %c128_89 = arith.constant 128 : index
    %106 = vector.load %arg13[%c0_88, %c128_89] : memref<56x384xbf16, #tpu.memory_space<vmem>>, vector<30x128xbf16>
    tpu.vector_store %arg13[%c0_88, %c128_89], %105 {strides = array<i32>} : memref<56x384xbf16, #tpu.memory_space<vmem>>, vector<30x128xbf16>,
    %c0_90 = arith.constant 0 : index
    %c125_91 = arith.constant 125 : index
    %107 = vector.load %arg13[%c0_90, %c125_91] : memref<56x384xbf16, #tpu.memory_space<vmem>>, vector<30x128xbf16>
    %c0_92 = arith.constant 0 : index
    %c0_93 = arith.constant 0 : index
    %108 = vector.load %arg14[%c0_92, %c0_93] : memref<320x128xbf16, #tpu.memory_space<vmem>>, vector<30x128xbf16>
    tpu.vector_store %arg14[%c0_92, %c0_93], %107 {strides = array<i32>} : memref<320x128xbf16, #tpu.memory_space<vmem>>, vector<30x128xbf16>,
    %c0_94 = arith.constant 0 : index
    %c126_95 = arith.constant 126 : index
    %109 = vector.load %arg13[%c0_94, %c126_95] : memref<56x384xbf16, #tpu.memory_space<vmem>>, vector<30x128xbf16>
    %c32_96 = arith.constant 32 : index
    %c0_97 = arith.constant 0 : index
    %110 = vector.load %arg14[%c32_96, %c0_97] : memref<320x128xbf16, #tpu.memory_space<vmem>>, vector<30x128xbf16>
    tpu.vector_store %arg14[%c32_96, %c0_97], %109 {strides = array<i32>} : memref<320x128xbf16, #tpu.memory_space<vmem>>, vector<30x128xbf16>,
    %c0_98 = arith.constant 0 : index
    %c127_99 = arith.constant 127 : index
    %111 = vector.load %arg13[%c0_98, %c127_99] : memref<56x384xbf16, #tpu.memory_space<vmem>>, vector<30x128xbf16>
    %c64_100 = arith.constant 64 : index
    %c0_101 = arith.constant 0 : index
    %112 = vector.load %arg14[%c64_100, %c0_101] : memref<320x128xbf16, #tpu.memory_space<vmem>>, vector<30x128xbf16>
    tpu.vector_store %arg14[%c64_100, %c0_101], %111 {strides = array<i32>} : memref<320x128xbf16, #tpu.memory_space<vmem>>, vector<30x128xbf16>,
    %c0_102 = arith.constant 0 : index
    %c128_103 = arith.constant 128 : index
    %113 = vector.load %arg13[%c0_102, %c128_103] : memref<56x384xbf16, #tpu.memory_space<vmem>>, vector<30x128xbf16>
    %c96_104 = arith.constant 96 : index
    %c0_105 = arith.constant 0 : index
    %114 = vector.load %arg14[%c96_104, %c0_105] : memref<320x128xbf16, #tpu.memory_space<vmem>>, vector<30x128xbf16>
    tpu.vector_store %arg14[%c96_104, %c0_105], %113 {strides = array<i32>} : memref<320x128xbf16, #tpu.memory_space<vmem>>, vector<30x128xbf16>,
    %c0_106 = arith.constant 0 : index
    %c129_107 = arith.constant 129 : index
    %115 = vector.load %arg13[%c0_106, %c129_107] : memref<56x384xbf16, #tpu.memory_space<vmem>>, vector<30x128xbf16>
    %c128_108 = arith.constant 128 : index
    %c0_109 = arith.constant 0 : index
    %116 = vector.load %arg14[%c128_108, %c0_109] : memref<320x128xbf16, #tpu.memory_space<vmem>>, vector<30x128xbf16>
    tpu.vector_store %arg14[%c128_108, %c0_109], %115 {strides = array<i32>} : memref<320x128xbf16, #tpu.memory_space<vmem>>, vector<30x128xbf16>,
    %c0_110 = arith.constant 0 : index
    %c130_111 = arith.constant 130 : index
    %117 = vector.load %arg13[%c0_110, %c130_111] : memref<56x384xbf16, #tpu.memory_space<vmem>>, vector<30x128xbf16>
    %c160_112 = arith.constant 160 : index
    %c0_113 = arith.constant 0 : index
    %118 = vector.load %arg14[%c160_112, %c0_113] : memref<320x128xbf16, #tpu.memory_space<vmem>>, vector<30x128xbf16>
    tpu.vector_store %arg14[%c160_112, %c0_113], %117 {strides = array<i32>} : memref<320x128xbf16, #tpu.memory_space<vmem>>, vector<30x128xbf16>,
    %c0_114 = arith.constant 0 : index
    %c0_115 = arith.constant 0 : index
    %119 = vector.load %arg6[%c0_114, %c0_115] : memref<40x192xbf16, #tpu.memory_space<vmem>>, vector<40x192xbf16>
    %c0_116 = arith.constant 0 : index
    %c0_117 = arith.constant 0 : index
    %120 = vector.load %arg14[%c0_116, %c0_117] : memref<320x128xbf16, #tpu.memory_space<vmem>>, vector<192x128xbf16>
    %cst_118 = arith.constant dense<0.000000e+00> : vector<40x128xf32>
    %121 = tpu.matmul %119, %120, %cst_118 {dimension_numbers = #tpu.dot_dimension_numbers<[1], [0], [0], [1], [0, 0, 1, 1], [], []>} : vector<40x192xbf16>, vector<192x128xbf16>, vector<40x128xf32> -> vector<40x128xf32>
    %c0_119 = arith.constant 0 : index
    %c0_120 = arith.constant 0 : index
    %122 = vector.load %arg7[%c0_119, %c0_120] : memref<40x1xf32, #tpu.memory_space<vmem>>, vector<40x1xf32>
    %123 = vector.broadcast %122 : vector<40x1xf32> to vector<40x128xf32>
    %124 = arith.addf %121, %123 : vector<40x128xf32>
    %cst_121 = arith.constant 0.000000e+00 : f32
    %125 = vector.broadcast %cst_121 : f32 to vector<40x128xf32>
    %126 = arith.maximumf %124, %125 : vector<40x128xf32>
    %cst_122 = arith.constant 0.000000e+00 : f32
    %127 = vector.shape_cast %18 : vector<1x128xi1> to vector<1x128xi1>
    %128 = vector.broadcast %127 : vector<1x128xi1> to vector<40x128xi1>
    %129 = vector.broadcast %cst_122 : f32 to vector<40x128xf32>
    %130 = arith.select %128, %126, %129 : vector<40x128xi1>, vector<40x128xf32>
    %131 = arith.truncf %130 : vector<40x128xf32> to vector<40x128xbf16>
    %c0_123 = arith.constant 0 : index
    %c128_124 = arith.constant 128 : index
    %132 = vector.load %arg13[%c0_123, %c128_124] : memref<56x384xbf16, #tpu.memory_space<vmem>>, vector<40x128xbf16>
    tpu.vector_store %arg13[%c0_123, %c128_124], %131 {strides = array<i32>} : memref<56x384xbf16, #tpu.memory_space<vmem>>, vector<40x128xbf16>,
    %c0_125 = arith.constant 0 : index
    %c126_126 = arith.constant 126 : index
    %133 = vector.load %arg13[%c0_125, %c126_126] : memref<56x384xbf16, #tpu.memory_space<vmem>>, vector<40x128xbf16>
    %c0_127 = arith.constant 0 : index
    %c0_128 = arith.constant 0 : index
    %134 = vector.load %arg14[%c0_127, %c0_128] : memref<320x128xbf16, #tpu.memory_space<vmem>>, vector<40x128xbf16>
    tpu.vector_store %arg14[%c0_127, %c0_128], %133 {strides = array<i32>} : memref<320x128xbf16, #tpu.memory_space<vmem>>, vector<40x128xbf16>,
    %c0_129 = arith.constant 0 : index
    %c127_130 = arith.constant 127 : index
    %135 = vector.load %arg13[%c0_129, %c127_130] : memref<56x384xbf16, #tpu.memory_space<vmem>>, vector<40x128xbf16>
    %c48_131 = arith.constant 48 : index
    %c0_132 = arith.constant 0 : index
    %136 = vector.load %arg14[%c48_131, %c0_132] : memref<320x128xbf16, #tpu.memory_space<vmem>>, vector<40x128xbf16>
    tpu.vector_store %arg14[%c48_131, %c0_132], %135 {strides = array<i32>} : memref<320x128xbf16, #tpu.memory_space<vmem>>, vector<40x128xbf16>,
    %c0_133 = arith.constant 0 : index
    %c128_134 = arith.constant 128 : index
    %137 = vector.load %arg13[%c0_133, %c128_134] : memref<56x384xbf16, #tpu.memory_space<vmem>>, vector<40x128xbf16>
    %c96_135 = arith.constant 96 : index
    %c0_136 = arith.constant 0 : index
    %138 = vector.load %arg14[%c96_135, %c0_136] : memref<320x128xbf16, #tpu.memory_space<vmem>>, vector<40x128xbf16>
    tpu.vector_store %arg14[%c96_135, %c0_136], %137 {strides = array<i32>} : memref<320x128xbf16, #tpu.memory_space<vmem>>, vector<40x128xbf16>,
    %c0_137 = arith.constant 0 : index
    %c129_138 = arith.constant 129 : index
    %139 = vector.load %arg13[%c0_137, %c129_138] : memref<56x384xbf16, #tpu.memory_space<vmem>>, vector<40x128xbf16>
    %c144_139 = arith.constant 144 : index
    %c0_140 = arith.constant 0 : index
    %140 = vector.load %arg14[%c144_139, %c0_140] : memref<320x128xbf16, #tpu.memory_space<vmem>>, vector<40x128xbf16>
    tpu.vector_store %arg14[%c144_139, %c0_140], %139 {strides = array<i32>} : memref<320x128xbf16, #tpu.memory_space<vmem>>, vector<40x128xbf16>,
    %c0_141 = arith.constant 0 : index
    %c130_142 = arith.constant 130 : index
    %141 = vector.load %arg13[%c0_141, %c130_142] : memref<56x384xbf16, #tpu.memory_space<vmem>>, vector<40x128xbf16>
    %c192_143 = arith.constant 192 : index
    %c0_144 = arith.constant 0 : index
    %142 = vector.load %arg14[%c192_143, %c0_144] : memref<320x128xbf16, #tpu.memory_space<vmem>>, vector<40x128xbf16>
    tpu.vector_store %arg14[%c192_143, %c0_144], %141 {strides = array<i32>} : memref<320x128xbf16, #tpu.memory_space<vmem>>, vector<40x128xbf16>,
    %c0_145 = arith.constant 0 : index
    %c0_146 = arith.constant 0 : index
    %143 = vector.load %arg8[%c0_145, %c0_146] : memref<50x240xbf16, #tpu.memory_space<vmem>>, vector<50x240xbf16>
    %c0_147 = arith.constant 0 : index
    %c0_148 = arith.constant 0 : index
    %144 = vector.load %arg14[%c0_147, %c0_148] : memref<320x128xbf16, #tpu.memory_space<vmem>>, vector<240x128xbf16>
    %cst_149 = arith.constant dense<0.000000e+00> : vector<50x128xf32>
    %145 = tpu.matmul %143, %144, %cst_149 {dimension_numbers = #tpu.dot_dimension_numbers<[1], [0], [0], [1], [0, 0, 1, 1], [], []>} : vector<50x240xbf16>, vector<240x128xbf16>, vector<50x128xf32> -> vector<50x128xf32>
    %c0_150 = arith.constant 0 : index
    %c0_151 = arith.constant 0 : index
    %146 = vector.load %arg9[%c0_150, %c0_151] : memref<50x1xf32, #tpu.memory_space<vmem>>, vector<50x1xf32>
    %147 = vector.broadcast %146 : vector<50x1xf32> to vector<50x128xf32>
    %148 = arith.addf %145, %147 : vector<50x128xf32>
    %cst_152 = arith.constant 0.000000e+00 : f32
    %149 = vector.broadcast %cst_152 : f32 to vector<50x128xf32>
    %150 = arith.maximumf %148, %149 : vector<50x128xf32>
    %cst_153 = arith.constant 0.000000e+00 : f32
    %151 = vector.shape_cast %18 : vector<1x128xi1> to vector<1x128xi1>
    %152 = vector.broadcast %151 : vector<1x128xi1> to vector<50x128xi1>
    %153 = vector.broadcast %cst_153 : f32 to vector<50x128xf32>
    %154 = arith.select %152, %150, %153 : vector<50x128xi1>, vector<50x128xf32>
    %155 = arith.truncf %154 : vector<50x128xf32> to vector<50x128xbf16>
    %c0_154 = arith.constant 0 : index
    %c128_155 = arith.constant 128 : index
    %156 = vector.load %arg13[%c0_154, %c128_155] : memref<56x384xbf16, #tpu.memory_space<vmem>>, vector<50x128xbf16>
    tpu.vector_store %arg13[%c0_154, %c128_155], %155 {strides = array<i32>} : memref<56x384xbf16, #tpu.memory_space<vmem>>, vector<50x128xbf16>,
    %c0_156 = arith.constant 0 : index
    %c126_157 = arith.constant 126 : index
    %157 = vector.load %arg13[%c0_156, %c126_157] : memref<56x384xbf16, #tpu.memory_space<vmem>>, vector<50x128xbf16>
    %c0_158 = arith.constant 0 : index
    %c0_159 = arith.constant 0 : index
    %158 = vector.load %arg14[%c0_158, %c0_159] : memref<320x128xbf16, #tpu.memory_space<vmem>>, vector<50x128xbf16>
    tpu.vector_store %arg14[%c0_158, %c0_159], %157 {strides = array<i32>} : memref<320x128xbf16, #tpu.memory_space<vmem>>, vector<50x128xbf16>,
    %c0_160 = arith.constant 0 : index
    %c127_161 = arith.constant 127 : index
    %159 = vector.load %arg13[%c0_160, %c127_161] : memref<56x384xbf16, #tpu.memory_space<vmem>>, vector<50x128xbf16>
    %c64_162 = arith.constant 64 : index
    %c0_163 = arith.constant 0 : index
    %160 = vector.load %arg14[%c64_162, %c0_163] : memref<320x128xbf16, #tpu.memory_space<vmem>>, vector<50x128xbf16>
    tpu.vector_store %arg14[%c64_162, %c0_163], %159 {strides = array<i32>} : memref<320x128xbf16, #tpu.memory_space<vmem>>, vector<50x128xbf16>,
    %c0_164 = arith.constant 0 : index
    %c128_165 = arith.constant 128 : index
    %161 = vector.load %arg13[%c0_164, %c128_165] : memref<56x384xbf16, #tpu.memory_space<vmem>>, vector<50x128xbf16>
    %c128_166 = arith.constant 128 : index
    %c0_167 = arith.constant 0 : index
    %162 = vector.load %arg14[%c128_166, %c0_167] : memref<320x128xbf16, #tpu.memory_space<vmem>>, vector<50x128xbf16>
    tpu.vector_store %arg14[%c128_166, %c0_167], %161 {strides = array<i32>} : memref<320x128xbf16, #tpu.memory_space<vmem>>, vector<50x128xbf16>,
    %c0_168 = arith.constant 0 : index
    %c129_169 = arith.constant 129 : index
    %163 = vector.load %arg13[%c0_168, %c129_169] : memref<56x384xbf16, #tpu.memory_space<vmem>>, vector<50x128xbf16>
    %c192_170 = arith.constant 192 : index
    %c0_171 = arith.constant 0 : index
    %164 = vector.load %arg14[%c192_170, %c0_171] : memref<320x128xbf16, #tpu.memory_space<vmem>>, vector<50x128xbf16>
    tpu.vector_store %arg14[%c192_170, %c0_171], %163 {strides = array<i32>} : memref<320x128xbf16, #tpu.memory_space<vmem>>, vector<50x128xbf16>,
    %c0_172 = arith.constant 0 : index
    %c130_173 = arith.constant 130 : index
    %165 = vector.load %arg13[%c0_172, %c130_173] : memref<56x384xbf16, #tpu.memory_space<vmem>>, vector<50x128xbf16>
    %c256 = arith.constant 256 : index
    %c0_174 = arith.constant 0 : index
    %166 = vector.load %arg14[%c256, %c0_174] : memref<320x128xbf16, #tpu.memory_space<vmem>>, vector<50x128xbf16>
    tpu.vector_store %arg14[%c256, %c0_174], %165 {strides = array<i32>} : memref<320x128xbf16, #tpu.memory_space<vmem>>, vector<50x128xbf16>,
    %c0_175 = arith.constant 0 : index
    %c0_176 = arith.constant 0 : index
    %167 = vector.load %arg10[%c0_175, %c0_176] : memref<50x320xbf16, #tpu.memory_space<vmem>>, vector<50x320xbf16>
    %c0_177 = arith.constant 0 : index
    %c0_178 = arith.constant 0 : index
    %168 = vector.load %arg14[%c0_177, %c0_178] : memref<320x128xbf16, #tpu.memory_space<vmem>>, vector<320x128xbf16>
    %cst_179 = arith.constant dense<0.000000e+00> : vector<50x128xf32>
    %169 = tpu.matmul %167, %168, %cst_179 {dimension_numbers = #tpu.dot_dimension_numbers<[1], [0], [0], [1], [0, 0, 1, 1], [], []>} : vector<50x320xbf16>, vector<320x128xbf16>, vector<50x128xf32> -> vector<50x128xf32>
    %c0_180 = arith.constant 0 : index
    %c0_181 = arith.constant 0 : index
    %170 = vector.load %arg11[%c0_180, %c0_181] : memref<50x1xf32, #tpu.memory_space<vmem>>, vector<50x1xf32>
    %171 = vector.broadcast %170 : vector<50x1xf32> to vector<50x128xf32>
    %172 = arith.addf %169, %171 : vector<50x128xf32>
    %cst_182 = arith.constant 0.000000e+00 : f32
    %173 = vector.broadcast %cst_182 : f32 to vector<50x128xf32>
    %174 = arith.maximumf %172, %173 : vector<50x128xf32>
    %cst_183 = arith.constant 0.000000e+00 : f32
    %175 = vector.shape_cast %18 : vector<1x128xi1> to vector<1x128xi1>
    %176 = vector.broadcast %175 : vector<1x128xi1> to vector<50x128xi1>
    %177 = vector.broadcast %cst_183 : f32 to vector<50x128xf32>
    %178 = arith.select %176, %174, %177 : vector<50x128xi1>, vector<50x128xf32>
    %179 = arith.truncf %178 : vector<50x128xf32> to vector<50x128xbf16>
    %c0_184 = arith.constant 0 : index
    %c0_185 = arith.constant 0 : index
    %c0_186 = arith.constant 0 : index
    %180 = vector.load %arg12[%c0_184, %c0_185, %c0_186] : memref<1x50x128xbf16, #tpu.memory_space<vmem>>, vector<1x50x128xbf16>
    %181 = vector.shape_cast %180 : vector<1x50x128xbf16> to vector<50x128xbf16>
    %182 = vector.shape_cast %179 : vector<50x128xbf16> to vector<1x50x128xbf16>
    tpu.vector_store %arg12[%c0_184, %c0_185, %c0_186], %182 {strides = array<i32>} : memref<1x50x128xbf16, #tpu.memory_space<vmem>>, vector<1x50x128xbf16>,
    return
  }
  func.func @transform_0(%arg0: i32) -> (i32, i32, i32) {
    %c0_i32 = arith.constant 0 : i32
    %c0_i32_0 = arith.constant 0 : i32
    %c0_i32_1 = arith.constant 0 : i32
    return %arg0, %c0_i32, %c0_i32_0 : i32, i32, i32
  }
  func.func @transform_1(%arg0: i32) -> (i32, i32) {
    %c0_i32 = arith.constant 0 : i32
    %c0_i32_0 = arith.constant 0 : i32
    %c0_i32_1 = arith.constant 0 : i32
    return %c0_i32, %c0_i32_0 : i32, i32
  }
  func.func @transform_2(%arg0: i32) -> (i32, i32) {
    %c0_i32 = arith.constant 0 : i32
    %c0_i32_0 = arith.constant 0 : i32
    %c0_i32_1 = arith.constant 0 : i32
    return %c0_i32, %c0_i32_0 : i32, i32
  }
  func.func @transform_3(%arg0: i32) -> (i32, i32) {
    %c0_i32 = arith.constant 0 : i32
    %c0_i32_0 = arith.constant 0 : i32
    %c0_i32_1 = arith.constant 0 : i32
    return %c0_i32, %c0_i32_0 : i32, i32
  }
  func.func @transform_4(%arg0: i32) -> (i32, i32) {
    %c0_i32 = arith.constant 0 : i32
    %c0_i32_0 = arith.constant 0 : i32
    %c0_i32_1 = arith.constant 0 : i32
    return %c0_i32, %c0_i32_0 : i32, i32
  }
  func.func @transform_5(%arg0: i32) -> (i32, i32) {
    %c0_i32 = arith.constant 0 : i32
    %c0_i32_0 = arith.constant 0 : i32
    %c0_i32_1 = arith.constant 0 : i32
    return %c0_i32, %c0_i32_0 : i32, i32
  }
  func.func @transform_6(%arg0: i32) -> (i32, i32) {
    %c0_i32 = arith.constant 0 : i32
    %c0_i32_0 = arith.constant 0 : i32
    %c0_i32_1 = arith.constant 0 : i32
    return %c0_i32, %c0_i32_0 : i32, i32
  }
  func.func @transform_7(%arg0: i32) -> (i32, i32) {
    %c0_i32 = arith.constant 0 : i32
    %c0_i32_0 = arith.constant 0 : i32
    %c0_i32_1 = arith.constant 0 : i32
    return %c0_i32, %c0_i32_0 : i32, i32
  }
  func.func @transform_8(%arg0: i32) -> (i32, i32) {
    %c0_i32 = arith.constant 0 : i32
    %c0_i32_0 = arith.constant 0 : i32
    %c0_i32_1 = arith.constant 0 : i32
    return %c0_i32, %c0_i32_0 : i32, i32
  }
  func.func @transform_9(%arg0: i32) -> (i32, i32) {
    %c0_i32 = arith.constant 0 : i32
    %c0_i32_0 = arith.constant 0 : i32
    %c0_i32_1 = arith.constant 0 : i32
    return %c0_i32, %c0_i32_0 : i32, i32
  }
  func.func @transform_10(%arg0: i32) -> (i32, i32) {
    %c0_i32 = arith.constant 0 : i32
    %c0_i32_0 = arith.constant 0 : i32
    %c0_i32_1 = arith.constant 0 : i32
    return %c0_i32, %c0_i32_0 : i32, i32
  }
  func.func @transform_11(%arg0: i32) -> (i32, i32, i32) {
    %c0_i32 = arith.constant 0 : i32
    %c0_i32_0 = arith.constant 0 : i32
    %c0_i32_1 = arith.constant 0 : i32
    return %arg0, %c0_i32, %c0_i32_0 : i32, i32, i32
  }
}

module attributes {stable_mosaic.version = 11 : i64} {
  func.func @_dense_head_kernel(%arg0: i32, %arg1: i32, %arg2: memref<8x640xbf16, #tpu.memory_space<vmem>>, %arg3: memref<640x64xbf16, #tpu.memory_space<vmem>>, %arg4: memref<1x64xf32, #tpu.memory_space<vmem>>, %arg5: memref<64x1xf32, #tpu.memory_space<vmem>>, %arg6: memref<1x1xf32, #tpu.memory_space<vmem>>, %arg7: memref<8x1xf32, #tpu.memory_space<vmem>>, %arg8: memref<8x64xf32, #tpu.memory_space<vmem>>) attributes {dimension_semantics = [#tpu.dimension_semantics<parallel>, #tpu.dimension_semantics<arbitrary>], iteration_bounds = array<i64: 1, 10>, scalar_prefetch = 0 : i64, scratch_operands = 1 : i64, tpu.core_type = #tpu.core_type<tc>, window_params = [{transform_indices = @transform_0, window_bounds = array<i64: 8, 640>}, {transform_indices = @transform_1, window_bounds = array<i64: 640, 64>}, {pipeline_mode = #tpu.pipeline_mode<synchronous>, transform_indices = @transform_2, window_bounds = array<i64: 1, 64>}, {pipeline_mode = #tpu.pipeline_mode<synchronous>, transform_indices = @transform_3, window_bounds = array<i64: 64, 1>}, {pipeline_mode = #tpu.pipeline_mode<synchronous>, transform_indices = @transform_4, window_bounds = array<i64: 1, 1>}, {transform_indices = @transform_5, window_bounds = array<i64: 8, 1>}]} {
    %c0_i32 = arith.constant 0 : i32
    %0 = arith.cmpi eq, %arg1, %c0_i32 : i32
    %1 = arith.extui %0 : i1 to i32
    %c0_i32_0 = arith.constant 0 : i32
    %2 = arith.cmpi ne, %1, %c0_i32_0 : i32
    scf.if %2 {
      %cst_9 = arith.constant 0.000000e+00 : f32
      %12 = vector.broadcast %cst_9 : f32 to vector<8x64xf32>
      %c0_10 = arith.constant 0 : index
      %c0_11 = arith.constant 0 : index
      %13 = vector.load %arg8[%c0_10, %c0_11] : memref<8x64xf32, #tpu.memory_space<vmem>>, vector<8x64xf32>
      tpu.vector_store %arg8[%c0_10, %c0_11], %12 {strides = array<i32>} : memref<8x64xf32, #tpu.memory_space<vmem>>, vector<8x64xf32>,
    } else {
    }
    %c0 = arith.constant 0 : index
    %c0_1 = arith.constant 0 : index
    %3 = vector.load %arg8[%c0, %c0_1] : memref<8x64xf32, #tpu.memory_space<vmem>>, vector<8x64xf32>
    %c0_2 = arith.constant 0 : index
    %c0_3 = arith.constant 0 : index
    %4 = vector.load %arg2[%c0_2, %c0_3] : memref<8x640xbf16, #tpu.memory_space<vmem>>, vector<8x640xbf16>
    %c0_4 = arith.constant 0 : index
    %c0_5 = arith.constant 0 : index
    %5 = vector.load %arg3[%c0_4, %c0_5] : memref<640x64xbf16, #tpu.memory_space<vmem>>, vector<640x64xbf16>
    %cst = arith.constant dense<0.000000e+00> : vector<8x64xf32>
    %6 = tpu.matmul %4, %5, %cst {dimension_numbers = #tpu.dot_dimension_numbers<[1], [0], [0], [1], [0, 0, 1, 1], [], []>} : vector<8x640xbf16>, vector<640x64xbf16>, vector<8x64xf32> -> vector<8x64xf32>
    %7 = arith.addf %3, %6 : vector<8x64xf32>
    %c0_6 = arith.constant 0 : index
    %c0_7 = arith.constant 0 : index
    %8 = vector.load %arg8[%c0_6, %c0_7] : memref<8x64xf32, #tpu.memory_space<vmem>>, vector<8x64xf32>
    tpu.vector_store %arg8[%c0_6, %c0_7], %7 {strides = array<i32>} : memref<8x64xf32, #tpu.memory_space<vmem>>, vector<8x64xf32>,
    %c9_i32 = arith.constant 9 : i32
    %9 = arith.cmpi eq, %arg1, %c9_i32 : i32
    %10 = arith.extui %9 : i1 to i32
    %c0_i32_8 = arith.constant 0 : i32
    %11 = arith.cmpi ne, %10, %c0_i32_8 : i32
    scf.if %11 {
      %c0_9 = arith.constant 0 : index
      %c0_10 = arith.constant 0 : index
      %12 = vector.load %arg8[%c0_9, %c0_10] : memref<8x64xf32, #tpu.memory_space<vmem>>, vector<8x64xf32>
      %c0_11 = arith.constant 0 : index
      %c0_12 = arith.constant 0 : index
      %13 = vector.load %arg4[%c0_11, %c0_12] : memref<1x64xf32, #tpu.memory_space<vmem>>, vector<1x64xf32>
      %14 = vector.broadcast %13 : vector<1x64xf32> to vector<8x64xf32>
      %15 = arith.addf %12, %14 : vector<8x64xf32>
      %cst_13 = arith.constant 0.000000e+00 : f32
      %16 = vector.broadcast %cst_13 : f32 to vector<8x64xf32>
      %17 = arith.maximumf %15, %16 : vector<8x64xf32>
      %c0_14 = arith.constant 0 : index
      %c0_15 = arith.constant 0 : index
      %18 = vector.load %arg5[%c0_14, %c0_15] : memref<64x1xf32, #tpu.memory_space<vmem>>, vector<64x1xf32>
      %cst_16 = arith.constant dense<0.000000e+00> : vector<8x1xf32>
      %19 = tpu.matmul %17, %18, %cst_16 {dimension_numbers = #tpu.dot_dimension_numbers<[1], [0], [0], [1], [0, 0, 1, 1], [], []>} : vector<8x64xf32>, vector<64x1xf32>, vector<8x1xf32> -> vector<8x1xf32>
      %c0_17 = arith.constant 0 : index
      %c0_18 = arith.constant 0 : index
      %20 = vector.load %arg6[%c0_17, %c0_18] : memref<1x1xf32, #tpu.memory_space<vmem>>, vector<1x1xf32>
      %21 = vector.broadcast %20 : vector<1x1xf32> to vector<8x1xf32>
      %22 = arith.addf %19, %21 : vector<8x1xf32>
      %c0_19 = arith.constant 0 : index
      %c0_20 = arith.constant 0 : index
      %23 = vector.load %arg7[%c0_19, %c0_20] : memref<8x1xf32, #tpu.memory_space<vmem>>, vector<8x1xf32>
      tpu.vector_store %arg7[%c0_19, %c0_20], %22 {strides = array<i32>} : memref<8x1xf32, #tpu.memory_space<vmem>>, vector<8x1xf32>,
    } else {
    }
    return
  }
  func.func @transform_0(%arg0: i32, %arg1: i32) -> (i32, i32) {
    %c0_i32 = arith.constant 0 : i32
    return %arg0, %arg1 : i32, i32
  }
  func.func @transform_1(%arg0: i32, %arg1: i32) -> (i32, i32) {
    %c0_i32 = arith.constant 0 : i32
    %c0_i32_0 = arith.constant 0 : i32
    return %arg1, %c0_i32 : i32, i32
  }
  func.func @transform_2(%arg0: i32, %arg1: i32) -> (i32, i32) {
    %c0_i32 = arith.constant 0 : i32
    %c0_i32_0 = arith.constant 0 : i32
    %c0_i32_1 = arith.constant 0 : i32
    return %c0_i32, %c0_i32_0 : i32, i32
  }
  func.func @transform_3(%arg0: i32, %arg1: i32) -> (i32, i32) {
    %c0_i32 = arith.constant 0 : i32
    %c0_i32_0 = arith.constant 0 : i32
    %c0_i32_1 = arith.constant 0 : i32
    return %c0_i32, %c0_i32_0 : i32, i32
  }
  func.func @transform_4(%arg0: i32, %arg1: i32) -> (i32, i32) {
    %c0_i32 = arith.constant 0 : i32
    %c0_i32_0 = arith.constant 0 : i32
    %c0_i32_1 = arith.constant 0 : i32
    return %c0_i32, %c0_i32_0 : i32, i32
  }
  func.func @transform_5(%arg0: i32, %arg1: i32) -> (i32, i32) {
    %c0_i32 = arith.constant 0 : i32
    %c0_i32_0 = arith.constant 0 : i32
    return %arg0, %c0_i32 : i32, i32
  }
}

</mosaic_0001>

<llo_original>
// kernel: seq2point_forward.3
$region0: #{seq2point_forward.3}
  #allocation0 [shape = 'u32[]', space=smem, size = 0x4, offset = 0x4, fixed_abs, tag = 'smem constant byte address 0x4 - core index']
  #allocation1 [shape = 'u32[144,128]{1,0:T(1,128)}', space=vmem, size = 0x12000, scoped, tag = 'internal scratch']
  #allocation2 [shape = 'f32[8,64]{1,0:T(8,128)}', space=vmem, size = 0x1000, scoped, tag = 'scratch operand']
  #allocation3 [shape = 'f32[1,1]{1,0:T(1,128)S(1)}', space=vmem, size = 0x200, scoped, tag = 'scoped memory for seq2point_forward.3']
  %s0 = inlined_call_operand.vmem [shape: bf16[8,6400], index: 0, kind: input, shape index: {}]
  %s1 = inlined_call_operand.vmem [shape: bf16[6400,64], index: 1, kind: input, shape index: {}]
  %s2 = inlined_call_operand.vmem [shape: f32[1,64], index: 2, kind: input, shape index: {}]
  %s3 = inlined_call_operand.vmem [shape: f32[64,1], index: 3, kind: input, shape index: {}]
  %s4 = inlined_call_operand.<no memory space> [shape: f32[1,1], index: 4, kind: input, shape index: {}]
  %s5 = inlined_call_operand.vmem [shape: f32[8,1], index: 5, kind: output, shape index: {}]
  %s6 = sld [smem:[#allocation0]]
  $region61: #{seq2point_forward.3} parent=0
    _
  %s8 = ssub.s32 1, %s6
  %s9 = scalar_select 0, %s8, %s6
  %v10 = vstv %s4
  %11 = vst [vmem:[#allocation3] sm:$0x1] %v10
  loop: start=0, step=1, limit=12
  $region2: #{seq2point_forward.3} parent=0 // loop_pre_header
    _
  $region3: #{seq2point_forward.3} parent=0 // loop_header
    %s13 = sphi 0, %s17
    %p14 = scmp.ge.s32.totalorder %s13, 12
    %s20 = sphi 0, %s32
    %s21 = sphi 0, %s28
    %s22 = sphi 0, %s20
    %s23 = sphi 0, %s21
    %s24 = sphi 0, %s22
    %s25 = sphi 0, %s23
    %s37 = sphi 0, %s39
    %s40 = sphi 0, %s37
    %s41 = sphi 0, %s40
    %s57 = sphi 0, %s41
    %s63 = sphi 0, %s65
    %s66 = sphi 0, %s63
    %s67 = sphi 0, %s66
    %s83 = sphi 0, %s67
    %s87 = sphi 0, %s87
    %s89 = sphi 0, %s87
    %s90 = sphi 0, %s89
    %s104 = sphi 0, %s90
    %s108 = sphi 0, %s108
    %s110 = sphi 0, %s108
    %s111 = sphi 0, %s110
    %s125 = sphi 0, %s111
    %s129 = sphi 0, %s129
    %s131 = sphi 0, %s129
    %s132 = sphi 0, %s131
    %s146 = sphi 0, %s132
    %s152 = sphi 0, %s154
    %s155 = sphi 0, %s152
    %s156 = sphi 0, %s155
    %s172 = sphi 0, %s156
  $region4: #{seq2point_forward.3} parent=0 // loop_header_branch
    %16 = sbr.rel (%p14) target = $region8
  $region5: #{seq2point_forward.3} parent=0 // loop_body
    %s18 = ssub.s32 %s13, 1
    %s19 = ssub.s32 %s13, 2
    %s26 = sadd.s32 1, %s21
    %p27 = scmp.ge.s32.totalorder %s26, 10
    %s28 = scalar_select %p27, 0, %s26
    %s29 = sadd.s32 1, %s20
    %s30 = scalar_select %p27, %s29, %s20
    %p31 = scmp.ge.s32.totalorder %s30, 1
    %s32 = scalar_select %p31, 0, %s30
    %s33 = ssub.s32 %s20, %s32
    %s34 = ssub.s32 %s21, %s28
    %s35 = sor.u32 %s33, %s34
    %p36 = scmp.eq.s32.totalorder %s35, 0
    %s38 = sadd.s32 %s37, 1
    %s39 = scalar_select %p36, %s37, %s38
    %p42 = pneg %p36
    %p43 = scmp.eq.s32.totalorder %s13, 9
    %p44 = por %p42, %p43
    %p45 = scmp.ne.s32.totalorder %s37, %s40
    %p46 = scmp.eq.s32.totalorder %s13, 0
    %p47 = por %p45, %p46
    %p48 = scmp.ne.s32.totalorder %s37, %s40
    %p49 = scmp.eq.s32.totalorder %s18, 9
    %p50 = por %p48, %p49
    %p51 = scmp.ne.s32.totalorder %s40, %s41
    %p52 = scmp.eq.s32.totalorder %s18, 0
    %p53 = por %p51, %p52
    %p54 = scmp.ne.s32.totalorder %s40, %s41
    %p55 = scmp.eq.s32.totalorder %s19, 9
    %p56 = por %p54, %p55
    %p58 = scmp.ne.s32.totalorder %s41, %s57
    %p59 = scmp.eq.s32.totalorder %s19, 0
    %p60 = por %p58, %p59
    %s61 = ssub.s32 %s21, %s28
    %p62 = scmp.eq.s32.totalorder %s61, 0
    %s64 = sadd.s32 %s63, 1
    %s65 = scalar_select %p62, %s63, %s64
    %p68 = pneg %p62
    %p69 = scmp.eq.s32.totalorder %s13, 9
    %p70 = por %p68, %p69
    %p71 = scmp.ne.s32.totalorder %s63, %s66
    %p72 = scmp.eq.s32.totalorder %s13, 0
    %p73 = por %p71, %p72
    %p74 = scmp.ne.s32.totalorder %s63, %s66
    %p75 = scmp.eq.s32.totalorder %s18, 9
    %p76 = por %p74, %p75
    %p77 = scmp.ne.s32.totalorder %s66, %s67
    %p78 = scmp.eq.s32.totalorder %s18, 0
    %p79 = por %p77, %p78
    %p80 = scmp.ne.s32.totalorder %s66, %s67
    %p81 = scmp.eq.s32.totalorder %s19, 9
    %p82 = por %p80, %p81
    %p84 = scmp.ne.s32.totalorder %s67, %s83
    %p85 = scmp.eq.s32.totalorder %s19, 0
    %p86 = por %p84, %p85
    %s88 = sadd.s32 %s87, 1
    %p91 = scmp.eq.s32.totalorder %s13, 9
    %p92 = scmp.ne.s32.totalorder %s87, %s89
    %p93 = scmp.eq.s32.totalorder %s13, 0
    %p94 = por %p92, %p93
    %p95 = scmp.ne.s32.totalorder %s87, %s89
    %p96 = scmp.eq.s32.totalorder %s18, 9
    %p97 = por %p95, %p96
    %p98 = scmp.ne.s32.totalorder %s89, %s90
    %p99 = scmp.eq.s32.totalorder %s18, 0
    %p100 = por %p98, %p99
    %p101 = scmp.ne.s32.totalorder %s89, %s90
    %p102 = scmp.eq.s32.totalorder %s19, 9
    %p103 = por %p101, %p102
    %p105 = scmp.ne.s32.totalorder %s90, %s104
    %p106 = scmp.eq.s32.totalorder %s19, 0
    %p107 = por %p105, %p106
    %s109 = sadd.s32 %s108, 1
    %p112 = scmp.eq.s32.totalorder %s13, 9
    %p113 = scmp.ne.s32.totalorder %s108, %s110
    %p114 = scmp.eq.s32.totalorder %s13, 0
    %p115 = por %p113, %p114
    %p116 = scmp.ne.s32.totalorder %s108, %s110
    %p117 = scmp.eq.s32.totalorder %s18, 9
    %p118 = por %p116, %p117
    %p119 = scmp.ne.s32.totalorder %s110, %s111
    %p120 = scmp.eq.s32.totalorder %s18, 0
    %p121 = por %p119, %p120
    %p122 = scmp.ne.s32.totalorder %s110, %s111
    %p123 = scmp.eq.s32.totalorder %s19, 9
    %p124 = por %p122, %p123
    %p126 = scmp.ne.s32.totalorder %s111, %s125
    %p127 = scmp.eq.s32.totalorder %s19, 0
    %p128 = por %p126, %p127
    %s130 = sadd.s32 %s129, 1
    %p133 = scmp.eq.s32.totalorder %s13, 9
    %p134 = scmp.ne.s32.totalorder %s129, %s131
    %p135 = scmp.eq.s32.totalorder %s13, 0
    %p136 = por %p134, %p135
    %p137 = scmp.ne.s32.totalorder %s129, %s131
    %p138 = scmp.eq.s32.totalorder %s18, 9
    %p139 = por %p137, %p138
    %p140 = scmp.ne.s32.totalorder %s131, %s132
    %p141 = scmp.eq.s32.totalorder %s18, 0
    %p142 = por %p140, %p141
    %p143 = scmp.ne.s32.totalorder %s131, %s132
    %p144 = scmp.eq.s32.totalorder %s19, 9
    %p145 = por %p143, %p144
    %p147 = scmp.ne.s32.totalorder %s132, %s146
    %p148 = scmp.eq.s32.totalorder %s19, 0
    %p149 = por %p147, %p148
    %s150 = ssub.s32 %s20, %s32
    %p151 = scmp.eq.s32.totalorder %s150, 0
    %s153 = sadd.s32 %s152, 1
    %s154 = scalar_select %p151, %s152, %s153
    %p157 = pneg %p151
    %p158 = scmp.eq.s32.totalorder %s13, 9
    %p159 = por %p157, %p158
    %p160 = scmp.ne.s32.totalorder %s152, %s155
    %p161 = scmp.eq.s32.totalorder %s13, 0
    %p162 = por %p160, %p161
    %p163 = scmp.ne.s32.totalorder %s152, %s155
    %p164 = scmp.eq.s32.totalorder %s18, 9
    %p165 = por %p163, %p164
    %p166 = scmp.ne.s32.totalorder %s155, %s156
    %p167 = scmp.eq.s32.totalorder %s18, 0
    %p168 = por %p166, %p167
    %p169 = scmp.ne.s32.totalorder %s155, %s156
    %p170 = scmp.eq.s32.totalorder %s19, 9
    %p171 = por %p169, %p170
    %p173 = scmp.ne.s32.totalorder %s156, %s172
    %p174 = scmp.eq.s32.totalorder %s19, 0
    %p175 = por %p173, %p174
    %p176 = scmp.le.s32.totalorder 1, %s13
    %p177 = scmp.lt.s32.totalorder %s13, 11
    %p178 = pnand %p176, %p177
    %p179 = pneg %p178
    // Predicated region
    $region9: #{seq2point_forward.3} parent=5 // pred_check
      _
    $region10: #{seq2point_forward.3} parent=5 // pred_check_branch
      %181 = sbr.rel (%p178) target = $region12
    $region11: #{seq2point_forward.3} parent=5 // pred_region
      %s182 = ssub.s32 %s13, 1
      // Predicated region
      $region13: #{seq2point_forward.3} parent=11 // pred_check
        %p183 = pneg %p100
      $region14: #{seq2point_forward.3} parent=11 // pred_check_branch
        %185 = sbr.rel (%p183) target = $region16
      $region15: #{seq2point_forward.3} parent=11 // pred_region
        _
      $region16: #{seq2point_forward.3} parent=11 // pred_fallthru
        _
      // Predicated region
      $region17: #{seq2point_forward.3} parent=11 // pred_check
        %p186 = pneg %p121
      $region18: #{seq2point_forward.3} parent=11 // pred_check_branch
        %188 = sbr.rel (%p186) target = $region20
      $region19: #{seq2point_forward.3} parent=11 // pred_region
        _
      $region20: #{seq2point_forward.3} parent=11 // pred_fallthru
        _
      // Predicated region
      $region21: #{seq2point_forward.3} parent=11 // pred_check
        %p189 = pneg %p142
      $region22: #{seq2point_forward.3} parent=11 // pred_check_branch
        %191 = sbr.rel (%p189) target = $region24
      $region23: #{seq2point_forward.3} parent=11 // pred_region
        _
      $region24: #{seq2point_forward.3} parent=11 // pred_fallthru
        _
    $region12: #{seq2point_forward.3} parent=5 // pred_fallthru
      _
    %p192 = scmp.lt.s32.totalorder %s13, 10
    // Predicated region
    $region25: #{seq2point_forward.3} parent=5 // pred_check
      %p193 = pneg %p192
    $region26: #{seq2point_forward.3} parent=5 // pred_check_branch
      %195 = sbr.rel (%p193) target = $region28
    $region27: #{seq2point_forward.3} parent=5 // pred_region
      // Predicated region
      $region29: #{seq2point_forward.3} parent=27 // pred_check
        %p196 = pneg %p47
      $region30: #{seq2point_forward.3} parent=27 // pred_check_branch
        %198 = sbr.rel (%p196) target = $region32
      $region31: #{seq2point_forward.3} parent=27 // pred_region
        %s199 = smul.u32 5, %s21
        %p200 = scmp.lt.s32.totalorder %s20, 0
        %s201 = scalar_select %p200, %s20, 0
        %p202 = scmp.lt.s32.totalorder %s199, 49
        %s203 = scalar_select %p202, %s199, 49
        %s204 = smul.addr %s201, 50
        %s205 = sadd.s32 %s203, %s204
        %s206 = smul.addr %s205, 4
        %s207 = scalar_lea.vmem %s0, %s206
        %s208 = smul.u32 5, %s21
      $region32: #{seq2point_forward.3} parent=27 // pred_fallthru
        _
      // Predicated region
      $region33: #{seq2point_forward.3} parent=27 // pred_check
        %p209 = pneg %p73
      $region34: #{seq2point_forward.3} parent=27 // pred_check_branch
        %211 = sbr.rel (%p209) target = $region36
      $region35: #{seq2point_forward.3} parent=27 // pred_region
        %s212 = smul.u32 80, %s21
        %p213 = scmp.lt.s32.totalorder %s212, 799
        %s214 = scalar_select %p213, %s212, 799
        %s215 = smul.addr %s214, 4
        %s216 = scalar_lea.vmem %s1, %s215
        %s217 = smul.u32 80, %s21
      $region36: #{seq2point_forward.3} parent=27 // pred_fallthru
        _
    $region28: #{seq2point_forward.3} parent=5 // pred_fallthru
      _
    %p218 = scmp.le.s32.totalorder 1, %s13
    %p219 = scmp.lt.s32.totalorder %s13, 11
    %p220 = pnand %p218, %p219
    %p221 = pneg %p220
    // Predicated region
    $region37: #{seq2point_forward.3} parent=5 // pred_check
      _
    $region38: #{seq2point_forward.3} parent=5 // pred_check_branch
      %223 = sbr.rel (%p220) target = $region40
    $region39: #{seq2point_forward.3} parent=5 // pred_region
      %s224 = ssub.s32 %s13, 1
      %s225 = smul.u32 5, %s23
      %p226 = scmp.lt.s32.totalorder %s22, 0
      %s227 = scalar_select %p226, %s22, 0
      %p228 = scmp.lt.s32.totalorder %s225, 49
      %s229 = scalar_select %p228, %s225, 49
      %s230 = smul.addr %s227, 50
      %s231 = sadd.s32 %s229, %s230
      %s232 = smul.addr %s231, 4
      %s233 = scalar_lea.vmem %s0, %s232
      %p234 = pneg %p53
      %p235 = pneg %p50
      %s236 = smul.u32 80, %s23
      %p237 = scmp.lt.s32.totalorder %s236, 799
      %s238 = scalar_select %p237, %s236, 799
      %s239 = smul.addr %s238, 4
      %s240 = scalar_lea.vmem %s1, %s239
      %p241 = pneg %p79
      %p242 = pneg %p76
      %p243 = pneg %p100
      %p244 = pneg %p97
      %p245 = pneg %p121
      %p246 = pneg %p118
      %p247 = pneg %p142
      %p248 = pneg %p139
      %p249 = pneg %p168
      %p250 = pneg %p165
      %p251 = scmp.lt.s32.totalorder %s22, 0
      %s252 = scalar_select %p251, %s22, 0
      %s253 = smul.addr %s252, 8
      %s254 = scalar_lea.vmem %s5, %s253
      %s255 = smul.u32 5, %s23
      %p256 = scmp.lt.s32.totalorder %s22, 0
      %s257 = scalar_select %p256, %s22, 0
      %p258 = scmp.lt.s32.totalorder %s255, 49
      %s259 = scalar_select %p258, %s255, 49
      %s260 = smul.addr %s257, 50
      %s261 = sadd.s32 %s259, %s260
      %s262 = smul.addr %s261, 4
      %s263 = scalar_lea.vmem %s0, %s262
      %s264 = smul.u32 5, %s23
      %s265 = smul.u32 80, %s23
      %p266 = scmp.lt.s32.totalorder %s265, 799
      %s267 = scalar_select %p266, %s265, 799
      %s268 = smul.addr %s267, 4
      %s269 = scalar_lea.vmem %s1, %s268
      %s270 = smul.u32 80, %s23
      %p271 = scmp.lt.s32.totalorder %s22, 0
      %s272 = scalar_select %p271, %s22, 0
      %s273 = smul.addr %s272, 8
      %s274 = scalar_lea.vmem %s5, %s273
      %p276 = scmp.eq.s32.totalorder %s23, 0
      // Predicated region
      $region41: #{seq2point_forward.3} parent=39 // pred_check
        %p277 = pneg %p276
      $region42: #{seq2point_forward.3} parent=39 // pred_check_branch
        %279 = sbr.rel (%p277) target = $region44
      $region43: #{seq2point_forward.3} parent=39 // pred_region
        %vm280 = vcmask 523264
        %281 = vst.msk [vmem:[#allocation2] sm:$0xff] %vm280, 0.0
      $region44: #{seq2point_forward.3} parent=39 // pred_fallthru
        _
      %v282 = vld [vmem:[#allocation2] sm:$0xff]
      %v283 = vld [vmem:[%s263] sm:$0xff]
      %v284 = vld [vmem:[%s263 + $0x8] sm:$0xff]
      %v285 = vld [vmem:[%s263 + $0x10] sm:$0xf]
      %v286 = vld [vmem:[%s269] sm:$0xf]
      %v287 = vld [vmem:[%s269 + $0x4] sm:$0xf]
      %v288 = vld [vmem:[%s269 + $0x8] sm:$0xf]
      %v289 = vld [vmem:[%s269 + $0xc] sm:$0xf]
      %v290 = vld [vmem:[%s269 + $0x10] sm:$0xf]
      %v291 = vld [vmem:[%s269 + $0x14] sm:$0xf]
      %v292 = vld [vmem:[%s269 + $0x18] sm:$0xf]
      %v293 = vld [vmem:[%s269 + $0x1c] sm:$0xf]
      %v294 = vld [vmem:[%s269 + $0x20] sm:$0xf]
      %v295 = vld [vmem:[%s269 + $0x24] sm:$0xf]
      %v296 = vld [vmem:[%s269 + $0x28] sm:$0xf]
      %v297 = vld [vmem:[%s269 + $0x2c] sm:$0xf]
      %v298 = vld [vmem:[%s269 + $0x30] sm:$0xf]
      %v299 = vld [vmem:[%s269 + $0x34] sm:$0xf]
      %v300 = vld [vmem:[%s269 + $0x38] sm:$0xf]
      %v301 = vld [vmem:[%s269 + $0x3c] sm:$0xf]
      %v302 = vld [vmem:[%s269 + $0x40] sm:$0xf]
      %v303 = vld [vmem:[%s269 + $0x44] sm:$0xf]
      %v304 = vld [vmem:[%s269 + $0x48] sm:$0xf]
      %v305 = vld [vmem:[%s269 + $0x4c] sm:$0xf]
      %v306 = vld [vmem:[%s269 + $0x50] sm:$0xf]
      %v307 = vld [vmem:[%s269 + $0x54] sm:$0xf]
      %v308 = vld [vmem:[%s269 + $0x58] sm:$0xf]
      %v309 = vld [vmem:[%s269 + $0x5c] sm:$0xf]
      %v310 = vld [vmem:[%s269 + $0x60] sm:$0xf]
      %v311 = vld [vmem:[%s269 + $0x64] sm:$0xf]
      %v312 = vld [vmem:[%s269 + $0x68] sm:$0xf]
      %v313 = vld [vmem:[%s269 + $0x6c] sm:$0xf]
      %v314 = vld [vmem:[%s269 + $0x70] sm:$0xf]
      %v315 = vld [vmem:[%s269 + $0x74] sm:$0xf]
      %v316 = vld [vmem:[%s269 + $0x78] sm:$0xf]
      %v317 = vld [vmem:[%s269 + $0x7c] sm:$0xf]
      %v318 = vld [vmem:[%s269 + $0x80] sm:$0xf]
      %v319 = vld [vmem:[%s269 + $0x84] sm:$0xf]
      %v320 = vld [vmem:[%s269 + $0x88] sm:$0xf]
      %v321 = vld [vmem:[%s269 + $0x8c] sm:$0xf]
      %v322 = vld [vmem:[%s269 + $0x90] sm:$0xf]
      %v323 = vld [vmem:[%s269 + $0x94] sm:$0xf]
      %v324 = vld [vmem:[%s269 + $0x98] sm:$0xf]
      %v325 = vld [vmem:[%s269 + $0x9c] sm:$0xf]
      %v326 = vld [vmem:[%s269 + $0xa0] sm:$0xf]
      %v327 = vld [vmem:[%s269 + $0xa4] sm:$0xf]
      %v328 = vld [vmem:[%s269 + $0xa8] sm:$0xf]
      %v329 = vld [vmem:[%s269 + $0xac] sm:$0xf]
      %v330 = vld [vmem:[%s269 + $0xb0] sm:$0xf]
      %v331 = vld [vmem:[%s269 + $0xb4] sm:$0xf]
      %v332 = vld [vmem:[%s269 + $0xb8] sm:$0xf]
      %v333 = vld [vmem:[%s269 + $0xbc] sm:$0xf]
      %v334 = vld [vmem:[%s269 + $0xc0] sm:$0xf]
      %v335 = vld [vmem:[%s269 + $0xc4] sm:$0xf]
      %v336 = vld [vmem:[%s269 + $0xc8] sm:$0xf]
      %v337 = vld [vmem:[%s269 + $0xcc] sm:$0xf]
      %v338 = vld [vmem:[%s269 + $0xd0] sm:$0xf]
      %v339 = vld [vmem:[%s269 + $0xd4] sm:$0xf]
      %v340 = vld [vmem:[%s269 + $0xd8] sm:$0xf]
      %v341 = vld [vmem:[%s269 + $0xdc] sm:$0xf]
      %v342 = vld [vmem:[%s269 + $0xe0] sm:$0xf]
      %v343 = vld [vmem:[%s269 + $0xe4] sm:$0xf]
      %v344 = vld [vmem:[%s269 + $0xe8] sm:$0xf]
      %v345 = vld [vmem:[%s269 + $0xec] sm:$0xf]
      %v346 = vld [vmem:[%s269 + $0xf0] sm:$0xf]
      %v347 = vld [vmem:[%s269 + $0xf4] sm:$0xf]
      %v348 = vld [vmem:[%s269 + $0xf8] sm:$0xf]
      %v349 = vld [vmem:[%s269 + $0xfc] sm:$0xf]
      %v350 = vld [vmem:[%s269 + $0x100] sm:$0xf]
      %v351 = vld [vmem:[%s269 + $0x104] sm:$0xf]
      %v352 = vld [vmem:[%s269 + $0x108] sm:$0xf]
      %v353 = vld [vmem:[%s269 + $0x10c] sm:$0xf]
      %v354 = vld [vmem:[%s269 + $0x110] sm:$0xf]
      %v355 = vld [vmem:[%s269 + $0x114] sm:$0xf]
      %v356 = vld [vmem:[%s269 + $0x118] sm:$0xf]
      %v357 = vld [vmem:[%s269 + $0x11c] sm:$0xf]
      %v358 = vld [vmem:[%s269 + $0x120] sm:$0xf]
      %v359 = vld [vmem:[%s269 + $0x124] sm:$0xf]
      %v360 = vld [vmem:[%s269 + $0x128] sm:$0xf]
      %v361 = vld [vmem:[%s269 + $0x12c] sm:$0xf]
      %v362 = vld [vmem:[%s269 + $0x130] sm:$0xf]
      %v363 = vld [vmem:[%s269 + $0x134] sm:$0xf]
      %v364 = vld [vmem:[%s269 + $0x138] sm:$0xf]
      %v365 = vld [vmem:[%s269 + $0x13c] sm:$0xf]
      %v369 = vunpack.c.l.b16 %v283
      %v370 = vunpack.c.h.b16 %v283
      %v371 = vunpack.c.l.b16 %v284
      %v372 = vunpack.c.h.b16 %v284
      %v373 = vunpack.c.l.b16 %v285
      %v374 = vpack.c.b16 %v369, %v369
      %v375 = vpack.c.b16 %v370, %v370
      %v376 = vpack.c.b16 %v371, %v371
      %v377 = vpack.c.b16 %v372, %v372
      %v378 = vpack.c.b16 %v373, %v373
      %v464 = vunpack.c.l.b16 %v286
      %v465 = vunpack.c.l.b16 %v287
      %v466 = vunpack.c.l.b16 %v288
      %v467 = vunpack.c.l.b16 %v289
      %v468 = vunpack.c.l.b16 %v290
      %v469 = vunpack.c.l.b16 %v291
      %v470 = vunpack.c.l.b16 %v292
      %v471 = vunpack.c.l.b16 %v293
      %v472 = vunpack.c.l.b16 %v294
      %v473 = vunpack.c.l.b16 %v295
      %v474 = vunpack.c.l.b16 %v296
      %v475 = vunpack.c.l.b16 %v297
      %v476 = vunpack.c.l.b16 %v298
      %v477 = vunpack.c.l.b16 %v299
      %v478 = vunpack.c.l.b16 %v300
      %v479 = vunpack.c.l.b16 %v301
      %v480 = vunpack.c.l.b16 %v302
      %v481 = vunpack.c.l.b16 %v303
      %v482 = vunpack.c.l.b16 %v304
      %v483 = vunpack.c.l.b16 %v305
      %v484 = vunpack.c.l.b16 %v306
      %v485 = vunpack.c.l.b16 %v307
      %v486 = vunpack.c.l.b16 %v308
      %v487 = vunpack.c.l.b16 %v309
      %v488 = vunpack.c.l.b16 %v310
      %v489 = vunpack.c.l.b16 %v311
      %v490 = vunpack.c.l.b16 %v312
      %v491 = vunpack.c.l.b16 %v313
      %v492 = vunpack.c.l.b16 %v314
      %v493 = vunpack.c.l.b16 %v315
      %v494 = vunpack.c.l.b16 %v316
      %v495 = vunpack.c.l.b16 %v317
      %v496 = vunpack.c.l.b16 %v318
      %v497 = vunpack.c.l.b16 %v319
      %v498 = vunpack.c.l.b16 %v320
      %v499 = vunpack.c.l.b16 %v321
      %v500 = vunpack.c.l.b16 %v322
      %v501 = vunpack.c.l.b16 %v323
      %v502 = vunpack.c.l.b16 %v324
      %v503 = vunpack.c.l.b16 %v325
      %v504 = vunpack.c.l.b16 %v326
      %v505 = vunpack.c.l.b16 %v327
      %v506 = vunpack.c.l.b16 %v328
      %v507 = vunpack.c.l.b16 %v329
      %v508 = vunpack.c.l.b16 %v330
      %v509 = vunpack.c.l.b16 %v331
      %v510 = vunpack.c.l.b16 %v332
      %v511 = vunpack.c.l.b16 %v333
      %v512 = vunpack.c.l.b16 %v334
      %v513 = vunpack.c.l.b16 %v335
      %v514 = vunpack.c.l.b16 %v336
      %v515 = vunpack.c.l.b16 %v337
      %v516 = vunpack.c.l.b16 %v338
      %v517 = vunpack.c.l.b16 %v339
      %v518 = vunpack.c.l.b16 %v340
      %v519 = vunpack.c.l.b16 %v341
      %v520 = vunpack.c.l.b16 %v342
      %v521 = vunpack.c.l.b16 %v343
      %v522 = vunpack.c.l.b16 %v344
      %v523 = vunpack.c.l.b16 %v345
      %v524 = vunpack.c.l.b16 %v346
      %v525 = vunpack.c.l.b16 %v347
      %v526 = vunpack.c.l.b16 %v348
      %v527 = vunpack.c.l.b16 %v349
      %v528 = vunpack.c.l.b16 %v350
      %v529 = vunpack.c.l.b16 %v351
      %v530 = vunpack.c.l.b16 %v352
      %v531 = vunpack.c.l.b16 %v353
      %v532 = vunpack.c.l.b16 %v354
      %v533 = vunpack.c.l.b16 %v355
      %v534 = vunpack.c.l.b16 %v356
      %v535 = vunpack.c.l.b16 %v357
      %v536 = vunpack.c.l.b16 %v358
      %v537 = vunpack.c.l.b16 %v359
      %v538 = vunpack.c.l.b16 %v360
      %v539 = vunpack.c.l.b16 %v361
      %v540 = vunpack.c.l.b16 %v362
      %v541 = vunpack.c.l.b16 %v363
      %v542 = vunpack.c.l.b16 %v364
      %v543 = vunpack.c.l.b16 %v365
      %v544 = vpack.c.b16 %v465, %v464
      %v545 = vpack.c.b16 %v467, %v466
      %v546 = vpack.c.b16 %v469, %v468
      %v547 = vpack.c.b16 %v471, %v470
      %v548 = vpack.c.b16 %v473, %v472
      %v549 = vpack.c.b16 %v475, %v474
      %v550 = vpack.c.b16 %v477, %v476
      %v551 = vpack.c.b16 %v479, %v478
      %v552 = vpack.c.b16 %v481, %v480
      %v553 = vpack.c.b16 %v483, %v482
      %v554 = vpack.c.b16 %v485, %v484
      %v555 = vpack.c.b16 %v487, %v486
      %v556 = vpack.c.b16 %v489, %v488
      %v557 = vpack.c.b16 %v491, %v490
      %v558 = vpack.c.b16 %v493, %v492
      %v559 = vpack.c.b16 %v495, %v494
      %v560 = vpack.c.b16 %v497, %v496
      %v561 = vpack.c.b16 %v499, %v498
      %v562 = vpack.c.b16 %v501, %v500
      %v563 = vpack.c.b16 %v503, %v502
      %v564 = vpack.c.b16 %v505, %v504
      %v565 = vpack.c.b16 %v507, %v506
      %v566 = vpack.c.b16 %v509, %v508
      %v567 = vpack.c.b16 %v511, %v510
      %v568 = vpack.c.b16 %v513, %v512
      %v569 = vpack.c.b16 %v515, %v514
      %v570 = vpack.c.b16 %v517, %v516
      %v571 = vpack.c.b16 %v519, %v518
      %v572 = vpack.c.b16 %v521, %v520
      %v573 = vpack.c.b16 %v523, %v522
      %v574 = vpack.c.b16 %v525, %v524
      %v575 = vpack.c.b16 %v527, %v526
      %v576 = vpack.c.b16 %v529, %v528
      %v577 = vpack.c.b16 %v531, %v530
      %v578 = vpack.c.b16 %v533, %v532
      %v579 = vpack.c.b16 %v535, %v534
      %v580 = vpack.c.b16 %v537, %v536
      %v581 = vpack.c.b16 %v539, %v538
      %v582 = vpack.c.b16 %v541, %v540
      %v583 = vpack.c.b16 %v543, %v542
      %624 = vmatprep.subr.bf16.mxu0 0
      %625 = vmatpush1.bf16.msra.mxu0 %v551
      %626 = vmatprep.subr.bf16.mxu0 0
      %627 = vmatpush1.bf16.msra.mxu0 %v550
      %628 = vmatprep.subr.bf16.mxu0 0
      %629 = vmatpush1.bf16.msra.mxu0 %v549
      %630 = vmatprep.subr.bf16.mxu0 0
      %631 = vmatpush1.bf16.msra.mxu0 %v548
      %632 = vmatprep.subr.bf16.mxu0 0
      %633 = vmatpush1.bf16.msra.mxu0 %v547
      %634 = vmatprep.subr.bf16.mxu0 0
      %635 = vmatpush1.bf16.msra.mxu0 %v546
      %636 = vmatprep.subr.bf16.mxu0 0
      %637 = vmatpush1.bf16.msra.mxu0 %v545
      %638 = vmatprep.subr.bf16.mxu0 0
      %639 = vmatpush1.bf16.msra.mxu0 %v544
      %640 = vmatprep.subr.bf16.mxu0 0
      %641 = vmatpush2.bf16.msra.mxu0 %v559
      %642 = vmatprep.subr.bf16.mxu0 0
      %643 = vmatpush2.bf16.msra.mxu0 %v558
      %644 = vmatprep.subr.bf16.mxu0 0
      %645 = vmatpush2.bf16.msra.mxu0 %v557
      %646 = vmatprep.subr.bf16.mxu0 0
      %647 = vmatpush2.bf16.msra.mxu0 %v556
      %648 = vmatprep.subr.bf16.mxu0 0
      %649 = vmatpush2.bf16.msra.mxu0 %v555
      %650 = vmatprep.subr.bf16.mxu0 0
      %651 = vmatpush2.bf16.msra.mxu0 %v554
      %652 = vmatprep.subr.bf16.mxu0 0
      %653 = vmatpush2.bf16.msra.mxu0 %v553
      %654 = vmatprep.subr.bf16.mxu0 0
      %655 = vmatpush2.bf16.msra.mxu0 %v552
      %656 = vmatprep.mubr.bf16.mxu0 %v375
      %657 = vmatmul.mubr.bf16.gmra.mxu0 %v374
      %v658 = vpop.f32.mrf.mxu0
      %v659 = vadd.f32 0.0, %v658
      %v660 = vpop.f32.mrf.mxu0
      %v661 = vpop.f32.mrf.mxu0
      %v662 = vpop.f32.mrf.mxu0
      %663 = vdwg.mxu0
      %664 = vmatprep.subr.bf16.mxu0 0
      %665 = vmatpush1.bf16.msra.mxu0 %v567
      %666 = vmatprep.subr.bf16.mxu0 0
      %667 = vmatpush1.bf16.msra.mxu0 %v566
      %668 = vmatprep.subr.bf16.mxu0 0
      %669 = vmatpush1.bf16.msra.mxu0 %v565
      %670 = vmatprep.subr.bf16.mxu0 0
      %671 = vmatpush1.bf16.msra.mxu0 %v564
      %672 = vmatprep.subr.bf16.mxu0 0
      %673 = vmatpush1.bf16.msra.mxu0 %v563
      %674 = vmatprep.subr.bf16.mxu0 0
      %675 = vmatpush1.bf16.msra.mxu0 %v562
      %676 = vmatprep.subr.bf16.mxu0 0
      %677 = vmatpush1.bf16.msra.mxu0 %v561
      %678 = vmatprep.subr.bf16.mxu0 0
      %679 = vmatpush1.bf16.msra.mxu0 %v560
      %680 = vmatprep.subr.bf16.mxu0 0
      %681 = vmatpush2.bf16.msra.mxu0 %v575
      %682 = vmatprep.subr.bf16.mxu0 0
      %683 = vmatpush2.bf16.msra.mxu0 %v574
      %684 = vmatprep.subr.bf16.mxu0 0
      %685 = vmatpush2.bf16.msra.mxu0 %v573
      %686 = vmatprep.subr.bf16.mxu0 0
      %687 = vmatpush2.bf16.msra.mxu0 %v572
      %688 = vmatprep.subr.bf16.mxu0 0
      %689 = vmatpush2.bf16.msra.mxu0 %v571
      %690 = vmatprep.subr.bf16.mxu0 0
      %691 = vmatpush2.bf16.msra.mxu0 %v570
      %692 = vmatprep.subr.bf16.mxu0 0
      %693 = vmatpush2.bf16.msra.mxu0 %v569
      %694 = vmatprep.subr.bf16.mxu0 0
      %695 = vmatpush2.bf16.msra.mxu0 %v568
      %696 = vmatprep.mubr.bf16.mxu0 %v377
      %697 = vmatmul.mubr.bf16.gmra.mxu0 %v376
      %v698 = vpop.f32.mrf.mxu0
      %v699 = vadd.f32 %v659, %v698
      %v700 = vpop.f32.mrf.mxu0
      %v701 = vpop.f32.mrf.mxu0
      %v702 = vpop.f32.mrf.mxu0
      %703 = vdwg.mxu0
      %704 = vmatprep.subr.bf16.mxu0 0
      %705 = vmatpush1.bf16.msra.mxu0 %v583
      %706 = vmatprep.subr.bf16.mxu0 0
      %707 = vmatpush1.bf16.msra.mxu0 %v582
      %708 = vmatprep.subr.bf16.mxu0 0
      %709 = vmatpush1.bf16.msra.mxu0 %v581
      %710 = vmatprep.subr.bf16.mxu0 0
      %711 = vmatpush1.bf16.msra.mxu0 %v580
      %712 = vmatprep.subr.bf16.mxu0 0
      %713 = vmatpush1.bf16.msra.mxu0 %v579
      %714 = vmatprep.subr.bf16.mxu0 0
      %715 = vmatpush1.bf16.msra.mxu0 %v578
      %716 = vmatprep.subr.bf16.mxu0 0
      %717 = vmatpush1.bf16.msra.mxu0 %v577
      %718 = vmatprep.subr.bf16.mxu0 0
      %719 = vmatpush1.bf16.msra.mxu0 %v576
      %720 = vmatprep.subr.bf16.mxu0 0
      %721 = vmatpush2.bf16.msra.mxu0 0
      %722 = vmatprep.subr.bf16.mxu0 0
      %723 = vmatpush2.bf16.msra.mxu0 0
      %724 = vmatprep.subr.bf16.mxu0 0
      %725 = vmatpush2.bf16.msra.mxu0 0
      %726 = vmatprep.subr.bf16.mxu0 0
      %727 = vmatpush2.bf16.msra.mxu0 0
      %728 = vmatprep.subr.bf16.mxu0 0
      %729 = vmatpush2.bf16.msra.mxu0 0
      %730 = vmatprep.subr.bf16.mxu0 0
      %731 = vmatpush2.bf16.msra.mxu0 0
      %732 = vmatprep.subr.bf16.mxu0 0
      %733 = vmatpush2.bf16.msra.mxu0 0
      %734 = vmatprep.subr.bf16.mxu0 0
      %735 = vmatpush2.bf16.msra.mxu0 0
      %736 = vmatprep.mubr.bf16.mxu0 0
      %737 = vmatmul.mubr.bf16.gmra.mxu0 %v378
      %v738 = vpop.f32.mrf.mxu0
      %v739 = vadd.f32 %v699, %v738
      %v740 = vpop.f32.mrf.mxu0
      %v741 = vpop.f32.mrf.mxu0
      %v742 = vpop.f32.mrf.mxu0
      %743 = vdwg.mxu0
      %v744 = vadd.f32 %v282, %v739
      %vm745 = vcmask 523264
      %746 = vst.msk [vmem:[#allocation2] sm:$0xff] %vm745, %v744
      %p747 = scmp.eq.s32.totalorder %s23, 9
      // Predicated region
      $region45: #{seq2point_forward.3} parent=39 // pred_check
        %p748 = pneg %p747
      $region46: #{seq2point_forward.3} parent=39 // pred_check_branch
        %750 = sbr.rel (%p748) target = $region48
      $region47: #{seq2point_forward.3} parent=39 // pred_region
        %v751 = vld [vmem:[#allocation2] sm:$0xff]
        %v752 = vld [vmem:[%s2] sm:$0x1]
        %v754 = vlaneseq
        %v755 = vshrl.u32 %v754, 7
        %v756 = vsub.s32 0, %v755
        %v757 = vrot.slane %v752, %v756
        %v759 = vadd.f32 %v751, %v757
        %v760 = vmax.f32 %v759, 0.0
        %v761 = vld [vmem:[%s3] sm:$0xff]
        %v762 = vld [vmem:[%s3 + $0x8] sm:$0xff]
        %v763 = vld [vmem:[%s3 + $0x10] sm:$0xff]
        %v764 = vld [vmem:[%s3 + $0x18] sm:$0xff]
        %v765 = vld [vmem:[%s3 + $0x20] sm:$0xff]
        %v766 = vld [vmem:[%s3 + $0x28] sm:$0xff]
        %v767 = vld [vmem:[%s3 + $0x30] sm:$0xff]
        %v768 = vld [vmem:[%s3 + $0x38] sm:$0xff]
        %v769 = vld [vmem:[#allocation3] sm:$0x1]
        %v771 = vlaneseq
        %v772 = vshrl.u32 %v771, 7
        %v773 = vsub.s32 0, %v772
        %v774 = vrot.slane %v769, %v773
        %v777 = vsel %vm745, %v760, 0
        %779 = vmatprep.subr.mxu0 0.0
        %780 = vmatpush1.msra.mxu0 0.0
        %781 = vmatprep.subr.mxu0 0.0
        %782 = vmatpush1.msra.mxu0 0.0
        %783 = vmatprep.subr.mxu0 0.0
        %784 = vmatpush1.msra.mxu0 0.0
        %785 = vmatprep.subr.mxu0 0.0
        %786 = vmatpush1.msra.mxu0 0.0
        %787 = vmatprep.subr.mxu0 0.0
        %788 = vmatpush1.msra.mxu0 0.0
        %789 = vmatprep.subr.mxu0 0.0
        %790 = vmatpush1.msra.mxu0 0.0
        %791 = vmatprep.subr.mxu0 0.0
        %792 = vmatpush1.msra.mxu0 0.0
        %793 = vmatprep.subr.mxu0 0.0
        %794 = vmatpush1.msra.mxu0 0.0
        %795 = vmatprep.subr.mxu0 0.0
        %796 = vmatpush1.msra.mxu0 %v768
        %797 = vmatprep.subr.mxu0 0.0
        %798 = vmatpush1.msra.mxu0 %v767
        %799 = vmatprep.subr.mxu0 0.0
        %800 = vmatpush1.msra.mxu0 %v766
        %801 = vmatprep.subr.mxu0 0.0
        %802 = vmatpush1.msra.mxu0 %v765
        %803 = vmatprep.subr.mxu0 0.0
        %804 = vmatpush1.msra.mxu0 %v764
        %805 = vmatprep.subr.mxu0 0.0
        %806 = vmatpush1.msra.mxu0 %v763
        %807 = vmatprep.subr.mxu0 0.0
        %808 = vmatpush1.msra.mxu0 %v762
        %809 = vmatprep.subr.mxu0 0.0
        %810 = vmatpush1.msra.mxu0 %v761
        %811 = vmatprep.subr.mxu0 0.0
        %812 = vmatpush2.msra.mxu0 0.0
        %813 = vmatprep.subr.mxu0 0.0
        %814 = vmatpush2.msra.mxu0 0.0
        %815 = vmatprep.subr.mxu0 0.0
        %816 = vmatpush2.msra.mxu0 0.0
        %817 = vmatprep.subr.mxu0 0.0
        %818 = vmatpush2.msra.mxu0 0.0
        %819 = vmatprep.subr.mxu0 0.0
        %820 = vmatpush2.msra.mxu0 0.0
        %821 = vmatprep.subr.mxu0 0.0
        %822 = vmatpush2.msra.mxu0 0.0
        %823 = vmatprep.subr.mxu0 0.0
        %824 = vmatpush2.msra.mxu0 0.0
        %825 = vmatprep.subr.mxu0 0.0
        %826 = vmatpush2.msra.mxu0 0.0
        %827 = vmatprep.subr.mxu0 0.0
        %828 = vmatpush2.msra.mxu0 0.0
        %829 = vmatprep.subr.mxu0 0.0
        %830 = vmatpush2.msra.mxu0 0.0
        %831 = vmatprep.subr.mxu0 0.0
        %832 = vmatpush2.msra.mxu0 0.0
        %833 = vmatprep.subr.mxu0 0.0
        %834 = vmatpush2.msra.mxu0 0.0
        %835 = vmatprep.subr.mxu0 0.0
        %836 = vmatpush2.msra.mxu0 0.0
        %837 = vmatprep.subr.mxu0 0.0
        %838 = vmatpush2.msra.mxu0 0.0
        %839 = vmatprep.subr.mxu0 0.0
        %840 = vmatpush2.msra.mxu0 0.0
        %841 = vmatprep.subr.mxu0 0.0
        %842 = vmatpush2.msra.mxu0 0.0
        %843 = vmatprep.mubr.f32.mxu0 0.0
        %844 = vmatmul.mubr.f32.gmra.mxu0 %v777
        %v845 = vpop.f32.mrf.mxu0
        %v846 = vadd.f32 %v774, %v845
        %v847 = vpop.f32.mrf.mxu0
        %848 = vdwg.mxu0
        %vm849 = vcmask 7168
        %850 = vst.msk [vmem:[%s274] sm:$0xff] %vm849, %v846
      $region48: #{seq2point_forward.3} parent=39 // pred_fallthru
        _
      %p851 = scmp.lt.s32.totalorder %s22, 0
      %s852 = scalar_select %p851, %s22, 0
      %s853 = smul.addr %s852, 8
      %s854 = scalar_lea.vmem %s5, %s853
      // Predicated region
      $region49: #{seq2point_forward.3} parent=39 // pred_check
        %p855 = pneg %p165
      $region50: #{seq2point_forward.3} parent=39 // pred_check_branch
        %857 = sbr.rel (%p855) target = $region52
      $region51: #{seq2point_forward.3} parent=39 // pred_region
        _
      $region52: #{seq2point_forward.3} parent=39 // pred_fallthru
        _
      // Predicated region
      $region53: #{seq2point_forward.3} parent=39 // pred_check
        %p858 = pneg %p165
      $region54: #{seq2point_forward.3} parent=39 // pred_check_branch
        %860 = sbr.rel (%p858) target = $region56
      $region55: #{seq2point_forward.3} parent=39 // pred_region
        %p861 = scmp.lt.s32.totalorder %s22, 0
        %s862 = scalar_select %p861, %s22, 0
        %s863 = smul.addr %s862, 8
        %s864 = scalar_lea.vmem %s5, %s863
      $region56: #{seq2point_forward.3} parent=39 // pred_fallthru
        _
    $region40: #{seq2point_forward.3} parent=5 // pred_fallthru
      _
    %p865 = scmp.le.s32.totalorder 2, %s13
    // Predicated region
    $region57: #{seq2point_forward.3} parent=5 // pred_check
      %p866 = pneg %p865
    $region58: #{seq2point_forward.3} parent=5 // pred_check_branch
      %868 = sbr.rel (%p866) target = $region60
    $region59: #{seq2point_forward.3} parent=5 // pred_region
      %s869 = ssub.s32 %s13, 2
    $region60: #{seq2point_forward.3} parent=5 // pred_fallthru
      _
  $region6: #{seq2point_forward.3} parent=0 // loop_footer
    %s17 = sadd.s32 1, %s13
  $region7: #{seq2point_forward.3} parent=0 // loop_footer_branch
    %12 = sbr.rel target = $region3
  $region8: #{seq2point_forward.3} parent=0 // loop_exit
    _

// kernel: seq2point_forward.2
$region0: #{seq2point_forward.2}
  #allocation0 [shape = 'u32[]', space=smem, size = 0x4, offset = 0x4, fixed_abs, tag = 'smem constant byte address 0x4 - core index']
  #allocation1 [shape = 'u32[144,128]{1,0:T(1,128)}', space=vmem, size = 0x12000, scoped, tag = 'internal scratch']
  #allocation2 [shape = 'bf16[56,384]{1,0:T(8,128)(2,1)}', space=vmem, size = 0xa800, scoped, tag = 'scratch operand']
  #allocation3 [shape = 'bf16[320,128]{1,0:T(8,128)(2,1)}', space=vmem, size = 0x14000, scoped, tag = 'scratch operand']
  %s0 = inlined_call_operand.vmem [shape: f32[2,1,384], index: 0, kind: input, shape index: {}]
  %s1 = inlined_call_operand.hbm [shape: bf16[30,160], index: 1, kind: input, shape index: {}]
  %s2 = inlined_call_operand.vmem [shape: f32[30,1], index: 2, kind: input, shape index: {}]
  %s3 = inlined_call_operand.hbm [shape: bf16[30,256], index: 3, kind: input, shape index: {}]
  %s4 = inlined_call_operand.vmem [shape: f32[30,1], index: 4, kind: input, shape index: {}]
  %s5 = inlined_call_operand.hbm [shape: bf16[40,192], index: 5, kind: input, shape index: {}]
  %s6 = inlined_call_operand.vmem [shape: f32[40,1], index: 6, kind: input, shape index: {}]
  %s7 = inlined_call_operand.hbm [shape: bf16[50,240], index: 7, kind: input, shape index: {}]
  %s8 = inlined_call_operand.vmem [shape: f32[50,1], index: 8, kind: input, shape index: {}]
  %s9 = inlined_call_operand.hbm [shape: bf16[50,320], index: 9, kind: input, shape index: {}]
  %s10 = inlined_call_operand.vmem [shape: f32[50,1], index: 10, kind: input, shape index: {}]
  %s11 = inlined_call_operand.vmem [shape: bf16[2,50,128], index: 11, kind: output, shape index: {}]
  %s12 = sld [smem:[#allocation0]]
  $region97: #{seq2point_forward.2} parent=0
    _
  %s14 = ssub.s32 1, %s12
  %s15 = scalar_select 0, %s14, %s12
  $region1: #{seq2point_forward.2} parent=0
    #allocation4 [shape = 'u8[16384]{0}', space=vmem, size = 0x4000, scoped, tag = 'input window, operand 1, single buffered']
    #allocation5 [shape = 's32[2]{0}', space=sflag, size = 0x8, scoped, tag = 'scoped memory for seq2point_forward.2']
    #allocation6 [shape = 'u8[16384]{0}', space=vmem, size = 0x4000, scoped, tag = 'input window, operand 3, single buffered']
    #allocation7 [shape = 's32[1]{0}', space=sflag, size = 0x4, scoped, tag = 'scoped memory for seq2point_forward.2']
    #allocation8 [shape = 'u8[20480]{0}', space=vmem, size = 0x5000, scoped, tag = 'input window, operand 5, single buffered']
    #allocation9 [shape = 'u8[28672]{0}', space=vmem, size = 0x7000, scoped, tag = 'input window, operand 7, single buffered']
    #allocation10 [shape = 's32[1]{0}', space=sflag, size = 0x4, scoped, tag = 'scoped memory for seq2point_forward.2']
    #allocation11 [shape = 'u8[43008]{0}', space=vmem, size = 0xa800, scoped, tag = 'input window, operand 9, single buffered']
    %16 = vsyncpa [#allocation5], 0
    %17 = vsyncpa [#allocation7], 0
    %18 = vsyncpa [#allocation10], 0
    loop: start=0, step=1, limit=4
    $region2: #{seq2point_forward.2} parent=1 // loop_pre_header
      _
    $region3: #{seq2point_forward.2} parent=1 // loop_header
      %s20 = sphi 0, %s24
      %p21 = scmp.ge.s32.totalorder %s20, 4
      %s30 = sphi 0, %s32
      %s33 = sphi 0, %s30
      %s34 = sphi 0, %s33
      %s50 = sphi 0, %s34
      %s54 = sphi 0, %s54
      %s56 = sphi 0, %s54
      %s57 = sphi 0, %s56
      %s71 = sphi 0, %s57
      %s75 = sphi 0, %s75
      %s77 = sphi 0, %s75
      %s78 = sphi 0, %s77
      %s92 = sphi 0, %s78
      %s96 = sphi 0, %s96
      %s98 = sphi 0, %s96
      %s99 = sphi 0, %s98
      %s113 = sphi 0, %s99
      %s117 = sphi 0, %s117
      %s119 = sphi 0, %s117
      %s120 = sphi 0, %s119
      %s134 = sphi 0, %s120
      %s138 = sphi 0, %s138
      %s140 = sphi 0, %s138
      %s141 = sphi 0, %s140
      %s155 = sphi 0, %s141
      %s159 = sphi 0, %s159
      %s161 = sphi 0, %s159
      %s162 = sphi 0, %s161
      %s176 = sphi 0, %s162
      %s180 = sphi 0, %s180
      %s182 = sphi 0, %s180
      %s183 = sphi 0, %s182
      %s197 = sphi 0, %s183
      %s201 = sphi 0, %s201
      %s203 = sphi 0, %s201
      %s204 = sphi 0, %s203
      %s218 = sphi 0, %s204
      %s222 = sphi 0, %s222
      %s224 = sphi 0, %s222
      %s225 = sphi 0, %s224
      %s239 = sphi 0, %s225
      %s243 = sphi 0, %s243
      %s245 = sphi 0, %s243
      %s246 = sphi 0, %s245
      %s260 = sphi 0, %s246
      %s266 = sphi 0, %s268
      %s269 = sphi 0, %s266
      %s270 = sphi 0, %s269
      %s286 = sphi 0, %s270
    $region4: #{seq2point_forward.2} parent=1 // loop_header_branch
      %23 = sbr.rel (%p21) target = $region8
    $region5: #{seq2point_forward.2} parent=1 // loop_body
      %s25 = ssub.s32 %s20, 1
      %s26 = ssub.s32 %s20, 2
      %s27 = sadd.s32 %s20, 1
      %s28 = ssub.s32 %s20, %s27
      %p29 = scmp.eq.s32.totalorder %s28, 0
      %s31 = sadd.s32 %s30, 1
      %s32 = scalar_select %p29, %s30, %s31
      %p35 = pneg %p29
      %p36 = scmp.eq.s32.totalorder %s20, 1
      %p37 = por %p35, %p36
      %p38 = scmp.ne.s32.totalorder %s30, %s33
      %p39 = scmp.eq.s32.totalorder %s20, 0
      %p40 = por %p38, %p39
      %p41 = scmp.ne.s32.totalorder %s30, %s33
      %p42 = scmp.eq.s32.totalorder %s25, 1
      %p43 = por %p41, %p42
      %p44 = scmp.ne.s32.totalorder %s33, %s34
      %p45 = scmp.eq.s32.totalorder %s25, 0
      %p46 = por %p44, %p45
      %p47 = scmp.ne.s32.totalorder %s33, %s34
      %p48 = scmp.eq.s32.totalorder %s26, 1
      %p49 = por %p47, %p48
      %p51 = scmp.ne.s32.totalorder %s34, %s50
      %p52 = scmp.eq.s32.totalorder %s26, 0
      %p53 = por %p51, %p52
      %s55 = sadd.s32 %s54, 1
      %p58 = scmp.eq.s32.totalorder %s20, 1
      %p59 = scmp.ne.s32.totalorder %s54, %s56
      %p60 = scmp.eq.s32.totalorder %s20, 0
      %p61 = por %p59, %p60
      %p62 = scmp.ne.s32.totalorder %s54, %s56
      %p63 = scmp.eq.s32.totalorder %s25, 1
      %p64 = por %p62, %p63
      %p65 = scmp.ne.s32.totalorder %s56, %s57
      %p66 = scmp.eq.s32.totalorder %s25, 0
      %p67 = por %p65, %p66
      %p68 = scmp.ne.s32.totalorder %s56, %s57
      %p69 = scmp.eq.s32.totalorder %s26, 1
      %p70 = por %p68, %p69
      %p72 = scmp.ne.s32.totalorder %s57, %s71
      %p73 = scmp.eq.s32.totalorder %s26, 0
      %p74 = por %p72, %p73
      %s76 = sadd.s32 %s75, 1
      %p79 = scmp.eq.s32.totalorder %s20, 1
      %p80 = scmp.ne.s32.totalorder %s75, %s77
      %p81 = scmp.eq.s32.totalorder %s20, 0
      %p82 = por %p80, %p81
      %p83 = scmp.ne.s32.totalorder %s75, %s77
      %p84 = scmp.eq.s32.totalorder %s25, 1
      %p85 = por %p83, %p84
      %p86 = scmp.ne.s32.totalorder %s77, %s78
      %p87 = scmp.eq.s32.totalorder %s25, 0
      %p88 = por %p86, %p87
      %p89 = scmp.ne.s32.totalorder %s77, %s78
      %p90 = scmp.eq.s32.totalorder %s26, 1
      %p91 = por %p89, %p90
      %p93 = scmp.ne.s32.totalorder %s78, %s92
      %p94 = scmp.eq.s32.totalorder %s26, 0
      %p95 = por %p93, %p94
      %s97 = sadd.s32 %s96, 1
      %p100 = scmp.eq.s32.totalorder %s20, 1
      %p101 = scmp.ne.s32.totalorder %s96, %s98
      %p102 = scmp.eq.s32.totalorder %s20, 0
      %p103 = por %p101, %p102
      %p104 = scmp.ne.s32.totalorder %s96, %s98
      %p105 = scmp.eq.s32.totalorder %s25, 1
      %p106 = por %p104, %p105
      %p107 = scmp.ne.s32.totalorder %s98, %s99
      %p108 = scmp.eq.s32.totalorder %s25, 0
      %p109 = por %p107, %p108
      %p110 = scmp.ne.s32.totalorder %s98, %s99
      %p111 = scmp.eq.s32.totalorder %s26, 1
      %p112 = por %p110, %p111
      %p114 = scmp.ne.s32.totalorder %s99, %s113
      %p115 = scmp.eq.s32.totalorder %s26, 0
      %p116 = por %p114, %p115
      %s118 = sadd.s32 %s117, 1
      %p121 = scmp.eq.s32.totalorder %s20, 1
      %p122 = scmp.ne.s32.totalorder %s117, %s119
      %p123 = scmp.eq.s32.totalorder %s20, 0
      %p124 = por %p122, %p123
      %p125 = scmp.ne.s32.totalorder %s117, %s119
      %p126 = scmp.eq.s32.totalorder %s25, 1
      %p127 = por %p125, %p126
      %p128 = scmp.ne.s32.totalorder %s119, %s120
      %p129 = scmp.eq.s32.totalorder %s25, 0
      %p130 = por %p128, %p129
      %p131 = scmp.ne.s32.totalorder %s119, %s120
      %p132 = scmp.eq.s32.totalorder %s26, 1
      %p133 = por %p131, %p132
      %p135 = scmp.ne.s32.totalorder %s120, %s134
      %p136 = scmp.eq.s32.totalorder %s26, 0
      %p137 = por %p135, %p136
      %s139 = sadd.s32 %s138, 1
      %p142 = scmp.eq.s32.totalorder %s20, 1
      %p143 = scmp.ne.s32.totalorder %s138, %s140
      %p144 = scmp.eq.s32.totalorder %s20, 0
      %p145 = por %p143, %p144
      %p146 = scmp.ne.s32.totalorder %s138, %s140
      %p147 = scmp.eq.s32.totalorder %s25, 1
      %p148 = por %p146, %p147
      %p149 = scmp.ne.s32.totalorder %s140, %s141
      %p150 = scmp.eq.s32.totalorder %s25, 0
      %p151 = por %p149, %p150
      %p152 = scmp.ne.s32.totalorder %s140, %s141
      %p153 = scmp.eq.s32.totalorder %s26, 1
      %p154 = por %p152, %p153
      %p156 = scmp.ne.s32.totalorder %s141, %s155
      %p157 = scmp.eq.s32.totalorder %s26, 0
      %p158 = por %p156, %p157
      %s160 = sadd.s32 %s159, 1
      %p163 = scmp.eq.s32.totalorder %s20, 1
      %p164 = scmp.ne.s32.totalorder %s159, %s161
      %p165 = scmp.eq.s32.totalorder %s20, 0
      %p166 = por %p164, %p165
      %p167 = scmp.ne.s32.totalorder %s159, %s161
      %p168 = scmp.eq.s32.totalorder %s25, 1
      %p169 = por %p167, %p168
      %p170 = scmp.ne.s32.totalorder %s161, %s162
      %p171 = scmp.eq.s32.totalorder %s25, 0
      %p172 = por %p170, %p171
      %p173 = scmp.ne.s32.totalorder %s161, %s162
      %p174 = scmp.eq.s32.totalorder %s26, 1
      %p175 = por %p173, %p174
      %p177 = scmp.ne.s32.totalorder %s162, %s176
      %p178 = scmp.eq.s32.totalorder %s26, 0
      %p179 = por %p177, %p178
      %s181 = sadd.s32 %s180, 1
      %p184 = scmp.eq.s32.totalorder %s20, 1
      %p185 = scmp.ne.s32.totalorder %s180, %s182
      %p186 = scmp.eq.s32.totalorder %s20, 0
      %p187 = por %p185, %p186
      %p188 = scmp.ne.s32.totalorder %s180, %s182
      %p189 = scmp.eq.s32.totalorder %s25, 1
      %p190 = por %p188, %p189
      %p191 = scmp.ne.s32.totalorder %s182, %s183
      %p192 = scmp.eq.s32.totalorder %s25, 0
      %p193 = por %p191, %p192
      %p194 = scmp.ne.s32.totalorder %s182, %s183
      %p195 = scmp.eq.s32.totalorder %s26, 1
      %p196 = por %p194, %p195
      %p198 = scmp.ne.s32.totalorder %s183, %s197
      %p199 = scmp.eq.s32.totalorder %s26, 0
      %p200 = por %p198, %p199
      %s202 = sadd.s32 %s201, 1
      %p205 = scmp.eq.s32.totalorder %s20, 1
      %p206 = scmp.ne.s32.totalorder %s201, %s203
      %p207 = scmp.eq.s32.totalorder %s20, 0
      %p208 = por %p206, %p207
      %p209 = scmp.ne.s32.totalorder %s201, %s203
      %p210 = scmp.eq.s32.totalorder %s25, 1
      %p211 = por %p209, %p210
      %p212 = scmp.ne.s32.totalorder %s203, %s204
      %p213 = scmp.eq.s32.totalorder %s25, 0
      %p214 = por %p212, %p213
      %p215 = scmp.ne.s32.totalorder %s203, %s204
      %p216 = scmp.eq.s32.totalorder %s26, 1
      %p217 = por %p215, %p216
      %p219 = scmp.ne.s32.totalorder %s204, %s218
      %p220 = scmp.eq.s32.totalorder %s26, 0
      %p221 = por %p219, %p220
      %s223 = sadd.s32 %s222, 1
      %p226 = scmp.eq.s32.totalorder %s20, 1
      %p227 = scmp.ne.s32.totalorder %s222, %s224
      %p228 = scmp.eq.s32.totalorder %s20, 0
      %p229 = por %p227, %p228
      %p230 = scmp.ne.s32.totalorder %s222, %s224
      %p231 = scmp.eq.s32.totalorder %s25, 1
      %p232 = por %p230, %p231
      %p233 = scmp.ne.s32.totalorder %s224, %s225
      %p234 = scmp.eq.s32.totalorder %s25, 0
      %p235 = por %p233, %p234
      %p236 = scmp.ne.s32.totalorder %s224, %s225
      %p237 = scmp.eq.s32.totalorder %s26, 1
      %p238 = por %p236, %p237
      %p240 = scmp.ne.s32.totalorder %s225, %s239
      %p241 = scmp.eq.s32.totalorder %s26, 0
      %p242 = por %p240, %p241
      %s244 = sadd.s32 %s243, 1
      %p247 = scmp.eq.s32.totalorder %s20, 1
      %p248 = scmp.ne.s32.totalorder %s243, %s245
      %p249 = scmp.eq.s32.totalorder %s20, 0
      %p250 = por %p248, %p249
      %p251 = scmp.ne.s32.totalorder %s243, %s245
      %p252 = scmp.eq.s32.totalorder %s25, 1
      %p253 = por %p251, %p252
      %p254 = scmp.ne.s32.totalorder %s245, %s246
      %p255 = scmp.eq.s32.totalorder %s25, 0
      %p256 = por %p254, %p255
      %p257 = scmp.ne.s32.totalorder %s245, %s246
      %p258 = scmp.eq.s32.totalorder %s26, 1
      %p259 = por %p257, %p258
      %p261 = scmp.ne.s32.totalorder %s246, %s260
      %p262 = scmp.eq.s32.totalorder %s26, 0
      %p263 = por %p261, %p262
      %s264 = ssub.s32 %s20, %s27
      %p265 = scmp.eq.s32.totalorder %s264, 0
      %s267 = sadd.s32 %s266, 1
      %s268 = scalar_select %p265, %s266, %s267
      %p271 = pneg %p265
      %p272 = scmp.eq.s32.totalorder %s20, 1
      %p273 = por %p271, %p272
      %p274 = scmp.ne.s32.totalorder %s266, %s269
      %p275 = scmp.eq.s32.totalorder %s20, 0
      %p276 = por %p274, %p275
      %p277 = scmp.ne.s32.totalorder %s266, %s269
      %p278 = scmp.eq.s32.totalorder %s25, 1
      %p279 = por %p277, %p278
      %p280 = scmp.ne.s32.totalorder %s269, %s270
      %p281 = scmp.eq.s32.totalorder %s25, 0
      %p282 = por %p280, %p281
      %p283 = scmp.ne.s32.totalorder %s269, %s270
      %p284 = scmp.eq.s32.totalorder %s26, 1
      %p285 = por %p283, %p284
      %p287 = scmp.ne.s32.totalorder %s270, %s286
      %p288 = scmp.eq.s32.totalorder %s26, 0
      %p289 = por %p287, %p288
      %p290 = scmp.le.s32.totalorder 1, %s20
      %p291 = scmp.lt.s32.totalorder %s20, 3
      %p292 = pnand %p290, %p291
      %p293 = pneg %p292
      // Predicated region
      $region9: #{seq2point_forward.2} parent=5 // pred_check
        _
      $region10: #{seq2point_forward.2} parent=5 // pred_check_branch
        %295 = sbr.rel (%p292) target = $region12
      $region11: #{seq2point_forward.2} parent=5 // pred_region
        %s296 = ssub.s32 %s20, 1
        // Predicated region
        $region13: #{seq2point_forward.2} parent=11 // pred_check
          %p297 = pneg %p67
        $region14: #{seq2point_forward.2} parent=11 // pred_check_branch
          %299 = sbr.rel (%p297) target = $region16
        $region15: #{seq2point_forward.2} parent=11 // pred_region
          %s301 = ssub.s32 512, 512
          %302 = vsyncadd [#allocation5], %s301
          %s303 = sshll.u32 [#allocation4], 4
          %s304 = int_to_ptr.vmem [resolvable:$true] %s303
          %309 = dma.hbm_to_vmem [thread:$0]  %s1, 512, %s304, [#allocation5], 128, 128, 8
        $region16: #{seq2point_forward.2} parent=11 // pred_fallthru
          _
        // Predicated region
        $region17: #{seq2point_forward.2} parent=11 // pred_check
          %p310 = pneg %p88
        $region18: #{seq2point_forward.2} parent=11 // pred_check_branch
          %312 = sbr.rel (%p310) target = $region20
        $region19: #{seq2point_forward.2} parent=11 // pred_region
          _
        $region20: #{seq2point_forward.2} parent=11 // pred_fallthru
          _
        // Predicated region
        $region21: #{seq2point_forward.2} parent=11 // pred_check
          %p313 = pneg %p109
        $region22: #{seq2point_forward.2} parent=11 // pred_check_branch
          %315 = sbr.rel (%p313) target = $region24
        $region23: #{seq2point_forward.2} parent=11 // pred_region
          %s317 = ssub.s32 512, 512
          %318 = vsyncadd [#allocation7], %s317
          %s319 = sshll.u32 [#allocation6], 4
          %s320 = int_to_ptr.vmem [resolvable:$true] %s319
          %325 = dma.hbm_to_vmem [thread:$0]  %s3, 512, %s320, [#allocation7], 128, 128, 8
        $region24: #{seq2point_forward.2} parent=11 // pred_fallthru
          _
        // Predicated region
        $region25: #{seq2point_forward.2} parent=11 // pred_check
          %p326 = pneg %p130
        $region26: #{seq2point_forward.2} parent=11 // pred_check_branch
          %328 = sbr.rel (%p326) target = $region28
        $region27: #{seq2point_forward.2} parent=11 // pred_region
          _
        $region28: #{seq2point_forward.2} parent=11 // pred_fallthru
          _
        // Predicated region
        $region29: #{seq2point_forward.2} parent=11 // pred_check
          %p329 = pneg %p151
        $region30: #{seq2point_forward.2} parent=11 // pred_check_branch
          %331 = sbr.rel (%p329) target = $region32
        $region31: #{seq2point_forward.2} parent=11 // pred_region
          %s333 = ssub.s32 640, 640
          %334 = vsyncadd [#allocation7], %s333
          %s335 = sshll.u32 [#allocation8], 4
          %s336 = int_to_ptr.vmem [resolvable:$true] %s335
          %341 = dma.hbm_to_vmem [thread:$0]  %s5, 640, %s336, [#allocation7], 128, 128, 8
        $region32: #{seq2point_forward.2} parent=11 // pred_fallthru
          _
        // Predicated region
        $region33: #{seq2point_forward.2} parent=11 // pred_check
          %p342 = pneg %p172
        $region34: #{seq2point_forward.2} parent=11 // pred_check_branch
          %344 = sbr.rel (%p342) target = $region36
        $region35: #{seq2point_forward.2} parent=11 // pred_region
          _
        $region36: #{seq2point_forward.2} parent=11 // pred_fallthru
          _
        // Predicated region
        $region37: #{seq2point_forward.2} parent=11 // pred_check
          %p345 = pneg %p193
        $region38: #{seq2point_forward.2} parent=11 // pred_check_branch
          %347 = sbr.rel (%p345) target = $region40
        $region39: #{seq2point_forward.2} parent=11 // pred_region
          %s349 = ssub.s32 896, 896
          %350 = vsyncadd [#allocation10], %s349
          %s351 = sshll.u32 [#allocation9], 4
          %s352 = int_to_ptr.vmem [resolvable:$true] %s351
          %357 = dma.hbm_to_vmem [thread:$0]  %s7, 896, %s352, [#allocation10], 128, 128, 8
        $region40: #{seq2point_forward.2} parent=11 // pred_fallthru
          _
        // Predicated region
        $region41: #{seq2point_forward.2} parent=11 // pred_check
          %p358 = pneg %p214
        $region42: #{seq2point_forward.2} parent=11 // pred_check_branch
          %360 = sbr.rel (%p358) target = $region44
        $region43: #{seq2point_forward.2} parent=11 // pred_region
          _
        $region44: #{seq2point_forward.2} parent=11 // pred_fallthru
          _
        // Predicated region
        $region45: #{seq2point_forward.2} parent=11 // pred_check
          %p361 = pneg %p235
        $region46: #{seq2point_forward.2} parent=11 // pred_check_branch
          %363 = sbr.rel (%p361) target = $region48
        $region47: #{seq2point_forward.2} parent=11 // pred_region
          %s365 = ssub.s32 1344, 1344
          %366 = vsyncadd [#allocation10], %s365
          %s367 = sshll.u32 [#allocation11], 4
          %s368 = int_to_ptr.vmem [resolvable:$true] %s367
          %373 = dma.hbm_to_vmem [thread:$0]  %s9, 1344, %s368, [#allocation10], 192, 192, 12
        $region48: #{seq2point_forward.2} parent=11 // pred_fallthru
          _
        // Predicated region
        $region49: #{seq2point_forward.2} parent=11 // pred_check
          %p374 = pneg %p256
        $region50: #{seq2point_forward.2} parent=11 // pred_check_branch
          %376 = sbr.rel (%p374) target = $region52
        $region51: #{seq2point_forward.2} parent=11 // pred_region
          _
        $region52: #{seq2point_forward.2} parent=11 // pred_fallthru
          _
      $region12: #{seq2point_forward.2} parent=5 // pred_fallthru
        _
      %p377 = scmp.lt.s32.totalorder %s20, 2
      // Predicated region
      $region53: #{seq2point_forward.2} parent=5 // pred_check
        %p378 = pneg %p377
      $region54: #{seq2point_forward.2} parent=5 // pred_check_branch
        %380 = sbr.rel (%p378) target = $region56
      $region55: #{seq2point_forward.2} parent=5 // pred_region
        // Predicated region
        $region57: #{seq2point_forward.2} parent=55 // pred_check
          %p381 = pneg %p40
        $region58: #{seq2point_forward.2} parent=55 // pred_check_branch
          %383 = sbr.rel (%p381) target = $region60
        $region59: #{seq2point_forward.2} parent=55 // pred_region
          %p384 = scmp.lt.s32.totalorder %s20, 1
          %s385 = scalar_select %p384, %s20, 1
          %s386 = smul.addr %s385, 3
          %s387 = scalar_lea.vmem %s0, %s386
        $region60: #{seq2point_forward.2} parent=55 // pred_fallthru
          _
      $region56: #{seq2point_forward.2} parent=5 // pred_fallthru
        _
      %p388 = scmp.le.s32.totalorder 1, %s20
      %p389 = scmp.lt.s32.totalorder %s20, 3
      %p390 = pnand %p388, %p389
      %p391 = pneg %p390
      // Predicated region
      $region61: #{seq2point_forward.2} parent=5 // pred_check
        _
      $region62: #{seq2point_forward.2} parent=5 // pred_check_branch
        %393 = sbr.rel (%p390) target = $region64
      $region63: #{seq2point_forward.2} parent=5 // pred_region
        %s394 = ssub.s32 %s20, 1
        // Predicated region
        $region65: #{seq2point_forward.2} parent=63 // pred_check
          %p395 = pneg %p67
        $region66: #{seq2point_forward.2} parent=63 // pred_check_branch
          %397 = sbr.rel (%p395) target = $region68
        $region67: #{seq2point_forward.2} parent=63 // pred_region
          %398 = dma.done [#allocation5], 512
        $region68: #{seq2point_forward.2} parent=63 // pred_fallthru
          _
        // Predicated region
        $region69: #{seq2point_forward.2} parent=63 // pred_check
          %p399 = pneg %p109
        $region70: #{seq2point_forward.2} parent=63 // pred_check_branch
          %401 = sbr.rel (%p399) target = $region72
        $region71: #{seq2point_forward.2} parent=63 // pred_region
          %402 = dma.done [#allocation7], 512
        $region72: #{seq2point_forward.2} parent=63 // pred_fallthru
          _
        // Predicated region
        $region73: #{seq2point_forward.2} parent=63 // pred_check
          %p403 = pneg %p151
        $region74: #{seq2point_forward.2} parent=63 // pred_check_branch
          %405 = sbr.rel (%p403) target = $region76
        $region75: #{seq2point_forward.2} parent=63 // pred_region
          %406 = dma.done [#allocation7], 640
        $region76: #{seq2point_forward.2} parent=63 // pred_fallthru
          _
        // Predicated region
        $region77: #{seq2point_forward.2} parent=63 // pred_check
          %p407 = pneg %p193
        $region78: #{seq2point_forward.2} parent=63 // pred_check_branch
          %409 = sbr.rel (%p407) target = $region80
        $region79: #{seq2point_forward.2} parent=63 // pred_region
          %410 = dma.done [#allocation10], 896
        $region80: #{seq2point_forward.2} parent=63 // pred_fallthru
          _
        // Predicated region
        $region81: #{seq2point_forward.2} parent=63 // pred_check
          %p411 = pneg %p235
        $region82: #{seq2point_forward.2} parent=63 // pred_check_branch
          %413 = sbr.rel (%p411) target = $region84
        $region83: #{seq2point_forward.2} parent=63 // pred_region
          %414 = dma.done [#allocation10], 1344
        $region84: #{seq2point_forward.2} parent=63 // pred_fallthru
          _
        %p415 = scmp.lt.s32.totalorder %s25, 1
        %s416 = scalar_select %p415, %s25, 1
        %s417 = smul.addr %s416, 3
        %s418 = scalar_lea.vmem %s0, %s417
        %p419 = pneg %p46
        %p420 = pneg %p43
        %p421 = pneg %p67
        %p422 = pneg %p64
        %p423 = pneg %p88
        %p424 = pneg %p85
        %p425 = pneg %p109
        %p426 = pneg %p106
        %p427 = pneg %p130
        %p428 = pneg %p127
        %p429 = pneg %p151
        %p430 = pneg %p148
        %p431 = pneg %p172
        %p432 = pneg %p169
        %p433 = pneg %p193
        %p434 = pneg %p190
        %p435 = pneg %p214
        %p436 = pneg %p211
        %p437 = pneg %p235
        %p438 = pneg %p232
        %p439 = pneg %p256
        %p440 = pneg %p253
        %p441 = pneg %p282
        %p442 = pneg %p279
        %p443 = scmp.lt.s32.totalorder %s25, 1
        %s444 = scalar_select %p443, %s25, 1
        %s445 = smul.addr %s444, 7
        %s446 = smul.addr %s445, 4
        %s447 = scalar_lea.vmem %s11, %s446
        %p448 = scmp.lt.s32.totalorder %s25, 1
        %s449 = scalar_select %p448, %s25, 1
        %s450 = smul.addr %s449, 3
        %s451 = scalar_lea.vmem %s0, %s450
        %p452 = scmp.lt.s32.totalorder %s25, 1
        %s453 = scalar_select %p452, %s25, 1
        %s454 = smul.addr %s453, 7
        %s455 = smul.addr %s454, 4
        %s456 = scalar_lea.vmem %s11, %s455
        %v458 = vlaneseq
        %v459 = vand.u32 %v458, 127
        %vm460 = vcmp.lt.s32.totalorder %v459, 0
        %v461 = vsub.s32 0, %v459
        %v462 = vsel %vm460, %v461, %v459
        %v463 = vshrl.u32 %v462, 7
        %v464 = vand.u32 %v462, 127
        %v465 = vsub.s32 0, %v464
        %v466 = vsel %vm460, %v465, %v464
        %vm467 = vcmp.ne.s32.totalorder %v466, 0
        %vm468 = vcmp.lt.s32.totalorder %v466, 0
        %vm469 = vmand %vm468, %vm467
        %v470 = vadd.s32 %v466, 128
        %v471 = vsel %vm469, %v470, %v466
        %vm472 = vcmp.lt.s32.totalorder %v471, 16
        %473 = vst [vmem:[#allocation2] sm:$0xf] 0
        %474 = vst [vmem:[#allocation2 + $0xc] sm:$0xf] 0
        %475 = vst [vmem:[#allocation2 + $0x18] sm:$0xf] 0
        %476 = vst [vmem:[#allocation2 + $0x24] sm:$0xf] 0
        %477 = vst [vmem:[#allocation2 + $0x30] sm:$0xf] 0
        %478 = vst [vmem:[#allocation2 + $0x3c] sm:$0xf] 0
        %479 = vst [vmem:[#allocation2 + $0x48] sm:$0xf] 0
        %480 = vst [vmem:[#allocation3] sm:$0xf] 0
        %481 = vst [vmem:[#allocation3 + $0x4] sm:$0xf] 0
        %482 = vst [vmem:[#allocation3 + $0x8] sm:$0xf] 0
        %483 = vst [vmem:[#allocation3 + $0xc] sm:$0xf] 0
        %484 = vst [vmem:[#allocation3 + $0x10] sm:$0xf] 0
        %485 = vst [vmem:[#allocation3 + $0x14] sm:$0xf] 0
        %486 = vst [vmem:[#allocation3 + $0x18] sm:$0xf] 0
        %487 = vst [vmem:[#allocation3 + $0x1c] sm:$0xf] 0
        %488 = vst [vmem:[#allocation3 + $0x20] sm:$0xf] 0
        %489 = vst [vmem:[#allocation3 + $0x24] sm:$0xf] 0
        %490 = vst [vmem:[#allocation3 + $0x28] sm:$0xf] 0
        %491 = vst [vmem:[#allocation3 + $0x2c] sm:$0xf] 0
        %492 = vst [vmem:[#allocation3 + $0x30] sm:$0xf] 0
        %493 = vst [vmem:[#allocation3 + $0x34] sm:$0xf] 0
        %494 = vst [vmem:[#allocation3 + $0x38] sm:$0xf] 0
        %495 = vst [vmem:[#allocation3 + $0x3c] sm:$0xf] 0
        %496 = vst [vmem:[#allocation3 + $0x40] sm:$0xf] 0
        %497 = vst [vmem:[#allocation3 + $0x44] sm:$0xf] 0
        %498 = vst [vmem:[#allocation3 + $0x48] sm:$0xf] 0
        %499 = vst [vmem:[#allocation3 + $0x4c] sm:$0xf] 0
        %500 = vst [vmem:[#allocation3 + $0x50] sm:$0xf] 0
        %501 = vst [vmem:[#allocation3 + $0x54] sm:$0xf] 0
        %502 = vst [vmem:[#allocation3 + $0x58] sm:$0xf] 0
        %503 = vst [vmem:[#allocation3 + $0x5c] sm:$0xf] 0
        %504 = vst [vmem:[#allocation3 + $0x60] sm:$0xf] 0
        %505 = vst [vmem:[#allocation3 + $0x64] sm:$0xf] 0
        %506 = vst [vmem:[#allocation3 + $0x68] sm:$0xf] 0
        %507 = vst [vmem:[#allocation3 + $0x6c] sm:$0xf] 0
        %508 = vst [vmem:[#allocation3 + $0x70] sm:$0xf] 0
        %509 = vst [vmem:[#allocation3 + $0x74] sm:$0xf] 0
        %510 = vst [vmem:[#allocation3 + $0x78] sm:$0xf] 0
        %511 = vst [vmem:[#allocation3 + $0x7c] sm:$0xf] 0
        %512 = vst [vmem:[#allocation3 + $0x80] sm:$0xf] 0
        %513 = vst [vmem:[#allocation3 + $0x84] sm:$0xf] 0
        %514 = vst [vmem:[#allocation3 + $0x88] sm:$0xf] 0
        %515 = vst [vmem:[#allocation3 + $0x8c] sm:$0xf] 0
        %516 = vst [vmem:[#allocation3 + $0x90] sm:$0xf] 0
        %517 = vst [vmem:[#allocation3 + $0x94] sm:$0xf] 0
        %518 = vst [vmem:[#allocation3 + $0x98] sm:$0xf] 0
        %519 = vst [vmem:[#allocation3 + $0x9c] sm:$0xf] 0
        %v520 = vld [vmem:[%s451] sm:$0x3]
        %v522 = vlaneseq
        %v523 = vshrl.u32 %v522, 7
        %v524 = vsub.s32 0, %v523
        %v525 = vrot.slane %v520, %v524
        %v526 = vlaneseq
        %v527 = vshrl.u32 %v526, 7
        %v528 = vsub.s32 1, %v527
        %v529 = vrot.slane %v520, %v528
        %v532 = vpack.c.bf16 %v525, %v525
        %v533 = vpack.c.bf16 %v529, %v529
        %v536 = vunpack.c.l.b16 %v532
        %v537 = vunpack.c.l.b16 %v533
        %v538 = vpack.c.b16 %v537, %v536
        %539 = vrot.lane.b32.xlu0 %v538, 5
        %v540 = vpop.permute.xlu0 %539
        %v541 = vrot.slane %v540, 4
        %vm542 = vcmask 39936
        %v543 = vsel %vm542, %v540, %v541
        %vm545 = vcmask 1040384
        %vm546 = vsmask.f32 256
        %vm547 = vmand %vm545, %vm546
        %v548 = vld [vmem:[#allocation3] sm:$0x1]
        %v549 = vsel %vm547, %v543, %v548
        %550 = vst [vmem:[#allocation3] sm:$0x1] %v549
        %v551 = vld [vmem:[%s451] sm:$0x3]
        %v553 = vlaneseq
        %v554 = vshrl.u32 %v553, 7
        %v555 = vsub.s32 0, %v554
        %v556 = vrot.slane %v551, %v555
        %v557 = vlaneseq
        %v558 = vshrl.u32 %v557, 7
        %v559 = vsub.s32 1, %v558
        %v560 = vrot.slane %v551, %v559
        %v563 = vpack.c.bf16 %v556, %v556
        %v564 = vpack.c.bf16 %v560, %v560
        %v567 = vunpack.c.l.b16 %v563
        %v568 = vunpack.c.l.b16 %v564
        %v569 = vpack.c.b16 %v568, %v567
        %570 = vrot.lane.b32.xlu0 %v569, 4
        %v571 = vpop.permute.xlu0 %570
        %v572 = vrot.slane %v571, 4
        %vm573 = vcmask 31744
        %v574 = vsel %vm573, %v571, %v572
        %v576 = vld [vmem:[#allocation3 + $0x8] sm:$0x1]
        %v577 = vsel %vm547, %v574, %v576
        %578 = vst [vmem:[#allocation3 + $0x8] sm:$0x1] %v577
        %v579 = vld [vmem:[%s451] sm:$0x3]
        %v581 = vlaneseq
        %v582 = vshrl.u32 %v581, 7
        %v583 = vsub.s32 0, %v582
        %v584 = vrot.slane %v579, %v583
        %v585 = vlaneseq
        %v586 = vshrl.u32 %v585, 7
        %v587 = vsub.s32 1, %v586
        %v588 = vrot.slane %v579, %v587
        %v591 = vpack.c.bf16 %v584, %v584
        %v592 = vpack.c.bf16 %v588, %v588
        %v595 = vunpack.c.l.b16 %v591
        %v596 = vunpack.c.l.b16 %v592
        %v597 = vpack.c.b16 %v596, %v595
        %598 = vrot.lane.b32.xlu0 %v597, 3
        %v599 = vpop.permute.xlu0 %598
        %v600 = vrot.slane %v599, 4
        %vm601 = vcmask 23552
        %v602 = vsel %vm601, %v599, %v600
        %v604 = vld [vmem:[#allocation3 + $0x10] sm:$0x1]
        %v605 = vsel %vm547, %v602, %v604
        %606 = vst [vmem:[#allocation3 + $0x10] sm:$0x1] %v605
        %v607 = vld [vmem:[%s451] sm:$0x3]
        %v609 = vlaneseq
        %v610 = vshrl.u32 %v609, 7
        %v611 = vsub.s32 0, %v610
        %v612 = vrot.slane %v607, %v611
        %v613 = vlaneseq
        %v614 = vshrl.u32 %v613, 7
        %v615 = vsub.s32 1, %v614
        %v616 = vrot.slane %v607, %v615
        %v619 = vpack.c.bf16 %v612, %v612
        %v620 = vpack.c.bf16 %v616, %v616
        %v623 = vunpack.c.l.b16 %v619
        %v624 = vunpack.c.l.b16 %v620
        %v625 = vpack.c.b16 %v624, %v623
        %626 = vrot.lane.b32.xlu0 %v625, 2
        %v627 = vpop.permute.xlu0 %626
        %v628 = vrot.slane %v627, 4
        %vm629 = vcmask 15360
        %v630 = vsel %vm629, %v627, %v628
        %v632 = vld [vmem:[#allocation3 + $0x18] sm:$0x1]
        %v633 = vsel %vm547, %v630, %v632
        %634 = vst [vmem:[#allocation3 + $0x18] sm:$0x1] %v633
        %v635 = vld [vmem:[%s451] sm:$0x3]
        %v637 = vlaneseq
        %v638 = vshrl.u32 %v637, 7
        %v639 = vsub.s32 0, %v638
        %v640 = vrot.slane %v635, %v639
        %v641 = vlaneseq
        %v642 = vshrl.u32 %v641, 7
        %v643 = vsub.s32 1, %v642
        %v644 = vrot.slane %v635, %v643
        %v647 = vpack.c.bf16 %v640, %v640
        %v648 = vpack.c.bf16 %v644, %v644
        %v651 = vunpack.c.l.b16 %v647
        %v652 = vunpack.c.l.b16 %v648
        %v653 = vpack.c.b16 %v652, %v651
        %654 = vrot.lane.b32.xlu0 %v653, 1
        %v655 = vpop.permute.xlu0 %654
        %v656 = vrot.slane %v655, 4
        %vm657 = vcmask 7168
        %v658 = vsel %vm657, %v655, %v656
        %v660 = vld [vmem:[#allocation3 + $0x20] sm:$0x1]
        %v661 = vsel %vm547, %v658, %v660
        %662 = vst [vmem:[#allocation3 + $0x20] sm:$0x1] %v661
        %v663 = vld [vmem:[%s451 + $0x1] sm:$0x1]
        %v664 = vpack.c.bf16 %v663, %v663
        %v665 = vld [vmem:[#allocation3 + $0x28] sm:$0x1]
        %v666 = vsel %vm547, %v664, %v665
        %667 = vst [vmem:[#allocation3 + $0x28] sm:$0x1] %v666
        %v668 = vld [vmem:[%s451 + $0x1] sm:$0x3]
        %v670 = vlaneseq
        %v671 = vshrl.u32 %v670, 7
        %v672 = vsub.s32 0, %v671
        %v673 = vrot.slane %v668, %v672
        %v674 = vlaneseq
        %v675 = vshrl.u32 %v674, 7
        %v676 = vsub.s32 1, %v675
        %v677 = vrot.slane %v668, %v676
        %v680 = vpack.c.bf16 %v673, %v673
        %v681 = vpack.c.bf16 %v677, %v677
        %v684 = vunpack.c.l.b16 %v680
        %v685 = vunpack.c.l.b16 %v681
        %v686 = vpack.c.b16 %v685, %v684
        %687 = vrot.lane.b32.xlu0 %v686, 127
        %v688 = vpop.permute.xlu0 %687
        %v689 = vrot.slane %v688, 4
        %vm690 = vcmask 1039360
        %v691 = vsel %vm690, %v688, %v689
        %v693 = vld [vmem:[#allocation3 + $0x30] sm:$0x1]
        %v694 = vsel %vm547, %v691, %v693
        %695 = vst [vmem:[#allocation3 + $0x30] sm:$0x1] %v694
        %v696 = vld [vmem:[%s451 + $0x1] sm:$0x3]
        %v698 = vlaneseq
        %v699 = vshrl.u32 %v698, 7
        %v700 = vsub.s32 0, %v699
        %v701 = vrot.slane %v696, %v700
        %v702 = vlaneseq
        %v703 = vshrl.u32 %v702, 7
        %v704 = vsub.s32 1, %v703
        %v705 = vrot.slane %v696, %v704
        %v708 = vpack.c.bf16 %v701, %v701
        %v709 = vpack.c.bf16 %v705, %v705
        %v712 = vunpack.c.l.b16 %v708
        %v713 = vunpack.c.l.b16 %v709
        %v714 = vpack.c.b16 %v713, %v712
        %715 = vrot.lane.b32.xlu0 %v714, 126
        %v716 = vpop.permute.xlu0 %715
        %v717 = vrot.slane %v716, 4
        %vm718 = vcmask 1031168
        %v719 = vsel %vm718, %v716, %v717
        %v721 = vld [vmem:[#allocation3 + $0x38] sm:$0x1]
        %v722 = vsel %vm547, %v719, %v721
        %723 = vst [vmem:[#allocation3 + $0x38] sm:$0x1] %v722
        %v724 = vld [vmem:[%s451 + $0x1] sm:$0x3]
        %v726 = vlaneseq
        %v727 = vshrl.u32 %v726, 7
        %v728 = vsub.s32 0, %v727
        %v729 = vrot.slane %v724, %v728
        %v730 = vlaneseq
        %v731 = vshrl.u32 %v730, 7
        %v732 = vsub.s32 1, %v731
        %v733 = vrot.slane %v724, %v732
        %v736 = vpack.c.bf16 %v729, %v729
        %v737 = vpack.c.bf16 %v733, %v733
        %v740 = vunpack.c.l.b16 %v736
        %v741 = vunpack.c.l.b16 %v737
        %v742 = vpack.c.b16 %v741, %v740
        %743 = vrot.lane.b32.xlu0 %v742, 125
        %v744 = vpop.permute.xlu0 %743
        %v745 = vrot.slane %v744, 4
        %vm746 = vcmask 1022976
        %v747 = vsel %vm746, %v744, %v745
        %v749 = vld [vmem:[#allocation3 + $0x40] sm:$0x1]
        %v750 = vsel %vm547, %v747, %v749
        %751 = vst [vmem:[#allocation3 + $0x40] sm:$0x1] %v750
        %v752 = vld [vmem:[%s451 + $0x1] sm:$0x3]
        %v754 = vlaneseq
        %v755 = vshrl.u32 %v754, 7
        %v756 = vsub.s32 0, %v755
        %v757 = vrot.slane %v752, %v756
        %v758 = vlaneseq
        %v759 = vshrl.u32 %v758, 7
        %v760 = vsub.s32 1, %v759
        %v761 = vrot.slane %v752, %v760
        %v764 = vpack.c.bf16 %v757, %v757
        %v765 = vpack.c.bf16 %v761, %v761
        %v768 = vunpack.c.l.b16 %v764
        %v769 = vunpack.c.l.b16 %v765
        %v770 = vpack.c.b16 %v769, %v768
        %771 = vrot.lane.b32.xlu0 %v770, 124
        %v772 = vpop.permute.xlu0 %771
        %v773 = vrot.slane %v772, 4
        %vm774 = vcmask 1014784
        %v775 = vsel %vm774, %v772, %v773
        %v777 = vld [vmem:[#allocation3 + $0x48] sm:$0x1]
        %v778 = vsel %vm547, %v775, %v777
        %779 = vst [vmem:[#allocation3 + $0x48] sm:$0x1] %v778
        %v780 = vld [vmem:[#allocation4] sm:$0xff]
        %v781 = vld [vmem:[#allocation4 + $0x8] sm:$0xff]
        %v782 = vld [vmem:[#allocation4 + $0x10] sm:$0xff]
        %v783 = vld [vmem:[#allocation4 + $0x18] sm:$0x77]
        %v784 = vld [vmem:[#allocation3] sm:$0xf]
        %v785 = vld [vmem:[#allocation3 + $0x4] sm:$0xf]
        %v786 = vld [vmem:[#allocation3 + $0x8] sm:$0xf]
        %v787 = vld [vmem:[#allocation3 + $0xc] sm:$0xf]
        %v788 = vld [vmem:[#allocation3 + $0x10] sm:$0xf]
        %v789 = vld [vmem:[#allocation3 + $0x14] sm:$0xf]
        %v790 = vld [vmem:[#allocation3 + $0x18] sm:$0xf]
        %v791 = vld [vmem:[#allocation3 + $0x1c] sm:$0xf]
        %v792 = vld [vmem:[#allocation3 + $0x20] sm:$0xf]
        %v793 = vld [vmem:[#allocation3 + $0x24] sm:$0xf]
        %v794 = vld [vmem:[#allocation3 + $0x28] sm:$0xf]
        %v795 = vld [vmem:[#allocation3 + $0x2c] sm:$0xf]
        %v796 = vld [vmem:[#allocation3 + $0x30] sm:$0xf]
        %v797 = vld [vmem:[#allocation3 + $0x34] sm:$0xf]
        %v798 = vld [vmem:[#allocation3 + $0x38] sm:$0xf]
        %v799 = vld [vmem:[#allocation3 + $0x3c] sm:$0xf]
        %v800 = vld [vmem:[#allocation3 + $0x40] sm:$0xf]
        %v801 = vld [vmem:[#allocation3 + $0x44] sm:$0xf]
        %v802 = vld [vmem:[#allocation3 + $0x48] sm:$0xf]
        %v803 = vld [vmem:[#allocation3 + $0x4c] sm:$0xf]
        %v804 = vld [vmem:[%s2] sm:$0xff]
        %v805 = vld [vmem:[%s2 + $0x8] sm:$0xff]
        %v806 = vld [vmem:[%s2 + $0x10] sm:$0xff]
        %v807 = vld [vmem:[%s2 + $0x18] sm:$0x3f]
        %809 = vset.pattern.permute.xlu0 0
        %810 = vperm.xlu0 %809, %v804
        %v811 = vpop.permute.xlu0 %810
        %814 = vset.pattern.permute.xlu0 0
        %815 = vperm.xlu0 %814, %v805
        %v816 = vpop.permute.xlu0 %815
        %819 = vset.pattern.permute.xlu0 0
        %820 = vperm.xlu0 %819, %v806
        %v821 = vpop.permute.xlu0 %820
        %824 = vset.pattern.permute.xlu0 0
        %825 = vperm.xlu0 %824, %v807
        %v826 = vpop.permute.xlu0 %825
        %v832 = vunpack.c.l.b16 %v780
        %v833 = vunpack.c.h.b16 %v780
        %v834 = vunpack.c.l.b16 %v781
        %v835 = vunpack.c.h.b16 %v781
        %v836 = vunpack.c.l.b16 %v782
        %v837 = vunpack.c.h.b16 %v782
        %v838 = vunpack.c.l.b16 %v783
        %v839 = vunpack.c.h.b16 %v783
        %v840 = vpack.c.b16 %v834, %v832
        %v841 = vpack.c.b16 %v835, %v833
        %v842 = vpack.c.b16 %v838, %v836
        %v843 = vpack.c.b16 %v839, %v837
        %v866 = vunpack.c.l.b16 %v784
        %v867 = vunpack.c.l.b16 %v785
        %v868 = vunpack.c.l.b16 %v786
        %v869 = vunpack.c.l.b16 %v787
        %v870 = vunpack.c.l.b16 %v788
        %v871 = vunpack.c.l.b16 %v789
        %v872 = vunpack.c.l.b16 %v790
        %v873 = vunpack.c.l.b16 %v791
        %v874 = vunpack.c.l.b16 %v792
        %v875 = vunpack.c.l.b16 %v793
        %v876 = vunpack.c.l.b16 %v794
        %v877 = vunpack.c.l.b16 %v795
        %v878 = vunpack.c.l.b16 %v796
        %v879 = vunpack.c.l.b16 %v797
        %v880 = vunpack.c.l.b16 %v798
        %v881 = vunpack.c.l.b16 %v799
        %v882 = vunpack.c.l.b16 %v800
        %v883 = vunpack.c.l.b16 %v801
        %v884 = vunpack.c.l.b16 %v802
        %v885 = vunpack.c.l.b16 %v803
        %v886 = vpack.c.b16 %v867, %v866
        %v887 = vpack.c.b16 %v869, %v868
        %v888 = vpack.c.b16 %v871, %v870
        %v889 = vpack.c.b16 %v873, %v872
        %v890 = vpack.c.b16 %v875, %v874
        %v891 = vpack.c.b16 %v877, %v876
        %v892 = vpack.c.b16 %v879, %v878
        %v893 = vpack.c.b16 %v881, %v880
        %v894 = vpack.c.b16 %v883, %v882
        %v895 = vpack.c.b16 %v885, %v884
        %vm906 = vcmask 261120
        %v908 = vsel %vm906, %v841, 0
        %v911 = vsel %vm906, %v843, 0
        %913 = vmatprep.subr.bf16.mxu0 0
        %914 = vmatpush1.bf16.msra.mxu0 %v893
        %915 = vmatprep.subr.bf16.mxu0 0
        %916 = vmatpush1.bf16.msra.mxu0 %v892
        %917 = vmatprep.subr.bf16.mxu0 0
        %918 = vmatpush1.bf16.msra.mxu0 %v891
        %919 = vmatprep.subr.bf16.mxu0 0
        %920 = vmatpush1.bf16.msra.mxu0 %v890
        %921 = vmatprep.subr.bf16.mxu0 0
        %922 = vmatpush1.bf16.msra.mxu0 %v889
        %923 = vmatprep.subr.bf16.mxu0 0
        %924 = vmatpush1.bf16.msra.mxu0 %v888
        %925 = vmatprep.subr.bf16.mxu0 0
        %926 = vmatpush1.bf16.msra.mxu0 %v887
        %927 = vmatprep.subr.bf16.mxu0 0
        %928 = vmatpush1.bf16.msra.mxu0 %v886
        %929 = vmatprep.subr.bf16.mxu0 0
        %930 = vmatpush2.bf16.msra.mxu0 0
        %931 = vmatprep.subr.bf16.mxu0 0
        %932 = vmatpush2.bf16.msra.mxu0 0
        %933 = vmatprep.subr.bf16.mxu0 0
        %934 = vmatpush2.bf16.msra.mxu0 0
        %935 = vmatprep.subr.bf16.mxu0 0
        %936 = vmatpush2.bf16.msra.mxu0 0
        %937 = vmatprep.subr.bf16.mxu0 0
        %938 = vmatpush2.bf16.msra.mxu0 0
        %939 = vmatprep.subr.bf16.mxu0 0
        %940 = vmatpush2.bf16.msra.mxu0 0
        %941 = vmatprep.subr.bf16.mxu0 0
        %942 = vmatpush2.bf16.msra.mxu0 %v895
        %943 = vmatprep.subr.bf16.mxu0 0
        %944 = vmatpush2.bf16.msra.mxu0 %v894
        %945 = vmatprep.mubr.bf16.mxu0 %v908
        %946 = vmatmul.mubr.bf16.gmra.mxu0 %v840
        %v947 = vpop.f32.mrf.mxu0
        %v948 = vadd.f32 %v811, %v947
        %v949 = vpop.f32.mrf.mxu0
        %v950 = vpop.f32.mrf.mxu0
        %v951 = vadd.f32 %v816, %v950
        %v952 = vpop.f32.mrf.mxu0
        %953 = vmatprep.mubr.bf16.mxu0 %v911
        %954 = vmatmul.mubr.bf16.gmra.mxu0 %v842
        %v955 = vpop.f32.mrf.mxu0
        %v956 = vadd.f32 %v821, %v955
        %v957 = vpop.f32.mrf.mxu0
        %v958 = vpop.f32.mrf.mxu0
        %v959 = vadd.f32 %v826, %v958
        %v960 = vpop.f32.mrf.mxu0
        %961 = vdwg.mxu0
        %v962 = vmax.f32 %v948, 0.0
        %v963 = vmax.f32 %v951, 0.0
        %v964 = vmax.f32 %v956, 0.0
        %v965 = vmax.f32 %v959, 0.0
        %v966 = vsel %vm472, 1, 0
        %vm967 = vcmp.eq.s32.totalorder %v966, 1
        %v968 = vsel %vm967, %v962, 0.0
        %v969 = vsel %vm967, %v963, 0.0
        %v970 = vsel %vm967, %v964, 0.0
        %v971 = vsel %vm967, %v965, 0.0
        %v972 = vpack.c.bf16 %v969, %v968
        %v973 = vpack.c.bf16 %v971, %v970
        %v976 = vunpack.c.l.b16 %v972
        %v977 = vunpack.c.h.b16 %v972
        %v978 = vunpack.c.l.b16 %v973
        %v979 = vunpack.c.h.b16 %v973
        %v980 = vpack.c.b16 %v976, %v976
        %v981 = vpack.c.b16 %v977, %v977
        %v982 = vpack.c.b16 %v978, %v978
        %v983 = vpack.c.b16 %v979, %v979
        %988 = vst [vmem:[#allocation2 + $0x4] sm:$0xf] %v980
        %989 = vst [vmem:[#allocation2 + $0x10] sm:$0xf] %v981
        %990 = vst [vmem:[#allocation2 + $0x1c] sm:$0xf] %v982
        %991 = vst [vmem:[#allocation2 + $0x28] sm:$0x7] %v983
        %v992 = vld [vmem:[#allocation2] sm:$0xff]
        %v993 = vld [vmem:[#allocation2 + $0xc] sm:$0xff]
        %v994 = vld [vmem:[#allocation2 + $0x18] sm:$0xff]
        %v995 = vld [vmem:[#allocation2 + $0x24] sm:$0x77]
        %1000 = vrot.lane.b32.xlu0 %v992, 4
        %v1001 = vpop.permute.xlu0 %1000
        %1002 = vrot.lane.b32.xlu0 %v993, 4
        %v1003 = vpop.permute.xlu0 %1002
        %1004 = vrot.lane.b32.xlu0 %v994, 4
        %v1005 = vpop.permute.xlu0 %1004
        %1006 = vrot.lane.b32.xlu0 %v995, 4
        %v1007 = vpop.permute.xlu0 %1006
        %v1008 = vrot.slane %v1001, 4
        %v1009 = vrot.slane %v1003, 4
        %v1010 = vrot.slane %v1005, 4
        %v1011 = vrot.slane %v1007, 4
        %v1012 = vsel %vm573, %v1001, %v1008
        %v1013 = vsel %vm573, %v1003, %v1009
        %v1014 = vsel %vm573, %v1005, %v1010
        %v1015 = vsel %vm573, %v1007, %v1011
        %1020 = vst [vmem:[#allocation3] sm:$0xf] %v1012
        %1021 = vst [vmem:[#allocation3 + $0x4] sm:$0xf] %v1013
        %1022 = vst [vmem:[#allocation3 + $0x8] sm:$0xf] %v1014
        %1023 = vst [vmem:[#allocation3 + $0xc] sm:$0x7] %v1015
        %v1024 = vld [vmem:[#allocation2] sm:$0xff]
        %v1025 = vld [vmem:[#allocation2 + $0xc] sm:$0xff]
        %v1026 = vld [vmem:[#allocation2 + $0x18] sm:$0xff]
        %v1027 = vld [vmem:[#allocation2 + $0x24] sm:$0x77]
        %1032 = vrot.lane.b32.xlu0 %v1024, 3
        %v1033 = vpop.permute.xlu0 %1032
        %1034 = vrot.lane.b32.xlu0 %v1025, 3
        %v1035 = vpop.permute.xlu0 %1034
        %1036 = vrot.lane.b32.xlu0 %v1026, 3
        %v1037 = vpop.permute.xlu0 %1036
        %1038 = vrot.lane.b32.xlu0 %v1027, 3
        %v1039 = vpop.permute.xlu0 %1038
        %v1040 = vrot.slane %v1033, 4
        %v1041 = vrot.slane %v1035, 4
        %v1042 = vrot.slane %v1037, 4
        %v1043 = vrot.slane %v1039, 4
        %v1044 = vsel %vm601, %v1033, %v1040
        %v1045 = vsel %vm601, %v1035, %v1041
        %v1046 = vsel %vm601, %v1037, %v1042
        %v1047 = vsel %vm601, %v1039, %v1043
        %1052 = vst [vmem:[#allocation3 + $0x10] sm:$0xf] %v1044
        %1053 = vst [vmem:[#allocation3 + $0x14] sm:$0xf] %v1045
        %1054 = vst [vmem:[#allocation3 + $0x18] sm:$0xf] %v1046
        %1055 = vst [vmem:[#allocation3 + $0x1c] sm:$0x7] %v1047
        %v1056 = vld [vmem:[#allocation2] sm:$0xff]
        %v1057 = vld [vmem:[#allocation2 + $0xc] sm:$0xff]
        %v1058 = vld [vmem:[#allocation2 + $0x18] sm:$0xff]
        %v1059 = vld [vmem:[#allocation2 + $0x24] sm:$0x77]
        %1064 = vrot.lane.b32.xlu0 %v1056, 2
        %v1065 = vpop.permute.xlu0 %1064
        %1066 = vrot.lane.b32.xlu0 %v1057, 2
        %v1067 = vpop.permute.xlu0 %1066
        %1068 = vrot.lane.b32.xlu0 %v1058, 2
        %v1069 = vpop.permute.xlu0 %1068
        %1070 = vrot.lane.b32.xlu0 %v1059, 2
        %v1071 = vpop.permute.xlu0 %1070
        %v1072 = vrot.slane %v1065, 4
        %v1073 = vrot.slane %v1067, 4
        %v1074 = vrot.slane %v1069, 4
        %v1075 = vrot.slane %v1071, 4
        %v1076 = vsel %vm629, %v1065, %v1072
        %v1077 = vsel %vm629, %v1067, %v1073
        %v1078 = vsel %vm629, %v1069, %v1074
        %v1079 = vsel %vm629, %v1071, %v1075
        %1084 = vst [vmem:[#allocation3 + $0x20] sm:$0xf] %v1076
        %1085 = vst [vmem:[#allocation3 + $0x24] sm:$0xf] %v1077
        %1086 = vst [vmem:[#allocation3 + $0x28] sm:$0xf] %v1078
        %1087 = vst [vmem:[#allocation3 + $0x2c] sm:$0x7] %v1079
        %v1088 = vld [vmem:[#allocation2] sm:$0xff]
        %v1089 = vld [vmem:[#allocation2 + $0xc] sm:$0xff]
        %v1090 = vld [vmem:[#allocation2 + $0x18] sm:$0xff]
        %v1091 = vld [vmem:[#allocation2 + $0x24] sm:$0x77]
        %1096 = vrot.lane.b32.xlu0 %v1088, 1
        %v1097 = vpop.permute.xlu0 %1096
        %1098 = vrot.lane.b32.xlu0 %v1089, 1
        %v1099 = vpop.permute.xlu0 %1098
        %1100 = vrot.lane.b32.xlu0 %v1090, 1
        %v1101 = vpop.permute.xlu0 %1100
        %1102 = vrot.lane.b32.xlu0 %v1091, 1
        %v1103 = vpop.permute.xlu0 %1102
        %v1104 = vrot.slane %v1097, 4
        %v1105 = vrot.slane %v1099, 4
        %v1106 = vrot.slane %v1101, 4
        %v1107 = vrot.slane %v1103, 4
        %v1108 = vsel %vm657, %v1097, %v1104
        %v1109 = vsel %vm657, %v1099, %v1105
        %v1110 = vsel %vm657, %v1101, %v1106
        %v1111 = vsel %vm657, %v1103, %v1107
        %1116 = vst [vmem:[#allocation3 + $0x30] sm:$0xf] %v1108
        %1117 = vst [vmem:[#allocation3 + $0x34] sm:$0xf] %v1109
        %1118 = vst [vmem:[#allocation3 + $0x38] sm:$0xf] %v1110
        %1119 = vst [vmem:[#allocation3 + $0x3c] sm:$0x7] %v1111
        %v1120 = vld [vmem:[#allocation2 + $0x4] sm:$0xf]
        %v1121 = vld [vmem:[#allocation2 + $0x10] sm:$0xf]
        %v1122 = vld [vmem:[#allocation2 + $0x1c] sm:$0xf]
        %v1123 = vld [vmem:[#allocation2 + $0x28] sm:$0x7]
        %1124 = vst [vmem:[#allocation3 + $0x40] sm:$0xf] %v1120
        %1125 = vst [vmem:[#allocation3 + $0x44] sm:$0xf] %v1121
        %1126 = vst [vmem:[#allocation3 + $0x48] sm:$0xf] %v1122
        %1127 = vst [vmem:[#allocation3 + $0x4c] sm:$0x7] %v1123
        %v1128 = vld [vmem:[#allocation2 + $0x4] sm:$0xff]
        %v1129 = vld [vmem:[#allocation2 + $0x10] sm:$0xff]
        %v1130 = vld [vmem:[#allocation2 + $0x1c] sm:$0xff]
        %v1131 = vld [vmem:[#allocation2 + $0x28] sm:$0x77]
        %1136 = vrot.lane.b32.xlu0 %v1128, 127
        %v1137 = vpop.permute.xlu0 %1136
        %1138 = vrot.lane.b32.xlu0 %v1129, 127
        %v1139 = vpop.permute.xlu0 %1138
        %1140 = vrot.lane.b32.xlu0 %v1130, 127
        %v1141 = vpop.permute.xlu0 %1140
        %1142 = vrot.lane.b32.xlu0 %v1131, 127
        %v1143 = vpop.permute.xlu0 %1142
        %v1144 = vrot.slane %v1137, 4
        %v1145 = vrot.slane %v1139, 4
        %v1146 = vrot.slane %v1141, 4
        %v1147 = vrot.slane %v1143, 4
        %v1148 = vsel %vm690, %v1137, %v1144
        %v1149 = vsel %vm690, %v1139, %v1145
        %v1150 = vsel %vm690, %v1141, %v1146
        %v1151 = vsel %vm690, %v1143, %v1147
        %1156 = vst [vmem:[#allocation3 + $0x50] sm:$0xf] %v1148
        %1157 = vst [vmem:[#allocation3 + $0x54] sm:$0xf] %v1149
        %1158 = vst [vmem:[#allocation3 + $0x58] sm:$0xf] %v1150
        %1159 = vst [vmem:[#allocation3 + $0x5c] sm:$0x7] %v1151
        %v1160 = vld [vmem:[#allocation2 + $0x4] sm:$0xff]
        %v1161 = vld [vmem:[#allocation2 + $0x10] sm:$0xff]
        %v1162 = vld [vmem:[#allocation2 + $0x1c] sm:$0xff]
        %v1163 = vld [vmem:[#allocation2 + $0x28] sm:$0x77]
        %1168 = vrot.lane.b32.xlu0 %v1160, 126
        %v1169 = vpop.permute.xlu0 %1168
        %1170 = vrot.lane.b32.xlu0 %v1161, 126
        %v1171 = vpop.permute.xlu0 %1170
        %1172 = vrot.lane.b32.xlu0 %v1162, 126
        %v1173 = vpop.permute.xlu0 %1172
        %1174 = vrot.lane.b32.xlu0 %v1163, 126
        %v1175 = vpop.permute.xlu0 %1174
        %v1176 = vrot.slane %v1169, 4
        %v1177 = vrot.slane %v1171, 4
        %v1178 = vrot.slane %v1173, 4
        %v1179 = vrot.slane %v1175, 4
        %v1180 = vsel %vm718, %v1169, %v1176
        %v1181 = vsel %vm718, %v1171, %v1177
        %v1182 = vsel %vm718, %v1173, %v1178
        %v1183 = vsel %vm718, %v1175, %v1179
        %1188 = vst [vmem:[#allocation3 + $0x60] sm:$0xf] %v1180
        %1189 = vst [vmem:[#allocation3 + $0x64] sm:$0xf] %v1181
        %1190 = vst [vmem:[#allocation3 + $0x68] sm:$0xf] %v1182
        %1191 = vst [vmem:[#allocation3 + $0x6c] sm:$0x7] %v1183
        %v1192 = vld [vmem:[#allocation2 + $0x4] sm:$0xff]
        %v1193 = vld [vmem:[#allocation2 + $0x10] sm:$0xff]
        %v1194 = vld [vmem:[#allocation2 + $0x1c] sm:$0xff]
        %v1195 = vld [vmem:[#allocation2 + $0x28] sm:$0x77]
        %1200 = vrot.lane.b32.xlu0 %v1192, 125
        %v1201 = vpop.permute.xlu0 %1200
        %1202 = vrot.lane.b32.xlu0 %v1193, 125
        %v1203 = vpop.permute.xlu0 %1202
        %1204 = vrot.lane.b32.xlu0 %v1194, 125
        %v1205 = vpop.permute.xlu0 %1204
        %1206 = vrot.lane.b32.xlu0 %v1195, 125
        %v1207 = vpop.permute.xlu0 %1206
        %v1208 = vrot.slane %v1201, 4
        %v1209 = vrot.slane %v1203, 4
        %v1210 = vrot.slane %v1205, 4
        %v1211 = vrot.slane %v1207, 4
        %v1212 = vsel %vm746, %v1201, %v1208
        %v1213 = vsel %vm746, %v1203, %v1209
        %v1214 = vsel %vm746, %v1205, %v1210
        %v1215 = vsel %vm746, %v1207, %v1211
        %1220 = vst [vmem:[#allocation3 + $0x70] sm:$0xf] %v1212
        %1221 = vst [vmem:[#allocation3 + $0x74] sm:$0xf] %v1213
        %1222 = vst [vmem:[#allocation3 + $0x78] sm:$0xf] %v1214
        %1223 = vst [vmem:[#allocation3 + $0x7c] sm:$0x7] %v1215
        %v1224 = vld [vmem:[#allocation6] sm:$0xff]
        %v1225 = vld [vmem:[#allocation6 + $0x8] sm:$0xff]
        %v1226 = vld [vmem:[#allocation6 + $0x10] sm:$0xff]
        %v1227 = vld [vmem:[#allocation6 + $0x18] sm:$0x77]
        %v1228 = vld [vmem:[#allocation3] sm:$0xf]
        %v1229 = vld [vmem:[#allocation3 + $0x4] sm:$0xf]
        %v1230 = vld [vmem:[#allocation3 + $0x8] sm:$0xf]
        %v1231 = vld [vmem:[#allocation3 + $0xc] sm:$0xf]
        %v1232 = vld [vmem:[#allocation3 + $0x10] sm:$0xf]
        %v1233 = vld [vmem:[#allocation3 + $0x14] sm:$0xf]
        %v1234 = vld [vmem:[#allocation3 + $0x18] sm:$0xf]
        %v1235 = vld [vmem:[#allocation3 + $0x1c] sm:$0xf]
        %v1236 = vld [vmem:[#allocation3 + $0x20] sm:$0xf]
        %v1237 = vld [vmem:[#allocation3 + $0x24] sm:$0xf]
        %v1238 = vld [vmem:[#allocation3 + $0x28] sm:$0xf]
        %v1239 = vld [vmem:[#allocation3 + $0x2c] sm:$0xf]
        %v1240 = vld [vmem:[#allocation3 + $0x30] sm:$0xf]
        %v1241 = vld [vmem:[#allocation3 + $0x34] sm:$0xf]
        %v1242 = vld [vmem:[#allocation3 + $0x38] sm:$0xf]
        %v1243 = vld [vmem:[#allocation3 + $0x3c] sm:$0xf]
        %v1244 = vld [vmem:[#allocation3 + $0x40] sm:$0xf]
        %v1245 = vld [vmem:[#allocation3 + $0x44] sm:$0xf]
        %v1246 = vld [vmem:[#allocation3 + $0x48] sm:$0xf]
        %v1247 = vld [vmem:[#allocation3 + $0x4c] sm:$0xf]
        %v1248 = vld [vmem:[#allocation3 + $0x50] sm:$0xf]
        %v1249 = vld [vmem:[#allocation3 + $0x54] sm:$0xf]
        %v1250 = vld [vmem:[#allocation3 + $0x58] sm:$0xf]
        %v1251 = vld [vmem:[#allocation3 + $0x5c] sm:$0xf]
        %v1252 = vld [vmem:[#allocation3 + $0x60] sm:$0xf]
        %v1253 = vld [vmem:[#allocation3 + $0x64] sm:$0xf]
        %v1254 = vld [vmem:[#allocation3 + $0x68] sm:$0xf]
        %v1255 = vld [vmem:[#allocation3 + $0x6c] sm:$0xf]
        %v1256 = vld [vmem:[#allocation3 + $0x70] sm:$0xf]
        %v1257 = vld [vmem:[#allocation3 + $0x74] sm:$0xf]
        %v1258 = vld [vmem:[#allocation3 + $0x78] sm:$0xf]
        %v1259 = vld [vmem:[#allocation3 + $0x7c] sm:$0xf]
        %v1260 = vld [vmem:[%s4] sm:$0xff]
        %v1261 = vld [vmem:[%s4 + $0x8] sm:$0xff]
        %v1262 = vld [vmem:[%s4 + $0x10] sm:$0xff]
        %v1263 = vld [vmem:[%s4 + $0x18] sm:$0x3f]
        %1265 = vset.pattern.permute.xlu0 0
        %1266 = vperm.xlu0 %1265, %v1260
        %v1267 = vpop.permute.xlu0 %1266
        %1270 = vset.pattern.permute.xlu0 0
        %1271 = vperm.xlu0 %1270, %v1261
        %v1272 = vpop.permute.xlu0 %1271
        %1275 = vset.pattern.permute.xlu0 0
        %1276 = vperm.xlu0 %1275, %v1262
        %v1277 = vpop.permute.xlu0 %1276
        %1280 = vset.pattern.permute.xlu0 0
        %1281 = vperm.xlu0 %1280, %v1263
        %v1282 = vpop.permute.xlu0 %1281
        %v1288 = vunpack.c.l.b16 %v1224
        %v1289 = vunpack.c.h.b16 %v1224
        %v1290 = vunpack.c.l.b16 %v1225
        %v1291 = vunpack.c.h.b16 %v1225
        %v1292 = vunpack.c.l.b16 %v1226
        %v1293 = vunpack.c.h.b16 %v1226
        %v1294 = vunpack.c.l.b16 %v1227
        %v1295 = vunpack.c.h.b16 %v1227
        %v1296 = vpack.c.b16 %v1290, %v1288
        %v1297 = vpack.c.b16 %v1291, %v1289
        %v1298 = vpack.c.b16 %v1294, %v1292
        %v1299 = vpack.c.b16 %v1295, %v1293
        %v1336 = vunpack.c.l.b16 %v1228
        %v1337 = vunpack.c.l.b16 %v1229
        %v1338 = vunpack.c.l.b16 %v1230
        %v1339 = vunpack.c.l.b16 %v1231
        %v1340 = vunpack.c.l.b16 %v1232
        %v1341 = vunpack.c.l.b16 %v1233
        %v1342 = vunpack.c.l.b16 %v1234
        %v1343 = vunpack.c.l.b16 %v1235
        %v1344 = vunpack.c.l.b16 %v1236
        %v1345 = vunpack.c.l.b16 %v1237
        %v1346 = vunpack.c.l.b16 %v1238
        %v1347 = vunpack.c.l.b16 %v1239
        %v1348 = vunpack.c.l.b16 %v1240
        %v1349 = vunpack.c.l.b16 %v1241
        %v1350 = vunpack.c.l.b16 %v1242
        %v1351 = vunpack.c.l.b16 %v1243
        %v1352 = vunpack.c.l.b16 %v1244
        %v1353 = vunpack.c.l.b16 %v1245
        %v1354 = vunpack.c.l.b16 %v1246
        %v1355 = vunpack.c.l.b16 %v1247
        %v1356 = vunpack.c.l.b16 %v1248
        %v1357 = vunpack.c.l.b16 %v1249
        %v1358 = vunpack.c.l.b16 %v1250
        %v1359 = vunpack.c.l.b16 %v1251
        %v1360 = vunpack.c.l.b16 %v1252
        %v1361 = vunpack.c.l.b16 %v1253
        %v1362 = vunpack.c.l.b16 %v1254
        %v1363 = vunpack.c.l.b16 %v1255
        %v1364 = vunpack.c.l.b16 %v1256
        %v1365 = vunpack.c.l.b16 %v1257
        %v1366 = vunpack.c.l.b16 %v1258
        %v1367 = vunpack.c.l.b16 %v1259
        %v1368 = vpack.c.b16 %v1337, %v1336
        %v1369 = vpack.c.b16 %v1339, %v1338
        %v1370 = vpack.c.b16 %v1341, %v1340
        %v1371 = vpack.c.b16 %v1343, %v1342
        %v1372 = vpack.c.b16 %v1345, %v1344
        %v1373 = vpack.c.b16 %v1347, %v1346
        %v1374 = vpack.c.b16 %v1349, %v1348
        %v1375 = vpack.c.b16 %v1351, %v1350
        %v1376 = vpack.c.b16 %v1353, %v1352
        %v1377 = vpack.c.b16 %v1355, %v1354
        %v1378 = vpack.c.b16 %v1357, %v1356
        %v1379 = vpack.c.b16 %v1359, %v1358
        %v1380 = vpack.c.b16 %v1361, %v1360
        %v1381 = vpack.c.b16 %v1363, %v1362
        %v1382 = vpack.c.b16 %v1365, %v1364
        %v1383 = vpack.c.b16 %v1367, %v1366
        %1400 = vmatprep.subr.bf16.mxu0 0
        %1401 = vmatpush1.bf16.msra.mxu0 %v1375
        %1402 = vmatprep.subr.bf16.mxu0 0
        %1403 = vmatpush1.bf16.msra.mxu0 %v1374
        %1404 = vmatprep.subr.bf16.mxu0 0
        %1405 = vmatpush1.bf16.msra.mxu0 %v1373
        %1406 = vmatprep.subr.bf16.mxu0 0
        %1407 = vmatpush1.bf16.msra.mxu0 %v1372
        %1408 = vmatprep.subr.bf16.mxu0 0
        %1409 = vmatpush1.bf16.msra.mxu0 %v1371
        %1410 = vmatprep.subr.bf16.mxu0 0
        %1411 = vmatpush1.bf16.msra.mxu0 %v1370
        %1412 = vmatprep.subr.bf16.mxu0 0
        %1413 = vmatpush1.bf16.msra.mxu0 %v1369
        %1414 = vmatprep.subr.bf16.mxu0 0
        %1415 = vmatpush1.bf16.msra.mxu0 %v1368
        %1416 = vmatprep.subr.bf16.mxu0 0
        %1417 = vmatpush2.bf16.msra.mxu0 %v1383
        %1418 = vmatprep.subr.bf16.mxu0 0
        %1419 = vmatpush2.bf16.msra.mxu0 %v1382
        %1420 = vmatprep.subr.bf16.mxu0 0
        %1421 = vmatpush2.bf16.msra.mxu0 %v1381
        %1422 = vmatprep.subr.bf16.mxu0 0
        %1423 = vmatpush2.bf16.msra.mxu0 %v1380
        %1424 = vmatprep.subr.bf16.mxu0 0
        %1425 = vmatpush2.bf16.msra.mxu0 %v1379
        %1426 = vmatprep.subr.bf16.mxu0 0
        %1427 = vmatpush2.bf16.msra.mxu0 %v1378
        %1428 = vmatprep.subr.bf16.mxu0 0
        %1429 = vmatpush2.bf16.msra.mxu0 %v1377
        %1430 = vmatprep.subr.bf16.mxu0 0
        %1431 = vmatpush2.bf16.msra.mxu0 %v1376
        %1432 = vmatprep.mubr.bf16.mxu0 %v1297
        %1433 = vmatmul.mubr.bf16.gmra.mxu0 %v1296
        %v1434 = vpop.f32.mrf.mxu0
        %v1435 = vadd.f32 %v1267, %v1434
        %v1436 = vpop.f32.mrf.mxu0
        %v1437 = vpop.f32.mrf.mxu0
        %v1438 = vadd.f32 %v1272, %v1437
        %v1439 = vpop.f32.mrf.mxu0
        %1440 = vmatprep.mubr.bf16.mxu0 %v1299
        %1441 = vmatmul.mubr.bf16.gmra.mxu0 %v1298
        %v1442 = vpop.f32.mrf.mxu0
        %v1443 = vadd.f32 %v1277, %v1442
        %v1444 = vpop.f32.mrf.mxu0
        %v1445 = vpop.f32.mrf.mxu0
        %v1446 = vadd.f32 %v1282, %v1445
        %v1447 = vpop.f32.mrf.mxu0
        %1448 = vdwg.mxu0
        %v1449 = vmax.f32 %v1435, 0.0
        %v1450 = vmax.f32 %v1438, 0.0
        %v1451 = vmax.f32 %v1443, 0.0
        %v1452 = vmax.f32 %v1446, 0.0
        %v1453 = vsel %vm967, %v1449, 0.0
        %v1454 = vsel %vm967, %v1450, 0.0
        %v1455 = vsel %vm967, %v1451, 0.0
        %v1456 = vsel %vm967, %v1452, 0.0
        %v1457 = vpack.c.bf16 %v1454, %v1453
        %v1458 = vpack.c.bf16 %v1456, %v1455
        %v1461 = vunpack.c.l.b16 %v1457
        %v1462 = vunpack.c.h.b16 %v1457
        %v1463 = vunpack.c.l.b16 %v1458
        %v1464 = vunpack.c.h.b16 %v1458
        %v1465 = vpack.c.b16 %v1461, %v1461
        %v1466 = vpack.c.b16 %v1462, %v1462
        %v1467 = vpack.c.b16 %v1463, %v1463
        %v1468 = vpack.c.b16 %v1464, %v1464
        %1473 = vst [vmem:[#allocation2 + $0x4] sm:$0xf] %v1465
        %1474 = vst [vmem:[#allocation2 + $0x10] sm:$0xf] %v1466
        %1475 = vst [vmem:[#allocation2 + $0x1c] sm:$0xf] %v1467
        %1476 = vst [vmem:[#allocation2 + $0x28] sm:$0x7] %v1468
        %v1477 = vld [vmem:[#allocation2] sm:$0xff]
        %v1478 = vld [vmem:[#allocation2 + $0xc] sm:$0xff]
        %v1479 = vld [vmem:[#allocation2 + $0x18] sm:$0xff]
        %v1480 = vld [vmem:[#allocation2 + $0x24] sm:$0x77]
        %1485 = vrot.lane.b32.xlu0 %v1477, 3
        %v1486 = vpop.permute.xlu0 %1485
        %1487 = vrot.lane.b32.xlu0 %v1478, 3
        %v1488 = vpop.permute.xlu0 %1487
        %1489 = vrot.lane.b32.xlu0 %v1479, 3
        %v1490 = vpop.permute.xlu0 %1489
        %1491 = vrot.lane.b32.xlu0 %v1480, 3
        %v1492 = vpop.permute.xlu0 %1491
        %v1493 = vrot.slane %v1486, 4
        %v1494 = vrot.slane %v1488, 4
        %v1495 = vrot.slane %v1490, 4
        %v1496 = vrot.slane %v1492, 4
        %v1497 = vsel %vm601, %v1486, %v1493
        %v1498 = vsel %vm601, %v1488, %v1494
        %v1499 = vsel %vm601, %v1490, %v1495
        %v1500 = vsel %vm601, %v1492, %v1496
        %1505 = vst [vmem:[#allocation3] sm:$0xf] %v1497
        %1506 = vst [vmem:[#allocation3 + $0x4] sm:$0xf] %v1498
        %1507 = vst [vmem:[#allocation3 + $0x8] sm:$0xf] %v1499
        %1508 = vst [vmem:[#allocation3 + $0xc] sm:$0x7] %v1500
        %v1509 = vld [vmem:[#allocation2] sm:$0xff]
        %v1510 = vld [vmem:[#allocation2 + $0xc] sm:$0xff]
        %v1511 = vld [vmem:[#allocation2 + $0x18] sm:$0xff]
        %v1512 = vld [vmem:[#allocation2 + $0x24] sm:$0x77]
        %1517 = vrot.lane.b32.xlu0 %v1509, 2
        %v1518 = vpop.permute.xlu0 %1517
        %1519 = vrot.lane.b32.xlu0 %v1510, 2
        %v1520 = vpop.permute.xlu0 %1519
        %1521 = vrot.lane.b32.xlu0 %v1511, 2
        %v1522 = vpop.permute.xlu0 %1521
        %1523 = vrot.lane.b32.xlu0 %v1512, 2
        %v1524 = vpop.permute.xlu0 %1523
        %v1525 = vrot.slane %v1518, 4
        %v1526 = vrot.slane %v1520, 4
        %v1527 = vrot.slane %v1522, 4
        %v1528 = vrot.slane %v1524, 4
        %v1529 = vsel %vm629, %v1518, %v1525
        %v1530 = vsel %vm629, %v1520, %v1526
        %v1531 = vsel %vm629, %v1522, %v1527
        %v1532 = vsel %vm629, %v1524, %v1528
        %1537 = vst [vmem:[#allocation3 + $0x10] sm:$0xf] %v1529
        %1538 = vst [vmem:[#allocation3 + $0x14] sm:$0xf] %v1530
        %1539 = vst [vmem:[#allocation3 + $0x18] sm:$0xf] %v1531
        %1540 = vst [vmem:[#allocation3 + $0x1c] sm:$0x7] %v1532
        %v1541 = vld [vmem:[#allocation2] sm:$0xff]
        %v1542 = vld [vmem:[#allocation2 + $0xc] sm:$0xff]
        %v1543 = vld [vmem:[#allocation2 + $0x18] sm:$0xff]
        %v1544 = vld [vmem:[#allocation2 + $0x24] sm:$0x77]
        %1549 = vrot.lane.b32.xlu0 %v1541, 1
        %v1550 = vpop.permute.xlu0 %1549
        %1551 = vrot.lane.b32.xlu0 %v1542, 1
        %v1552 = vpop.permute.xlu0 %1551
        %1553 = vrot.lane.b32.xlu0 %v1543, 1
        %v1554 = vpop.permute.xlu0 %1553
        %1555 = vrot.lane.b32.xlu0 %v1544, 1
        %v1556 = vpop.permute.xlu0 %1555
        %v1557 = vrot.slane %v1550, 4
        %v1558 = vrot.slane %v1552, 4
        %v1559 = vrot.slane %v1554, 4
        %v1560 = vrot.slane %v1556, 4
        %v1561 = vsel %vm657, %v1550, %v1557
        %v1562 = vsel %vm657, %v1552, %v1558
        %v1563 = vsel %vm657, %v1554, %v1559
        %v1564 = vsel %vm657, %v1556, %v1560
        %1569 = vst [vmem:[#allocation3 + $0x20] sm:$0xf] %v1561
        %1570 = vst [vmem:[#allocation3 + $0x24] sm:$0xf] %v1562
        %1571 = vst [vmem:[#allocation3 + $0x28] sm:$0xf] %v1563
        %1572 = vst [vmem:[#allocation3 + $0x2c] sm:$0x7] %v1564
        %v1573 = vld [vmem:[#allocation2 + $0x4] sm:$0xf]
        %v1574 = vld [vmem:[#allocation2 + $0x10] sm:$0xf]
        %v1575 = vld [vmem:[#allocation2 + $0x1c] sm:$0xf]
        %v1576 = vld [vmem:[#allocation2 + $0x28] sm:$0x7]
        %1577 = vst [vmem:[#allocation3 + $0x30] sm:$0xf] %v1573
        %1578 = vst [vmem:[#allocation3 + $0x34] sm:$0xf] %v1574
        %1579 = vst [vmem:[#allocation3 + $0x38] sm:$0xf] %v1575
        %1580 = vst [vmem:[#allocation3 + $0x3c] sm:$0x7] %v1576
        %v1581 = vld [vmem:[#allocation2 + $0x4] sm:$0xff]
        %v1582 = vld [vmem:[#allocation2 + $0x10] sm:$0xff]
        %v1583 = vld [vmem:[#allocation2 + $0x1c] sm:$0xff]
        %v1584 = vld [vmem:[#allocation2 + $0x28] sm:$0x77]
        %1589 = vrot.lane.b32.xlu0 %v1581, 127
        %v1590 = vpop.permute.xlu0 %1589
        %1591 = vrot.lane.b32.xlu0 %v1582, 127
        %v1592 = vpop.permute.xlu0 %1591
        %1593 = vrot.lane.b32.xlu0 %v1583, 127
        %v1594 = vpop.permute.xlu0 %1593
        %1595 = vrot.lane.b32.xlu0 %v1584, 127
        %v1596 = vpop.permute.xlu0 %1595
        %v1597 = vrot.slane %v1590, 4
        %v1598 = vrot.slane %v1592, 4
        %v1599 = vrot.slane %v1594, 4
        %v1600 = vrot.slane %v1596, 4
        %v1601 = vsel %vm690, %v1590, %v1597
        %v1602 = vsel %vm690, %v1592, %v1598
        %v1603 = vsel %vm690, %v1594, %v1599
        %v1604 = vsel %vm690, %v1596, %v1600
        %1609 = vst [vmem:[#allocation3 + $0x40] sm:$0xf] %v1601
        %1610 = vst [vmem:[#allocation3 + $0x44] sm:$0xf] %v1602
        %1611 = vst [vmem:[#allocation3 + $0x48] sm:$0xf] %v1603
        %1612 = vst [vmem:[#allocation3 + $0x4c] sm:$0x7] %v1604
        %v1613 = vld [vmem:[#allocation2 + $0x4] sm:$0xff]
        %v1614 = vld [vmem:[#allocation2 + $0x10] sm:$0xff]
        %v1615 = vld [vmem:[#allocation2 + $0x1c] sm:$0xff]
        %v1616 = vld [vmem:[#allocation2 + $0x28] sm:$0x77]
        %1621 = vrot.lane.b32.xlu0 %v1613, 126
        %v1622 = vpop.permute.xlu0 %1621
        %1623 = vrot.lane.b32.xlu0 %v1614, 126
        %v1624 = vpop.permute.xlu0 %1623
        %1625 = vrot.lane.b32.xlu0 %v1615, 126
        %v1626 = vpop.permute.xlu0 %1625
        %1627 = vrot.lane.b32.xlu0 %v1616, 126
        %v1628 = vpop.permute.xlu0 %1627
        %v1629 = vrot.slane %v1622, 4
        %v1630 = vrot.slane %v1624, 4
        %v1631 = vrot.slane %v1626, 4
        %v1632 = vrot.slane %v1628, 4
        %v1633 = vsel %vm718, %v1622, %v1629
        %v1634 = vsel %vm718, %v1624, %v1630
        %v1635 = vsel %vm718, %v1626, %v1631
        %v1636 = vsel %vm718, %v1628, %v1632
        %1641 = vst [vmem:[#allocation3 + $0x50] sm:$0xf] %v1633
        %1642 = vst [vmem:[#allocation3 + $0x54] sm:$0xf] %v1634
        %1643 = vst [vmem:[#allocation3 + $0x58] sm:$0xf] %v1635
        %1644 = vst [vmem:[#allocation3 + $0x5c] sm:$0x7] %v1636
        %v1645 = vld [vmem:[#allocation8] sm:$0xff]
        %v1646 = vld [vmem:[#allocation8 + $0x8] sm:$0xff]
        %v1647 = vld [vmem:[#allocation8 + $0x10] sm:$0xff]
        %v1648 = vld [vmem:[#allocation8 + $0x18] sm:$0xff]
        %v1649 = vld [vmem:[#allocation8 + $0x20] sm:$0xff]
        %v1650 = vld [vmem:[#allocation3] sm:$0xf]
        %v1651 = vld [vmem:[#allocation3 + $0x4] sm:$0xf]
        %v1652 = vld [vmem:[#allocation3 + $0x8] sm:$0xf]
        %v1653 = vld [vmem:[#allocation3 + $0xc] sm:$0xf]
        %v1654 = vld [vmem:[#allocation3 + $0x10] sm:$0xf]
        %v1655 = vld [vmem:[#allocation3 + $0x14] sm:$0xf]
        %v1656 = vld [vmem:[#allocation3 + $0x18] sm:$0xf]
        %v1657 = vld [vmem:[#allocation3 + $0x1c] sm:$0xf]
        %v1658 = vld [vmem:[#allocation3 + $0x20] sm:$0xf]
        %v1659 = vld [vmem:[#allocation3 + $0x24] sm:$0xf]
        %v1660 = vld [vmem:[#allocation3 + $0x28] sm:$0xf]
        %v1661 = vld [vmem:[#allocation3 + $0x2c] sm:$0xf]
        %v1662 = vld [vmem:[#allocation3 + $0x30] sm:$0xf]
        %v1663 = vld [vmem:[#allocation3 + $0x34] sm:$0xf]
        %v1664 = vld [vmem:[#allocation3 + $0x38] sm:$0xf]
        %v1665 = vld [vmem:[#allocation3 + $0x3c] sm:$0xf]
        %v1666 = vld [vmem:[#allocation3 + $0x40] sm:$0xf]
        %v1667 = vld [vmem:[#allocation3 + $0x44] sm:$0xf]
        %v1668 = vld [vmem:[#allocation3 + $0x48] sm:$0xf]
        %v1669 = vld [vmem:[#allocation3 + $0x4c] sm:$0xf]
        %v1670 = vld [vmem:[#allocation3 + $0x50] sm:$0xf]
        %v1671 = vld [vmem:[#allocation3 + $0x54] sm:$0xf]
        %v1672 = vld [vmem:[#allocation3 + $0x58] sm:$0xf]
        %v1673 = vld [vmem:[#allocation3 + $0x5c] sm:$0xf]
        %v1674 = vld [vmem:[%s6] sm:$0xff]
        %v1675 = vld [vmem:[%s6 + $0x8] sm:$0xff]
        %v1676 = vld [vmem:[%s6 + $0x10] sm:$0xff]
        %v1677 = vld [vmem:[%s6 + $0x18] sm:$0xff]
        %v1678 = vld [vmem:[%s6 + $0x20] sm:$0xff]
        %1680 = vset.pattern.permute.xlu0 0
        %1681 = vperm.xlu0 %1680, %v1674
        %v1682 = vpop.permute.xlu0 %1681
        %1685 = vset.pattern.permute.xlu0 0
        %1686 = vperm.xlu0 %1685, %v1675
        %v1687 = vpop.permute.xlu0 %1686
        %1690 = vset.pattern.permute.xlu0 0
        %1691 = vperm.xlu0 %1690, %v1676
        %v1692 = vpop.permute.xlu0 %1691
        %1695 = vset.pattern.permute.xlu0 0
        %1696 = vperm.xlu0 %1695, %v1677
        %v1697 = vpop.permute.xlu0 %1696
        %1700 = vset.pattern.permute.xlu0 0
        %1701 = vperm.xlu0 %1700, %v1678
        %v1702 = vpop.permute.xlu0 %1701
        %v1709 = vunpack.c.l.b16 %v1645
        %v1710 = vunpack.c.h.b16 %v1645
        %v1711 = vunpack.c.l.b16 %v1646
        %v1712 = vunpack.c.h.b16 %v1646
        %v1713 = vunpack.c.l.b16 %v1647
        %v1714 = vunpack.c.h.b16 %v1647
        %v1715 = vunpack.c.l.b16 %v1648
        %v1716 = vunpack.c.h.b16 %v1648
        %v1717 = vunpack.c.l.b16 %v1649
        %v1718 = vunpack.c.h.b16 %v1649
        %v1719 = vpack.c.b16 %v1711, %v1709
        %v1720 = vpack.c.b16 %v1712, %v1710
        %v1721 = vpack.c.b16 %v1715, %v1713
        %v1722 = vpack.c.b16 %v1716, %v1714
        %v1723 = vpack.c.b16 %v1717, %v1717
        %v1724 = vpack.c.b16 %v1718, %v1718
        %v1752 = vunpack.c.l.b16 %v1650
        %v1753 = vunpack.c.l.b16 %v1651
        %v1754 = vunpack.c.l.b16 %v1652
        %v1755 = vunpack.c.l.b16 %v1653
        %v1756 = vunpack.c.l.b16 %v1654
        %v1757 = vunpack.c.l.b16 %v1655
        %v1758 = vunpack.c.l.b16 %v1656
        %v1759 = vunpack.c.l.b16 %v1657
        %v1760 = vunpack.c.l.b16 %v1658
        %v1761 = vunpack.c.l.b16 %v1659
        %v1762 = vunpack.c.l.b16 %v1660
        %v1763 = vunpack.c.l.b16 %v1661
        %v1764 = vunpack.c.l.b16 %v1662
        %v1765 = vunpack.c.l.b16 %v1663
        %v1766 = vunpack.c.l.b16 %v1664
        %v1767 = vunpack.c.l.b16 %v1665
        %v1768 = vunpack.c.l.b16 %v1666
        %v1769 = vunpack.c.l.b16 %v1667
        %v1770 = vunpack.c.l.b16 %v1668
        %v1771 = vunpack.c.l.b16 %v1669
        %v1772 = vunpack.c.l.b16 %v1670
        %v1773 = vunpack.c.l.b16 %v1671
        %v1774 = vunpack.c.l.b16 %v1672
        %v1775 = vunpack.c.l.b16 %v1673
        %v1776 = vpack.c.b16 %v1753, %v1752
        %v1777 = vpack.c.b16 %v1755, %v1754
        %v1778 = vpack.c.b16 %v1757, %v1756
        %v1779 = vpack.c.b16 %v1759, %v1758
        %v1780 = vpack.c.b16 %v1761, %v1760
        %v1781 = vpack.c.b16 %v1763, %v1762
        %v1782 = vpack.c.b16 %v1765, %v1764
        %v1783 = vpack.c.b16 %v1767, %v1766
        %v1784 = vpack.c.b16 %v1769, %v1768
        %v1785 = vpack.c.b16 %v1771, %v1770
        %v1786 = vpack.c.b16 %v1773, %v1772
        %v1787 = vpack.c.b16 %v1775, %v1774
        %vm1800 = vcmask 523264
        %v1802 = vsel %vm1800, %v1720, 0
        %v1805 = vsel %vm1800, %v1722, 0
        %v1808 = vsel %vm1800, %v1724, 0
        %1810 = vmatprep.subr.bf16.mxu0 0
        %1811 = vmatpush1.bf16.msra.mxu0 %v1783
        %1812 = vmatprep.subr.bf16.mxu0 0
        %1813 = vmatpush1.bf16.msra.mxu0 %v1782
        %1814 = vmatprep.subr.bf16.mxu0 0
        %1815 = vmatpush1.bf16.msra.mxu0 %v1781
        %1816 = vmatprep.subr.bf16.mxu0 0
        %1817 = vmatpush1.bf16.msra.mxu0 %v1780
        %1818 = vmatprep.subr.bf16.mxu0 0
        %1819 = vmatpush1.bf16.msra.mxu0 %v1779
        %1820 = vmatprep.subr.bf16.mxu0 0
        %1821 = vmatpush1.bf16.msra.mxu0 %v1778
        %1822 = vmatprep.subr.bf16.mxu0 0
        %1823 = vmatpush1.bf16.msra.mxu0 %v1777
        %1824 = vmatprep.subr.bf16.mxu0 0
        %1825 = vmatpush1.bf16.msra.mxu0 %v1776
        %1826 = vmatprep.subr.bf16.mxu0 0
        %1827 = vmatpush2.bf16.msra.mxu0 0
        %1828 = vmatprep.subr.bf16.mxu0 0
        %1829 = vmatpush2.bf16.msra.mxu0 0
        %1830 = vmatprep.subr.bf16.mxu0 0
        %1831 = vmatpush2.bf16.msra.mxu0 0
        %1832 = vmatprep.subr.bf16.mxu0 0
        %1833 = vmatpush2.bf16.msra.mxu0 0
        %1834 = vmatprep.subr.bf16.mxu0 0
        %1835 = vmatpush2.bf16.msra.mxu0 %v1787
        %1836 = vmatprep.subr.bf16.mxu0 0
        %1837 = vmatpush2.bf16.msra.mxu0 %v1786
        %1838 = vmatprep.subr.bf16.mxu0 0
        %1839 = vmatpush2.bf16.msra.mxu0 %v1785
        %1840 = vmatprep.subr.bf16.mxu0 0
        %1841 = vmatpush2.bf16.msra.mxu0 %v1784
        %1842 = vmatprep.mubr.bf16.mxu0 %v1802
        %1843 = vmatmul.mubr.bf16.gmra.mxu0 %v1719
        %v1844 = vpop.f32.mrf.mxu0
        %v1845 = vadd.f32 %v1682, %v1844
        %v1846 = vpop.f32.mrf.mxu0
        %v1847 = vpop.f32.mrf.mxu0
        %v1848 = vadd.f32 %v1687, %v1847
        %v1849 = vpop.f32.mrf.mxu0
        %1850 = vmatprep.mubr.bf16.mxu0 %v1805
        %1851 = vmatmul.mubr.bf16.gmra.mxu0 %v1721
        %v1852 = vpop.f32.mrf.mxu0
        %v1853 = vadd.f32 %v1692, %v1852
        %v1854 = vpop.f32.mrf.mxu0
        %v1855 = vpop.f32.mrf.mxu0
        %v1856 = vadd.f32 %v1697, %v1855
        %v1857 = vpop.f32.mrf.mxu0
        %1858 = vmatprep.mubr.bf16.mxu0 %v1808
        %1859 = vmatmul.mubr.bf16.gmra.mxu0 %v1723
        %v1860 = vpop.f32.mrf.mxu0
        %v1861 = vadd.f32 %v1702, %v1860
        %v1862 = vpop.f32.mrf.mxu0
        %v1863 = vpop.f32.mrf.mxu0
        %v1864 = vpop.f32.mrf.mxu0
        %1865 = vdwg.mxu0
        %v1866 = vmax.f32 %v1845, 0.0
        %v1867 = vmax.f32 %v1848, 0.0
        %v1868 = vmax.f32 %v1853, 0.0
        %v1869 = vmax.f32 %v1856, 0.0
        %v1870 = vmax.f32 %v1861, 0.0
        %v1871 = vsel %vm967, %v1866, 0.0
        %v1872 = vsel %vm967, %v1867, 0.0
        %v1873 = vsel %vm967, %v1868, 0.0
        %v1874 = vsel %vm967, %v1869, 0.0
        %v1875 = vsel %vm967, %v1870, 0.0
        %v1876 = vpack.c.bf16 %v1872, %v1871
        %v1877 = vpack.c.bf16 %v1874, %v1873
        %v1878 = vpack.c.bf16 %v1875, %v1875
        %v1882 = vunpack.c.l.b16 %v1876
        %v1883 = vunpack.c.h.b16 %v1876
        %v1884 = vunpack.c.l.b16 %v1877
        %v1885 = vunpack.c.h.b16 %v1877
        %v1886 = vunpack.c.l.b16 %v1878
        %v1887 = vpack.c.b16 %v1882, %v1882
        %v1888 = vpack.c.b16 %v1883, %v1883
        %v1889 = vpack.c.b16 %v1884, %v1884
        %v1890 = vpack.c.b16 %v1885, %v1885
        %v1891 = vpack.c.b16 %v1886, %v1886
        %1897 = vst [vmem:[#allocation2 + $0x4] sm:$0xf] %v1887
        %1898 = vst [vmem:[#allocation2 + $0x10] sm:$0xf] %v1888
        %1899 = vst [vmem:[#allocation2 + $0x1c] sm:$0xf] %v1889
        %1900 = vst [vmem:[#allocation2 + $0x28] sm:$0xf] %v1890
        %1901 = vst [vmem:[#allocation2 + $0x34] sm:$0xf] %v1891
        %v1902 = vld [vmem:[#allocation2] sm:$0xff]
        %v1903 = vld [vmem:[#allocation2 + $0xc] sm:$0xff]
        %v1904 = vld [vmem:[#allocation2 + $0x18] sm:$0xff]
        %v1905 = vld [vmem:[#allocation2 + $0x24] sm:$0xff]
        %v1906 = vld [vmem:[#allocation2 + $0x30] sm:$0xff]
        %1912 = vrot.lane.b32.xlu0 %v1902, 2
        %v1913 = vpop.permute.xlu0 %1912
        %1914 = vrot.lane.b32.xlu0 %v1903, 2
        %v1915 = vpop.permute.xlu0 %1914
        %1916 = vrot.lane.b32.xlu0 %v1904, 2
        %v1917 = vpop.permute.xlu0 %1916
        %1918 = vrot.lane.b32.xlu0 %v1905, 2
        %v1919 = vpop.permute.xlu0 %1918
        %1920 = vrot.lane.b32.xlu0 %v1906, 2
        %v1921 = vpop.permute.xlu0 %1920
        %v1922 = vrot.slane %v1913, 4
        %v1923 = vrot.slane %v1915, 4
        %v1924 = vrot.slane %v1917, 4
        %v1925 = vrot.slane %v1919, 4
        %v1926 = vrot.slane %v1921, 4
        %v1927 = vsel %vm629, %v1913, %v1922
        %v1928 = vsel %vm629, %v1915, %v1923
        %v1929 = vsel %vm629, %v1917, %v1924
        %v1930 = vsel %vm629, %v1919, %v1925
        %v1931 = vsel %vm629, %v1921, %v1926
        %1937 = vst [vmem:[#allocation3] sm:$0xf] %v1927
        %1938 = vst [vmem:[#allocation3 + $0x4] sm:$0xf] %v1928
        %1939 = vst [vmem:[#allocation3 + $0x8] sm:$0xf] %v1929
        %1940 = vst [vmem:[#allocation3 + $0xc] sm:$0xf] %v1930
        %1941 = vst [vmem:[#allocation3 + $0x10] sm:$0xf] %v1931
        %v1942 = vld [vmem:[#allocation2] sm:$0xff]
        %v1943 = vld [vmem:[#allocation2 + $0xc] sm:$0xff]
        %v1944 = vld [vmem:[#allocation2 + $0x18] sm:$0xff]
        %v1945 = vld [vmem:[#allocation2 + $0x24] sm:$0xff]
        %v1946 = vld [vmem:[#allocation2 + $0x30] sm:$0xff]
        %1952 = vrot.lane.b32.xlu0 %v1942, 1
        %v1953 = vpop.permute.xlu0 %1952
        %1954 = vrot.lane.b32.xlu0 %v1943, 1
        %v1955 = vpop.permute.xlu0 %1954
        %1956 = vrot.lane.b32.xlu0 %v1944, 1
        %v1957 = vpop.permute.xlu0 %1956
        %1958 = vrot.lane.b32.xlu0 %v1945, 1
        %v1959 = vpop.permute.xlu0 %1958
        %1960 = vrot.lane.b32.xlu0 %v1946, 1
        %v1961 = vpop.permute.xlu0 %1960
        %v1962 = vrot.slane %v1953, 4
        %v1963 = vrot.slane %v1955, 4
        %v1964 = vrot.slane %v1957, 4
        %v1965 = vrot.slane %v1959, 4
        %v1966 = vrot.slane %v1961, 4
        %v1967 = vsel %vm657, %v1953, %v1962
        %v1968 = vsel %vm657, %v1955, %v1963
        %v1969 = vsel %vm657, %v1957, %v1964
        %v1970 = vsel %vm657, %v1959, %v1965
        %v1971 = vsel %vm657, %v1961, %v1966
        %1977 = vst [vmem:[#allocation3 + $0x18] sm:$0xf] %v1967
        %1978 = vst [vmem:[#allocation3 + $0x1c] sm:$0xf] %v1968
        %1979 = vst [vmem:[#allocation3 + $0x20] sm:$0xf] %v1969
        %1980 = vst [vmem:[#allocation3 + $0x24] sm:$0xf] %v1970
        %1981 = vst [vmem:[#allocation3 + $0x28] sm:$0xf] %v1971
        %v1982 = vld [vmem:[#allocation2 + $0x4] sm:$0xf]
        %v1983 = vld [vmem:[#allocation2 + $0x10] sm:$0xf]
        %v1984 = vld [vmem:[#allocation2 + $0x1c] sm:$0xf]
        %v1985 = vld [vmem:[#allocation2 + $0x28] sm:$0xf]
        %v1986 = vld [vmem:[#allocation2 + $0x34] sm:$0xf]
        %1987 = vst [vmem:[#allocation3 + $0x30] sm:$0xf] %v1982
        %1988 = vst [vmem:[#allocation3 + $0x34] sm:$0xf] %v1983
        %1989 = vst [vmem:[#allocation3 + $0x38] sm:$0xf] %v1984
        %1990 = vst [vmem:[#allocation3 + $0x3c] sm:$0xf] %v1985
        %1991 = vst [vmem:[#allocation3 + $0x40] sm:$0xf] %v1986
        %v1992 = vld [vmem:[#allocation2 + $0x4] sm:$0xff]
        %v1993 = vld [vmem:[#allocation2 + $0x10] sm:$0xff]
        %v1994 = vld [vmem:[#allocation2 + $0x1c] sm:$0xff]
        %v1995 = vld [vmem:[#allocation2 + $0x28] sm:$0xff]
        %v1996 = vld [vmem:[#allocation2 + $0x34] sm:$0xff]
        %2002 = vrot.lane.b32.xlu0 %v1992, 127
        %v2003 = vpop.permute.xlu0 %2002
        %2004 = vrot.lane.b32.xlu0 %v1993, 127
        %v2005 = vpop.permute.xlu0 %2004
        %2006 = vrot.lane.b32.xlu0 %v1994, 127
        %v2007 = vpop.permute.xlu0 %2006
        %2008 = vrot.lane.b32.xlu0 %v1995, 127
        %v2009 = vpop.permute.xlu0 %2008
        %2010 = vrot.lane.b32.xlu0 %v1996, 127
        %v2011 = vpop.permute.xlu0 %2010
        %v2012 = vrot.slane %v2003, 4
        %v2013 = vrot.slane %v2005, 4
        %v2014 = vrot.slane %v2007, 4
        %v2015 = vrot.slane %v2009, 4
        %v2016 = vrot.slane %v2011, 4
        %v2017 = vsel %vm690, %v2003, %v2012
        %v2018 = vsel %vm690, %v2005, %v2013
        %v2019 = vsel %vm690, %v2007, %v2014
        %v2020 = vsel %vm690, %v2009, %v2015
        %v2021 = vsel %vm690, %v2011, %v2016
        %2027 = vst [vmem:[#allocation3 + $0x48] sm:$0xf] %v2017
        %2028 = vst [vmem:[#allocation3 + $0x4c] sm:$0xf] %v2018
        %2029 = vst [vmem:[#allocation3 + $0x50] sm:$0xf] %v2019
        %2030 = vst [vmem:[#allocation3 + $0x54] sm:$0xf] %v2020
        %2031 = vst [vmem:[#allocation3 + $0x58] sm:$0xf] %v2021
        %v2032 = vld [vmem:[#allocation2 + $0x4] sm:$0xff]
        %v2033 = vld [vmem:[#allocation2 + $0x10] sm:$0xff]
        %v2034 = vld [vmem:[#allocation2 + $0x1c] sm:$0xff]
        %v2035 = vld [vmem:[#allocation2 + $0x28] sm:$0xff]
        %v2036 = vld [vmem:[#allocation2 + $0x34] sm:$0xff]
        %2042 = vrot.lane.b32.xlu0 %v2032, 126
        %v2043 = vpop.permute.xlu0 %2042
        %2044 = vrot.lane.b32.xlu0 %v2033, 126
        %v2045 = vpop.permute.xlu0 %2044
        %2046 = vrot.lane.b32.xlu0 %v2034, 126
        %v2047 = vpop.permute.xlu0 %2046
        %2048 = vrot.lane.b32.xlu0 %v2035, 126
        %v2049 = vpop.permute.xlu0 %2048
        %2050 = vrot.lane.b32.xlu0 %v2036, 126
        %v2051 = vpop.permute.xlu0 %2050
        %v2052 = vrot.slane %v2043, 4
        %v2053 = vrot.slane %v2045, 4
        %v2054 = vrot.slane %v2047, 4
        %v2055 = vrot.slane %v2049, 4
        %v2056 = vrot.slane %v2051, 4
        %v2057 = vsel %vm718, %v2043, %v2052
        %v2058 = vsel %vm718, %v2045, %v2053
        %v2059 = vsel %vm718, %v2047, %v2054
        %v2060 = vsel %vm718, %v2049, %v2055
        %v2061 = vsel %vm718, %v2051, %v2056
        %2067 = vst [vmem:[#allocation3 + $0x60] sm:$0xf] %v2057
        %2068 = vst [vmem:[#allocation3 + $0x64] sm:$0xf] %v2058
        %2069 = vst [vmem:[#allocation3 + $0x68] sm:$0xf] %v2059
        %2070 = vst [vmem:[#allocation3 + $0x6c] sm:$0xf] %v2060
        %2071 = vst [vmem:[#allocation3 + $0x70] sm:$0xf] %v2061
        %v2072 = vld [vmem:[#allocation9] sm:$0xff]
        %v2073 = vld [vmem:[#allocation9 + $0x8] sm:$0xff]
        %v2074 = vld [vmem:[#allocation9 + $0x10] sm:$0xff]
        %v2075 = vld [vmem:[#allocation9 + $0x18] sm:$0xff]
        %v2076 = vld [vmem:[#allocation9 + $0x20] sm:$0xff]
        %v2077 = vld [vmem:[#allocation9 + $0x28] sm:$0xff]
        %v2078 = vld [vmem:[#allocation9 + $0x30] sm:$0x11]
        %v2079 = vld [vmem:[#allocation3] sm:$0xf]
        %v2080 = vld [vmem:[#allocation3 + $0x4] sm:$0xf]
        %v2081 = vld [vmem:[#allocation3 + $0x8] sm:$0xf]
        %v2082 = vld [vmem:[#allocation3 + $0xc] sm:$0xf]
        %v2083 = vld [vmem:[#allocation3 + $0x10] sm:$0xf]
        %v2084 = vld [vmem:[#allocation3 + $0x14] sm:$0xf]
        %v2085 = vld [vmem:[#allocation3 + $0x18] sm:$0xf]
        %v2086 = vld [vmem:[#allocation3 + $0x1c] sm:$0xf]
        %v2087 = vld [vmem:[#allocation3 + $0x20] sm:$0xf]
        %v2088 = vld [vmem:[#allocation3 + $0x24] sm:$0xf]
        %v2089 = vld [vmem:[#allocation3 + $0x28] sm:$0xf]
        %v2090 = vld [vmem:[#allocation3 + $0x2c] sm:$0xf]
        %v2091 = vld [vmem:[#allocation3 + $0x30] sm:$0xf]
        %v2092 = vld [vmem:[#allocation3 + $0x34] sm:$0xf]
        %v2093 = vld [vmem:[#allocation3 + $0x38] sm:$0xf]
        %v2094 = vld [vmem:[#allocation3 + $0x3c] sm:$0xf]
        %v2095 = vld [vmem:[#allocation3 + $0x40] sm:$0xf]
        %v2096 = vld [vmem:[#allocation3 + $0x44] sm:$0xf]
        %v2097 = vld [vmem:[#allocation3 + $0x48] sm:$0xf]
        %v2098 = vld [vmem:[#allocation3 + $0x4c] sm:$0xf]
        %v2099 = vld [vmem:[#allocation3 + $0x50] sm:$0xf]
        %v2100 = vld [vmem:[#allocation3 + $0x54] sm:$0xf]
        %v2101 = vld [vmem:[#allocation3 + $0x58] sm:$0xf]
        %v2102 = vld [vmem:[#allocation3 + $0x5c] sm:$0xf]
        %v2103 = vld [vmem:[#allocation3 + $0x60] sm:$0xf]
        %v2104 = vld [vmem:[#allocation3 + $0x64] sm:$0xf]
        %v2105 = vld [vmem:[#allocation3 + $0x68] sm:$0xf]
        %v2106 = vld [vmem:[#allocation3 + $0x6c] sm:$0xf]
        %v2107 = vld [vmem:[#allocation3 + $0x70] sm:$0xf]
        %v2108 = vld [vmem:[#allocation3 + $0x74] sm:$0xf]
        %v2109 = vld [vmem:[%s8] sm:$0xff]
        %v2110 = vld [vmem:[%s8 + $0x8] sm:$0xff]
        %v2111 = vld [vmem:[%s8 + $0x10] sm:$0xff]
        %v2112 = vld [vmem:[%s8 + $0x18] sm:$0xff]
        %v2113 = vld [vmem:[%s8 + $0x20] sm:$0xff]
        %v2114 = vld [vmem:[%s8 + $0x28] sm:$0xff]
        %v2115 = vld [vmem:[%s8 + $0x30] sm:$0x3]
        %2117 = vset.pattern.permute.xlu0 0
        %2118 = vperm.xlu0 %2117, %v2109
        %v2119 = vpop.permute.xlu0 %2118
        %2122 = vset.pattern.permute.xlu0 0
        %2123 = vperm.xlu0 %2122, %v2110
        %v2124 = vpop.permute.xlu0 %2123
        %2127 = vset.pattern.permute.xlu0 0
        %2128 = vperm.xlu0 %2127, %v2111
        %v2129 = vpop.permute.xlu0 %2128
        %2132 = vset.pattern.permute.xlu0 0
        %2133 = vperm.xlu0 %2132, %v2112
        %v2134 = vpop.permute.xlu0 %2133
        %2137 = vset.pattern.permute.xlu0 0
        %2138 = vperm.xlu0 %2137, %v2113
        %v2139 = vpop.permute.xlu0 %2138
        %2142 = vset.pattern.permute.xlu0 0
        %2143 = vperm.xlu0 %2142, %v2114
        %v2144 = vpop.permute.xlu0 %2143
        %2147 = vset.pattern.permute.xlu0 0
        %2148 = vperm.xlu0 %2147, %v2115
        %v2149 = vpop.permute.xlu0 %2148
        %v2158 = vunpack.c.l.b16 %v2072
        %v2159 = vunpack.c.h.b16 %v2072
        %v2160 = vunpack.c.l.b16 %v2073
        %v2161 = vunpack.c.h.b16 %v2073
        %v2162 = vunpack.c.l.b16 %v2074
        %v2163 = vunpack.c.h.b16 %v2074
        %v2164 = vunpack.c.l.b16 %v2075
        %v2165 = vunpack.c.h.b16 %v2075
        %v2166 = vunpack.c.l.b16 %v2076
        %v2167 = vunpack.c.h.b16 %v2076
        %v2168 = vunpack.c.l.b16 %v2077
        %v2169 = vunpack.c.h.b16 %v2077
        %v2170 = vunpack.c.l.b16 %v2078
        %v2171 = vunpack.c.h.b16 %v2078
        %v2172 = vpack.c.b16 %v2160, %v2158
        %v2173 = vpack.c.b16 %v2161, %v2159
        %v2174 = vpack.c.b16 %v2164, %v2162
        %v2175 = vpack.c.b16 %v2165, %v2163
        %v2176 = vpack.c.b16 %v2168, %v2166
        %v2177 = vpack.c.b16 %v2169, %v2167
        %v2178 = vpack.c.b16 %v2170, %v2170
        %v2179 = vpack.c.b16 %v2171, %v2171
        %v2214 = vunpack.c.l.b16 %v2079
        %v2215 = vunpack.c.l.b16 %v2080
        %v2216 = vunpack.c.l.b16 %v2081
        %v2217 = vunpack.c.l.b16 %v2082
        %v2218 = vunpack.c.l.b16 %v2083
        %v2219 = vunpack.c.l.b16 %v2084
        %v2220 = vunpack.c.l.b16 %v2085
        %v2221 = vunpack.c.l.b16 %v2086
        %v2222 = vunpack.c.l.b16 %v2087
        %v2223 = vunpack.c.l.b16 %v2088
        %v2224 = vunpack.c.l.b16 %v2089
        %v2225 = vunpack.c.l.b16 %v2090
        %v2226 = vunpack.c.l.b16 %v2091
        %v2227 = vunpack.c.l.b16 %v2092
        %v2228 = vunpack.c.l.b16 %v2093
        %v2229 = vunpack.c.l.b16 %v2094
        %v2230 = vunpack.c.l.b16 %v2095
        %v2231 = vunpack.c.l.b16 %v2096
        %v2232 = vunpack.c.l.b16 %v2097
        %v2233 = vunpack.c.l.b16 %v2098
        %v2234 = vunpack.c.l.b16 %v2099
        %v2235 = vunpack.c.l.b16 %v2100
        %v2236 = vunpack.c.l.b16 %v2101
        %v2237 = vunpack.c.l.b16 %v2102
        %v2238 = vunpack.c.l.b16 %v2103
        %v2239 = vunpack.c.l.b16 %v2104
        %v2240 = vunpack.c.l.b16 %v2105
        %v2241 = vunpack.c.l.b16 %v2106
        %v2242 = vunpack.c.l.b16 %v2107
        %v2243 = vunpack.c.l.b16 %v2108
        %v2244 = vpack.c.b16 %v2215, %v2214
        %v2245 = vpack.c.b16 %v2217, %v2216
        %v2246 = vpack.c.b16 %v2219, %v2218
        %v2247 = vpack.c.b16 %v2221, %v2220
        %v2248 = vpack.c.b16 %v2223, %v2222
        %v2249 = vpack.c.b16 %v2225, %v2224
        %v2250 = vpack.c.b16 %v2227, %v2226
        %v2251 = vpack.c.b16 %v2229, %v2228
        %v2252 = vpack.c.b16 %v2231, %v2230
        %v2253 = vpack.c.b16 %v2233, %v2232
        %v2254 = vpack.c.b16 %v2235, %v2234
        %v2255 = vpack.c.b16 %v2237, %v2236
        %v2256 = vpack.c.b16 %v2239, %v2238
        %v2257 = vpack.c.b16 %v2241, %v2240
        %v2258 = vpack.c.b16 %v2243, %v2242
        %vm2274 = vcmask 916480
        %v2276 = vsel %vm2274, %v2173, 0
        %v2279 = vsel %vm2274, %v2175, 0
        %v2282 = vsel %vm2274, %v2177, 0
        %v2285 = vsel %vm2274, %v2179, 0
        %2287 = vmatprep.subr.bf16.mxu0 0
        %2288 = vmatpush1.bf16.msra.mxu0 %v2251
        %2289 = vmatprep.subr.bf16.mxu0 0
        %2290 = vmatpush1.bf16.msra.mxu0 %v2250
        %2291 = vmatprep.subr.bf16.mxu0 0
        %2292 = vmatpush1.bf16.msra.mxu0 %v2249
        %2293 = vmatprep.subr.bf16.mxu0 0
        %2294 = vmatpush1.bf16.msra.mxu0 %v2248
        %2295 = vmatprep.subr.bf16.mxu0 0
        %2296 = vmatpush1.bf16.msra.mxu0 %v2247
        %2297 = vmatprep.subr.bf16.mxu0 0
        %2298 = vmatpush1.bf16.msra.mxu0 %v2246
        %2299 = vmatprep.subr.bf16.mxu0 0
        %2300 = vmatpush1.bf16.msra.mxu0 %v2245
        %2301 = vmatprep.subr.bf16.mxu0 0
        %2302 = vmatpush1.bf16.msra.mxu0 %v2244
        %2303 = vmatprep.subr.bf16.mxu0 0
        %2304 = vmatpush2.bf16.msra.mxu0 0
        %2305 = vmatprep.subr.bf16.mxu0 0
        %2306 = vmatpush2.bf16.msra.mxu0 %v2258
        %2307 = vmatprep.subr.bf16.mxu0 0
        %2308 = vmatpush2.bf16.msra.mxu0 %v2257
        %2309 = vmatprep.subr.bf16.mxu0 0
        %2310 = vmatpush2.bf16.msra.mxu0 %v2256
        %2311 = vmatprep.subr.bf16.mxu0 0
        %2312 = vmatpush2.bf16.msra.mxu0 %v2255
        %2313 = vmatprep.subr.bf16.mxu0 0
        %2314 = vmatpush2.bf16.msra.mxu0 %v2254
        %2315 = vmatprep.subr.bf16.mxu0 0
        %2316 = vmatpush2.bf16.msra.mxu0 %v2253
        %2317 = vmatprep.subr.bf16.mxu0 0
        %2318 = vmatpush2.bf16.msra.mxu0 %v2252
        %2319 = vmatprep.mubr.bf16.mxu0 %v2276
        %2320 = vmatmul.mubr.bf16.gmra.mxu0 %v2172
        %v2321 = vpop.f32.mrf.mxu0
        %v2322 = vadd.f32 %v2119, %v2321
        %v2323 = vpop.f32.mrf.mxu0
        %v2324 = vpop.f32.mrf.mxu0
        %v2325 = vadd.f32 %v2124, %v2324
        %v2326 = vpop.f32.mrf.mxu0
        %2327 = vmatprep.mubr.bf16.mxu0 %v2279
        %2328 = vmatmul.mubr.bf16.gmra.mxu0 %v2174
        %v2329 = vpop.f32.mrf.mxu0
        %v2330 = vadd.f32 %v2129, %v2329
        %v2331 = vpop.f32.mrf.mxu0
        %v2332 = vpop.f32.mrf.mxu0
        %v2333 = vadd.f32 %v2134, %v2332
        %v2334 = vpop.f32.mrf.mxu0
        %2335 = vmatprep.mubr.bf16.mxu0 %v2282
        %2336 = vmatmul.mubr.bf16.gmra.mxu0 %v2176
        %v2337 = vpop.f32.mrf.mxu0
        %v2338 = vadd.f32 %v2139, %v2337
        %v2339 = vpop.f32.mrf.mxu0
        %v2340 = vpop.f32.mrf.mxu0
        %v2341 = vadd.f32 %v2144, %v2340
        %v2342 = vpop.f32.mrf.mxu0
        %2343 = vmatprep.mubr.bf16.mxu0 %v2285
        %2344 = vmatmul.mubr.bf16.gmra.mxu0 %v2178
        %v2345 = vpop.f32.mrf.mxu0
        %v2346 = vadd.f32 %v2149, %v2345
        %v2347 = vpop.f32.mrf.mxu0
        %v2348 = vpop.f32.mrf.mxu0
        %v2349 = vpop.f32.mrf.mxu0
        %2350 = vdwg.mxu0
        %v2351 = vmax.f32 %v2322, 0.0
        %v2352 = vmax.f32 %v2325, 0.0
        %v2353 = vmax.f32 %v2330, 0.0
        %v2354 = vmax.f32 %v2333, 0.0
        %v2355 = vmax.f32 %v2338, 0.0
        %v2356 = vmax.f32 %v2341, 0.0
        %v2357 = vmax.f32 %v2346, 0.0
        %v2358 = vsel %vm967, %v2351, 0.0
        %v2359 = vsel %vm967, %v2352, 0.0
        %v2360 = vsel %vm967, %v2353, 0.0
        %v2361 = vsel %vm967, %v2354, 0.0
        %v2362 = vsel %vm967, %v2355, 0.0
        %v2363 = vsel %vm967, %v2356, 0.0
        %v2364 = vsel %vm967, %v2357, 0.0
        %v2365 = vpack.c.bf16 %v2359, %v2358
        %v2366 = vpack.c.bf16 %v2361, %v2360
        %v2367 = vpack.c.bf16 %v2363, %v2362
        %v2368 = vpack.c.bf16 %v2364, %v2364
        %v2373 = vunpack.c.l.b16 %v2365
        %v2374 = vunpack.c.h.b16 %v2365
        %v2375 = vunpack.c.l.b16 %v2366
        %v2376 = vunpack.c.h.b16 %v2366
        %v2377 = vunpack.c.l.b16 %v2367
        %v2378 = vunpack.c.h.b16 %v2367
        %v2379 = vunpack.c.l.b16 %v2368
        %v2380 = vpack.c.b16 %v2373, %v2373
        %v2381 = vpack.c.b16 %v2374, %v2374
        %v2382 = vpack.c.b16 %v2375, %v2375
        %v2383 = vpack.c.b16 %v2376, %v2376
        %v2384 = vpack.c.b16 %v2377, %v2377
        %v2385 = vpack.c.b16 %v2378, %v2378
        %v2386 = vpack.c.b16 %v2379, %v2379
        %2394 = vst [vmem:[#allocation2 + $0x4] sm:$0xf] %v2380
        %2395 = vst [vmem:[#allocation2 + $0x10] sm:$0xf] %v2381
        %2396 = vst [vmem:[#allocation2 + $0x1c] sm:$0xf] %v2382
        %2397 = vst [vmem:[#allocation2 + $0x28] sm:$0xf] %v2383
        %2398 = vst [vmem:[#allocation2 + $0x34] sm:$0xf] %v2384
        %2399 = vst [vmem:[#allocation2 + $0x40] sm:$0xf] %v2385
        %2400 = vst [vmem:[#allocation2 + $0x4c] sm:$0x1] %v2386
        %v2401 = vld [vmem:[#allocation2] sm:$0xff]
        %v2402 = vld [vmem:[#allocation2 + $0xc] sm:$0xff]
        %v2403 = vld [vmem:[#allocation2 + $0x18] sm:$0xff]
        %v2404 = vld [vmem:[#allocation2 + $0x24] sm:$0xff]
        %v2405 = vld [vmem:[#allocation2 + $0x30] sm:$0xff]
        %v2406 = vld [vmem:[#allocation2 + $0x3c] sm:$0xff]
        %v2407 = vld [vmem:[#allocation2 + $0x48] sm:$0x11]
        %2415 = vrot.lane.b32.xlu0 %v2401, 2
        %v2416 = vpop.permute.xlu0 %2415
        %2417 = vrot.lane.b32.xlu0 %v2402, 2
        %v2418 = vpop.permute.xlu0 %2417
        %2419 = vrot.lane.b32.xlu0 %v2403, 2
        %v2420 = vpop.permute.xlu0 %2419
        %2421 = vrot.lane.b32.xlu0 %v2404, 2
        %v2422 = vpop.permute.xlu0 %2421
        %2423 = vrot.lane.b32.xlu0 %v2405, 2
        %v2424 = vpop.permute.xlu0 %2423
        %2425 = vrot.lane.b32.xlu0 %v2406, 2
        %v2426 = vpop.permute.xlu0 %2425
        %2427 = vrot.lane.b32.xlu0 %v2407, 2
        %v2428 = vpop.permute.xlu0 %2427
        %v2429 = vrot.slane %v2416, 4
        %v2430 = vrot.slane %v2418, 4
        %v2431 = vrot.slane %v2420, 4
        %v2432 = vrot.slane %v2422, 4
        %v2433 = vrot.slane %v2424, 4
        %v2434 = vrot.slane %v2426, 4
        %v2435 = vrot.slane %v2428, 4
        %v2436 = vsel %vm629, %v2416, %v2429
        %v2437 = vsel %vm629, %v2418, %v2430
        %v2438 = vsel %vm629, %v2420, %v2431
        %v2439 = vsel %vm629, %v2422, %v2432
        %v2440 = vsel %vm629, %v2424, %v2433
        %v2441 = vsel %vm629, %v2426, %v2434
        %v2442 = vsel %vm629, %v2428, %v2435
        %2450 = vst [vmem:[#allocation3] sm:$0xf] %v2436
        %2451 = vst [vmem:[#allocation3 + $0x4] sm:$0xf] %v2437
        %2452 = vst [vmem:[#allocation3 + $0x8] sm:$0xf] %v2438
        %2453 = vst [vmem:[#allocation3 + $0xc] sm:$0xf] %v2439
        %2454 = vst [vmem:[#allocation3 + $0x10] sm:$0xf] %v2440
        %2455 = vst [vmem:[#allocation3 + $0x14] sm:$0xf] %v2441
        %2456 = vst [vmem:[#allocation3 + $0x18] sm:$0x1] %v2442
        %v2457 = vld [vmem:[#allocation2] sm:$0xff]
        %v2458 = vld [vmem:[#allocation2 + $0xc] sm:$0xff]
        %v2459 = vld [vmem:[#allocation2 + $0x18] sm:$0xff]
        %v2460 = vld [vmem:[#allocation2 + $0x24] sm:$0xff]
        %v2461 = vld [vmem:[#allocation2 + $0x30] sm:$0xff]
        %v2462 = vld [vmem:[#allocation2 + $0x3c] sm:$0xff]
        %v2463 = vld [vmem:[#allocation2 + $0x48] sm:$0x11]
        %2471 = vrot.lane.b32.xlu0 %v2457, 1
        %v2472 = vpop.permute.xlu0 %2471
        %2473 = vrot.lane.b32.xlu0 %v2458, 1
        %v2474 = vpop.permute.xlu0 %2473
        %2475 = vrot.lane.b32.xlu0 %v2459, 1
        %v2476 = vpop.permute.xlu0 %2475
        %2477 = vrot.lane.b32.xlu0 %v2460, 1
        %v2478 = vpop.permute.xlu0 %2477
        %2479 = vrot.lane.b32.xlu0 %v2461, 1
        %v2480 = vpop.permute.xlu0 %2479
        %2481 = vrot.lane.b32.xlu0 %v2462, 1
        %v2482 = vpop.permute.xlu0 %2481
        %2483 = vrot.lane.b32.xlu0 %v2463, 1
        %v2484 = vpop.permute.xlu0 %2483
        %v2485 = vrot.slane %v2472, 4
        %v2486 = vrot.slane %v2474, 4
        %v2487 = vrot.slane %v2476, 4
        %v2488 = vrot.slane %v2478, 4
        %v2489 = vrot.slane %v2480, 4
        %v2490 = vrot.slane %v2482, 4
        %v2491 = vrot.slane %v2484, 4
        %v2492 = vsel %vm657, %v2472, %v2485
        %v2493 = vsel %vm657, %v2474, %v2486
        %v2494 = vsel %vm657, %v2476, %v2487
        %v2495 = vsel %vm657, %v2478, %v2488
        %v2496 = vsel %vm657, %v2480, %v2489
        %v2497 = vsel %vm657, %v2482, %v2490
        %v2498 = vsel %vm657, %v2484, %v2491
        %2506 = vst [vmem:[#allocation3 + $0x20] sm:$0xf] %v2492
        %2507 = vst [vmem:[#allocation3 + $0x24] sm:$0xf] %v2493
        %2508 = vst [vmem:[#allocation3 + $0x28] sm:$0xf] %v2494
        %2509 = vst [vmem:[#allocation3 + $0x2c] sm:$0xf] %v2495
        %2510 = vst [vmem:[#allocation3 + $0x30] sm:$0xf] %v2496
        %2511 = vst [vmem:[#allocation3 + $0x34] sm:$0xf] %v2497
        %2512 = vst [vmem:[#allocation3 + $0x38] sm:$0x1] %v2498
        %v2513 = vld [vmem:[#allocation2 + $0x4] sm:$0xf]
        %v2514 = vld [vmem:[#allocation2 + $0x10] sm:$0xf]
        %v2515 = vld [vmem:[#allocation2 + $0x1c] sm:$0xf]
        %v2516 = vld [vmem:[#allocation2 + $0x28] sm:$0xf]
        %v2517 = vld [vmem:[#allocation2 + $0x34] sm:$0xf]
        %v2518 = vld [vmem:[#allocation2 + $0x40] sm:$0xf]
        %v2519 = vld [vmem:[#allocation2 + $0x4c] sm:$0x1]
        %2520 = vst [vmem:[#allocation3 + $0x40] sm:$0xf] %v2513
        %2521 = vst [vmem:[#allocation3 + $0x44] sm:$0xf] %v2514
        %2522 = vst [vmem:[#allocation3 + $0x48] sm:$0xf] %v2515
        %2523 = vst [vmem:[#allocation3 + $0x4c] sm:$0xf] %v2516
        %2524 = vst [vmem:[#allocation3 + $0x50] sm:$0xf] %v2517
        %2525 = vst [vmem:[#allocation3 + $0x54] sm:$0xf] %v2518
        %2526 = vst [vmem:[#allocation3 + $0x58] sm:$0x1] %v2519
        %v2527 = vld [vmem:[#allocation2 + $0x4] sm:$0xff]
        %v2528 = vld [vmem:[#allocation2 + $0x10] sm:$0xff]
        %v2529 = vld [vmem:[#allocation2 + $0x1c] sm:$0xff]
        %v2530 = vld [vmem:[#allocation2 + $0x28] sm:$0xff]
        %v2531 = vld [vmem:[#allocation2 + $0x34] sm:$0xff]
        %v2532 = vld [vmem:[#allocation2 + $0x40] sm:$0xff]
        %v2533 = vld [vmem:[#allocation2 + $0x4c] sm:$0x11]
        %2541 = vrot.lane.b32.xlu0 %v2527, 127
        %v2542 = vpop.permute.xlu0 %2541
        %2543 = vrot.lane.b32.xlu0 %v2528, 127
        %v2544 = vpop.permute.xlu0 %2543
        %2545 = vrot.lane.b32.xlu0 %v2529, 127
        %v2546 = vpop.permute.xlu0 %2545
        %2547 = vrot.lane.b32.xlu0 %v2530, 127
        %v2548 = vpop.permute.xlu0 %2547
        %2549 = vrot.lane.b32.xlu0 %v2531, 127
        %v2550 = vpop.permute.xlu0 %2549
        %2551 = vrot.lane.b32.xlu0 %v2532, 127
        %v2552 = vpop.permute.xlu0 %2551
        %2553 = vrot.lane.b32.xlu0 %v2533, 127
        %v2554 = vpop.permute.xlu0 %2553
        %v2555 = vrot.slane %v2542, 4
        %v2556 = vrot.slane %v2544, 4
        %v2557 = vrot.slane %v2546, 4
        %v2558 = vrot.slane %v2548, 4
        %v2559 = vrot.slane %v2550, 4
        %v2560 = vrot.slane %v2552, 4
        %v2561 = vrot.slane %v2554, 4
        %v2562 = vsel %vm690, %v2542, %v2555
        %v2563 = vsel %vm690, %v2544, %v2556
        %v2564 = vsel %vm690, %v2546, %v2557
        %v2565 = vsel %vm690, %v2548, %v2558
        %v2566 = vsel %vm690, %v2550, %v2559
        %v2567 = vsel %vm690, %v2552, %v2560
        %v2568 = vsel %vm690, %v2554, %v2561
        %2576 = vst [vmem:[#allocation3 + $0x60] sm:$0xf] %v2562
        %2577 = vst [vmem:[#allocation3 + $0x64] sm:$0xf] %v2563
        %2578 = vst [vmem:[#allocation3 + $0x68] sm:$0xf] %v2564
        %2579 = vst [vmem:[#allocation3 + $0x6c] sm:$0xf] %v2565
        %2580 = vst [vmem:[#allocation3 + $0x70] sm:$0xf] %v2566
        %2581 = vst [vmem:[#allocation3 + $0x74] sm:$0xf] %v2567
        %2582 = vst [vmem:[#allocation3 + $0x78] sm:$0x1] %v2568
        %v2583 = vld [vmem:[#allocation2 + $0x4] sm:$0xff]
        %v2584 = vld [vmem:[#allocation2 + $0x10] sm:$0xff]
        %v2585 = vld [vmem:[#allocation2 + $0x1c] sm:$0xff]
        %v2586 = vld [vmem:[#allocation2 + $0x28] sm:$0xff]
        %v2587 = vld [vmem:[#allocation2 + $0x34] sm:$0xff]
        %v2588 = vld [vmem:[#allocation2 + $0x40] sm:$0xff]
        %v2589 = vld [vmem:[#allocation2 + $0x4c] sm:$0x11]
        %2597 = vrot.lane.b32.xlu0 %v2583, 126
        %v2598 = vpop.permute.xlu0 %2597
        %2599 = vrot.lane.b32.xlu0 %v2584, 126
        %v2600 = vpop.permute.xlu0 %2599
        %2601 = vrot.lane.b32.xlu0 %v2585, 126
        %v2602 = vpop.permute.xlu0 %2601
        %2603 = vrot.lane.b32.xlu0 %v2586, 126
        %v2604 = vpop.permute.xlu0 %2603
        %2605 = vrot.lane.b32.xlu0 %v2587, 126
        %v2606 = vpop.permute.xlu0 %2605
        %2607 = vrot.lane.b32.xlu0 %v2588, 126
        %v2608 = vpop.permute.xlu0 %2607
        %2609 = vrot.lane.b32.xlu0 %v2589, 126
        %v2610 = vpop.permute.xlu0 %2609
        %v2611 = vrot.slane %v2598, 4
        %v2612 = vrot.slane %v2600, 4
        %v2613 = vrot.slane %v2602, 4
        %v2614 = vrot.slane %v2604, 4
        %v2615 = vrot.slane %v2606, 4
        %v2616 = vrot.slane %v2608, 4
        %v2617 = vrot.slane %v2610, 4
        %v2618 = vsel %vm718, %v2598, %v2611
        %v2619 = vsel %vm718, %v2600, %v2612
        %v2620 = vsel %vm718, %v2602, %v2613
        %v2621 = vsel %vm718, %v2604, %v2614
        %v2622 = vsel %vm718, %v2606, %v2615
        %v2623 = vsel %vm718, %v2608, %v2616
        %v2624 = vsel %vm718, %v2610, %v2617
        %2632 = vst [vmem:[#allocation3 + $0x80] sm:$0xf] %v2618
        %2633 = vst [vmem:[#allocation3 + $0x84] sm:$0xf] %v2619
        %2634 = vst [vmem:[#allocation3 + $0x88] sm:$0xf] %v2620
        %2635 = vst [vmem:[#allocation3 + $0x8c] sm:$0xf] %v2621
        %2636 = vst [vmem:[#allocation3 + $0x90] sm:$0xf] %v2622
        %2637 = vst [vmem:[#allocation3 + $0x94] sm:$0xf] %v2623
        %2638 = vst [vmem:[#allocation3 + $0x98] sm:$0x1] %v2624
        %v2639 = vld [vmem:[#allocation11] sm:$0xff]
        %v2640 = vld [vmem:[#allocation11 + $0x8] sm:$0xf]
        %v2641 = vld [vmem:[#allocation11 + $0xc] sm:$0xff]
        %v2642 = vld [vmem:[#allocation11 + $0x14] sm:$0xf]
        %v2643 = vld [vmem:[#allocation11 + $0x18] sm:$0xff]
        %v2644 = vld [vmem:[#allocation11 + $0x20] sm:$0xf]
        %v2645 = vld [vmem:[#allocation11 + $0x24] sm:$0xff]
        %v2646 = vld [vmem:[#allocation11 + $0x2c] sm:$0xf]
        %v2647 = vld [vmem:[#allocation11 + $0x30] sm:$0xff]
        %v2648 = vld [vmem:[#allocation11 + $0x38] sm:$0xf]
        %v2649 = vld [vmem:[#allocation11 + $0x3c] sm:$0xff]
        %v2650 = vld [vmem:[#allocation11 + $0x44] sm:$0xf]
        %v2651 = vld [vmem:[#allocation11 + $0x48] sm:$0x11]
        %v2652 = vld [vmem:[#allocation11 + $0x50] sm:$0x1]
        %v2653 = vld [vmem:[#allocation3] sm:$0xf]
        %v2654 = vld [vmem:[#allocation3 + $0x4] sm:$0xf]
        %v2655 = vld [vmem:[#allocation3 + $0x8] sm:$0xf]
        %v2656 = vld [vmem:[#allocation3 + $0xc] sm:$0xf]
        %v2657 = vld [vmem:[#allocation3 + $0x10] sm:$0xf]
        %v2658 = vld [vmem:[#allocation3 + $0x14] sm:$0xf]
        %v2659 = vld [vmem:[#allocation3 + $0x18] sm:$0xf]
        %v2660 = vld [vmem:[#allocation3 + $0x1c] sm:$0xf]
        %v2661 = vld [vmem:[#allocation3 + $0x20] sm:$0xf]
        %v2662 = vld [vmem:[#allocation3 + $0x24] sm:$0xf]
        %v2663 = vld [vmem:[#allocation3 + $0x28] sm:$0xf]
        %v2664 = vld [vmem:[#allocation3 + $0x2c] sm:$0xf]
        %v2665 = vld [vmem:[#allocation3 + $0x30] sm:$0xf]
        %v2666 = vld [vmem:[#allocation3 + $0x34] sm:$0xf]
        %v2667 = vld [vmem:[#allocation3 + $0x38] sm:$0xf]
        %v2668 = vld [vmem:[#allocation3 + $0x3c] sm:$0xf]
        %v2669 = vld [vmem:[#allocation3 + $0x40] sm:$0xf]
        %v2670 = vld [vmem:[#allocation3 + $0x44] sm:$0xf]
        %v2671 = vld [vmem:[#allocation3 + $0x48] sm:$0xf]
        %v2672 = vld [vmem:[#allocation3 + $0x4c] sm:$0xf]
        %v2673 = vld [vmem:[#allocation3 + $0x50] sm:$0xf]
        %v2674 = vld [vmem:[#allocation3 + $0x54] sm:$0xf]
        %v2675 = vld [vmem:[#allocation3 + $0x58] sm:$0xf]
        %v2676 = vld [vmem:[#allocation3 + $0x5c] sm:$0xf]
        %v2677 = vld [vmem:[#allocation3 + $0x60] sm:$0xf]
        %v2678 = vld [vmem:[#allocation3 + $0x64] sm:$0xf]
        %v2679 = vld [vmem:[#allocation3 + $0x68] sm:$0xf]
        %v2680 = vld [vmem:[#allocation3 + $0x6c] sm:$0xf]
        %v2681 = vld [vmem:[#allocation3 + $0x70] sm:$0xf]
        %v2682 = vld [vmem:[#allocation3 + $0x74] sm:$0xf]
        %v2683 = vld [vmem:[#allocation3 + $0x78] sm:$0xf]
        %v2684 = vld [vmem:[#allocation3 + $0x7c] sm:$0xf]
        %v2685 = vld [vmem:[#allocation3 + $0x80] sm:$0xf]
        %v2686 = vld [vmem:[#allocation3 + $0x84] sm:$0xf]
        %v2687 = vld [vmem:[#allocation3 + $0x88] sm:$0xf]
        %v2688 = vld [vmem:[#allocation3 + $0x8c] sm:$0xf]
        %v2689 = vld [vmem:[#allocation3 + $0x90] sm:$0xf]
        %v2690 = vld [vmem:[#allocation3 + $0x94] sm:$0xf]
        %v2691 = vld [vmem:[#allocation3 + $0x98] sm:$0xf]
        %v2692 = vld [vmem:[#allocation3 + $0x9c] sm:$0xf]
        %v2693 = vld [vmem:[%s10] sm:$0xff]
        %v2694 = vld [vmem:[%s10 + $0x8] sm:$0xff]
        %v2695 = vld [vmem:[%s10 + $0x10] sm:$0xff]
        %v2696 = vld [vmem:[%s10 + $0x18] sm:$0xff]
        %v2697 = vld [vmem:[%s10 + $0x20] sm:$0xff]
        %v2698 = vld [vmem:[%s10 + $0x28] sm:$0xff]
        %v2699 = vld [vmem:[%s10 + $0x30] sm:$0x3]
        %2701 = vset.pattern.permute.xlu0 0
        %2702 = vperm.xlu0 %2701, %v2693
        %v2703 = vpop.permute.xlu0 %2702
        %2706 = vset.pattern.permute.xlu0 0
        %2707 = vperm.xlu0 %2706, %v2694
        %v2708 = vpop.permute.xlu0 %2707
        %2711 = vset.pattern.permute.xlu0 0
        %2712 = vperm.xlu0 %2711, %v2695
        %v2713 = vpop.permute.xlu0 %2712
        %2716 = vset.pattern.permute.xlu0 0
        %2717 = vperm.xlu0 %2716, %v2696
        %v2718 = vpop.permute.xlu0 %2717
        %2721 = vset.pattern.permute.xlu0 0
        %2722 = vperm.xlu0 %2721, %v2697
        %v2723 = vpop.permute.xlu0 %2722
        %2726 = vset.pattern.permute.xlu0 0
        %2727 = vperm.xlu0 %2726, %v2698
        %v2728 = vpop.permute.xlu0 %2727
        %2731 = vset.pattern.permute.xlu0 0
        %2732 = vperm.xlu0 %2731, %v2699
        %v2733 = vpop.permute.xlu0 %2732
        %v2749 = vunpack.c.l.b16 %v2639
        %v2750 = vunpack.c.h.b16 %v2639
        %v2751 = vunpack.c.l.b16 %v2640
        %v2752 = vunpack.c.l.b16 %v2641
        %v2753 = vunpack.c.h.b16 %v2641
        %v2754 = vunpack.c.l.b16 %v2642
        %v2755 = vunpack.c.l.b16 %v2643
        %v2756 = vunpack.c.h.b16 %v2643
        %v2757 = vunpack.c.l.b16 %v2644
        %v2758 = vunpack.c.l.b16 %v2645
        %v2759 = vunpack.c.h.b16 %v2645
        %v2760 = vunpack.c.l.b16 %v2646
        %v2761 = vunpack.c.l.b16 %v2647
        %v2762 = vunpack.c.h.b16 %v2647
        %v2763 = vunpack.c.l.b16 %v2648
        %v2764 = vunpack.c.l.b16 %v2649
        %v2765 = vunpack.c.h.b16 %v2649
        %v2766 = vunpack.c.l.b16 %v2650
        %v2767 = vunpack.c.l.b16 %v2651
        %v2768 = vunpack.c.h.b16 %v2651
        %v2769 = vunpack.c.l.b16 %v2652
        %v2770 = vpack.c.b16 %v2752, %v2749
        %v2771 = vpack.c.b16 %v2753, %v2750
        %v2772 = vpack.c.b16 %v2754, %v2751
        %v2773 = vpack.c.b16 %v2758, %v2755
        %v2774 = vpack.c.b16 %v2759, %v2756
        %v2775 = vpack.c.b16 %v2760, %v2757
        %v2776 = vpack.c.b16 %v2764, %v2761
        %v2777 = vpack.c.b16 %v2765, %v2762
        %v2778 = vpack.c.b16 %v2766, %v2763
        %v2779 = vpack.c.b16 %v2767, %v2767
        %v2780 = vpack.c.b16 %v2768, %v2768
        %v2781 = vpack.c.b16 %v2769, %v2769
        %v2830 = vunpack.c.l.b16 %v2653
        %v2831 = vunpack.c.l.b16 %v2654
        %v2832 = vunpack.c.l.b16 %v2655
        %v2833 = vunpack.c.l.b16 %v2656
        %v2834 = vunpack.c.l.b16 %v2657
        %v2835 = vunpack.c.l.b16 %v2658
        %v2836 = vunpack.c.l.b16 %v2659
        %v2837 = vunpack.c.l.b16 %v2660
        %v2838 = vunpack.c.l.b16 %v2661
        %v2839 = vunpack.c.l.b16 %v2662
        %v2840 = vunpack.c.l.b16 %v2663
        %v2841 = vunpack.c.l.b16 %v2664
        %v2842 = vunpack.c.l.b16 %v2665
        %v2843 = vunpack.c.l.b16 %v2666
        %v2844 = vunpack.c.l.b16 %v2667
        %v2845 = vunpack.c.l.b16 %v2668
        %v2846 = vunpack.c.l.b16 %v2669
        %v2847 = vunpack.c.l.b16 %v2670
        %v2848 = vunpack.c.l.b16 %v2671
        %v2849 = vunpack.c.l.b16 %v2672
        %v2850 = vunpack.c.l.b16 %v2673
        %v2851 = vunpack.c.l.b16 %v2674
        %v2852 = vunpack.c.l.b16 %v2675
        %v2853 = vunpack.c.l.b16 %v2676
        %v2854 = vunpack.c.l.b16 %v2677
        %v2855 = vunpack.c.l.b16 %v2678
        %v2856 = vunpack.c.l.b16 %v2679
        %v2857 = vunpack.c.l.b16 %v2680
        %v2858 = vunpack.c.l.b16 %v2681
        %v2859 = vunpack.c.l.b16 %v2682
        %v2860 = vunpack.c.l.b16 %v2683
        %v2861 = vunpack.c.l.b16 %v2684
        %v2862 = vunpack.c.l.b16 %v2685
        %v2863 = vunpack.c.l.b16 %v2686
        %v2864 = vunpack.c.l.b16 %v2687
        %v2865 = vunpack.c.l.b16 %v2688
        %v2866 = vunpack.c.l.b16 %v2689
        %v2867 = vunpack.c.l.b16 %v2690
        %v2868 = vunpack.c.l.b16 %v2691
        %v2869 = vunpack.c.l.b16 %v2692
        %v2870 = vpack.c.b16 %v2831, %v2830
        %v2871 = vpack.c.b16 %v2833, %v2832
        %v2872 = vpack.c.b16 %v2835, %v2834
        %v2873 = vpack.c.b16 %v2837, %v2836
        %v2874 = vpack.c.b16 %v2839, %v2838
        %v2875 = vpack.c.b16 %v2841, %v2840
        %v2876 = vpack.c.b16 %v2843, %v2842
        %v2877 = vpack.c.b16 %v2845, %v2844
        %v2878 = vpack.c.b16 %v2847, %v2846
        %v2879 = vpack.c.b16 %v2849, %v2848
        %v2880 = vpack.c.b16 %v2851, %v2850
        %v2881 = vpack.c.b16 %v2853, %v2852
        %v2882 = vpack.c.b16 %v2855, %v2854
        %v2883 = vpack.c.b16 %v2857, %v2856
        %v2884 = vpack.c.b16 %v2859, %v2858
        %v2885 = vpack.c.b16 %v2861, %v2860
        %v2886 = vpack.c.b16 %v2863, %v2862
        %v2887 = vpack.c.b16 %v2865, %v2864
        %v2888 = vpack.c.b16 %v2867, %v2866
        %v2889 = vpack.c.b16 %v2869, %v2868
        %v2911 = vsel %vm1800, %v2772, 0
        %v2914 = vsel %vm1800, %v2775, 0
        %v2917 = vsel %vm1800, %v2778, 0
        %v2920 = vsel %vm1800, %v2781, 0
        %2922 = vmatprep.subr.bf16.mxu0 0
        %2923 = vmatpush1.bf16.msra.mxu0 %v2877
        %2924 = vmatprep.subr.bf16.mxu0 0
        %2925 = vmatpush1.bf16.msra.mxu0 %v2876
        %2926 = vmatprep.subr.bf16.mxu0 0
        %2927 = vmatpush1.bf16.msra.mxu0 %v2875
        %2928 = vmatprep.subr.bf16.mxu0 0
        %2929 = vmatpush1.bf16.msra.mxu0 %v2874
        %2930 = vmatprep.subr.bf16.mxu0 0
        %2931 = vmatpush1.bf16.msra.mxu0 %v2873
        %2932 = vmatprep.subr.bf16.mxu0 0
        %2933 = vmatpush1.bf16.msra.mxu0 %v2872
        %2934 = vmatprep.subr.bf16.mxu0 0
        %2935 = vmatpush1.bf16.msra.mxu0 %v2871
        %2936 = vmatprep.subr.bf16.mxu0 0
        %2937 = vmatpush1.bf16.msra.mxu0 %v2870
        %2938 = vmatprep.subr.bf16.mxu0 0
        %2939 = vmatpush2.bf16.msra.mxu0 %v2885
        %2940 = vmatprep.subr.bf16.mxu0 0
        %2941 = vmatpush2.bf16.msra.mxu0 %v2884
        %2942 = vmatprep.subr.bf16.mxu0 0
        %2943 = vmatpush2.bf16.msra.mxu0 %v2883
        %2944 = vmatprep.subr.bf16.mxu0 0
        %2945 = vmatpush2.bf16.msra.mxu0 %v2882
        %2946 = vmatprep.subr.bf16.mxu0 0
        %2947 = vmatpush2.bf16.msra.mxu0 %v2881
        %2948 = vmatprep.subr.bf16.mxu0 0
        %2949 = vmatpush2.bf16.msra.mxu0 %v2880
        %2950 = vmatprep.subr.bf16.mxu0 0
        %2951 = vmatpush2.bf16.msra.mxu0 %v2879
        %2952 = vmatprep.subr.bf16.mxu0 0
        %2953 = vmatpush2.bf16.msra.mxu0 %v2878
        %2954 = vmatprep.mubr.bf16.mxu0 %v2771
        %2955 = vmatmul.mubr.bf16.gmra.mxu0 %v2770
        %v2956 = vpop.f32.mrf.mxu0
        %v2957 = vadd.f32 %v2703, %v2956
        %v2958 = vpop.f32.mrf.mxu0
        %v2959 = vpop.f32.mrf.mxu0
        %v2960 = vadd.f32 %v2708, %v2959
        %v2961 = vpop.f32.mrf.mxu0
        %2962 = vmatprep.mubr.bf16.mxu0 %v2774
        %2963 = vmatmul.mubr.bf16.gmra.mxu0 %v2773
        %v2964 = vpop.f32.mrf.mxu0
        %v2965 = vadd.f32 %v2713, %v2964
        %v2966 = vpop.f32.mrf.mxu0
        %v2967 = vpop.f32.mrf.mxu0
        %v2968 = vadd.f32 %v2718, %v2967
        %v2969 = vpop.f32.mrf.mxu0
        %2970 = vmatprep.mubr.bf16.mxu0 %v2777
        %2971 = vmatmul.mubr.bf16.gmra.mxu0 %v2776
        %v2972 = vpop.f32.mrf.mxu0
        %v2973 = vadd.f32 %v2723, %v2972
        %v2974 = vpop.f32.mrf.mxu0
        %v2975 = vpop.f32.mrf.mxu0
        %v2976 = vadd.f32 %v2728, %v2975
        %v2977 = vpop.f32.mrf.mxu0
        %2978 = vmatprep.mubr.bf16.mxu0 %v2780
        %2979 = vmatmul.mubr.bf16.gmra.mxu0 %v2779
        %v2980 = vpop.f32.mrf.mxu0
        %v2981 = vadd.f32 %v2733, %v2980
        %v2982 = vpop.f32.mrf.mxu0
        %v2983 = vpop.f32.mrf.mxu0
        %v2984 = vpop.f32.mrf.mxu0
        %2985 = vdwg.mxu0
        %2986 = vmatprep.subr.bf16.mxu0 0
        %2987 = vmatpush1.bf16.msra.mxu0 0
        %2988 = vmatprep.subr.bf16.mxu0 0
        %2989 = vmatpush1.bf16.msra.mxu0 0
        %2990 = vmatprep.subr.bf16.mxu0 0
        %2991 = vmatpush1.bf16.msra.mxu0 0
        %2992 = vmatprep.subr.bf16.mxu0 0
        %2993 = vmatpush1.bf16.msra.mxu0 0
        %2994 = vmatprep.subr.bf16.mxu0 0
        %2995 = vmatpush1.bf16.msra.mxu0 %v2889
        %2996 = vmatprep.subr.bf16.mxu0 0
        %2997 = vmatpush1.bf16.msra.mxu0 %v2888
        %2998 = vmatprep.subr.bf16.mxu0 0
        %2999 = vmatpush1.bf16.msra.mxu0 %v2887
        %3000 = vmatprep.subr.bf16.mxu0 0
        %3001 = vmatpush1.bf16.msra.mxu0 %v2886
        %3002 = vmatprep.subr.bf16.mxu0 0
        %3003 = vmatpush2.bf16.msra.mxu0 0
        %3004 = vmatprep.subr.bf16.mxu0 0
        %3005 = vmatpush2.bf16.msra.mxu0 0
        %3006 = vmatprep.subr.bf16.mxu0 0
        %3007 = vmatpush2.bf16.msra.mxu0 0
        %3008 = vmatprep.subr.bf16.mxu0 0
        %3009 = vmatpush2.bf16.msra.mxu0 0
        %3010 = vmatprep.subr.bf16.mxu0 0
        %3011 = vmatpush2.bf16.msra.mxu0 0
        %3012 = vmatprep.subr.bf16.mxu0 0
        %3013 = vmatpush2.bf16.msra.mxu0 0
        %3014 = vmatprep.subr.bf16.mxu0 0
        %3015 = vmatpush2.bf16.msra.mxu0 0
        %3016 = vmatprep.subr.bf16.mxu0 0
        %3017 = vmatpush2.bf16.msra.mxu0 0
        %3018 = vmatprep.mubr.bf16.mxu0 0
        %3019 = vmatmul.mubr.bf16.gmra.mxu0 %v2911
        %v3020 = vpop.f32.mrf.mxu0
        %v3021 = vadd.f32 %v2957, %v3020
        %v3022 = vpop.f32.mrf.mxu0
        %v3023 = vpop.f32.mrf.mxu0
        %v3024 = vadd.f32 %v2960, %v3023
        %v3025 = vpop.f32.mrf.mxu0
        %3026 = vmatprep.mubr.bf16.mxu0 0
        %3027 = vmatmul.mubr.bf16.gmra.mxu0 %v2914
        %v3028 = vpop.f32.mrf.mxu0
        %v3029 = vadd.f32 %v2965, %v3028
        %v3030 = vpop.f32.mrf.mxu0
        %v3031 = vpop.f32.mrf.mxu0
        %v3032 = vadd.f32 %v2968, %v3031
        %v3033 = vpop.f32.mrf.mxu0
        %3034 = vmatprep.mubr.bf16.mxu0 0
        %3035 = vmatmul.mubr.bf16.gmra.mxu0 %v2917
        %v3036 = vpop.f32.mrf.mxu0
        %v3037 = vadd.f32 %v2973, %v3036
        %v3038 = vpop.f32.mrf.mxu0
        %v3039 = vpop.f32.mrf.mxu0
        %v3040 = vadd.f32 %v2976, %v3039
        %v3041 = vpop.f32.mrf.mxu0
        %3042 = vmatprep.mubr.bf16.mxu0 0
        %3043 = vmatmul.mubr.bf16.gmra.mxu0 %v2920
        %v3044 = vpop.f32.mrf.mxu0
        %v3045 = vadd.f32 %v2981, %v3044
        %v3046 = vpop.f32.mrf.mxu0
        %v3047 = vpop.f32.mrf.mxu0
        %v3048 = vpop.f32.mrf.mxu0
        %3049 = vdwg.mxu0
        %v3050 = vmax.f32 %v3021, 0.0
        %v3051 = vmax.f32 %v3024, 0.0
        %v3052 = vmax.f32 %v3029, 0.0
        %v3053 = vmax.f32 %v3032, 0.0
        %v3054 = vmax.f32 %v3037, 0.0
        %v3055 = vmax.f32 %v3040, 0.0
        %v3056 = vmax.f32 %v3045, 0.0
        %v3057 = vsel %vm967, %v3050, 0.0
        %v3058 = vsel %vm967, %v3051, 0.0
        %v3059 = vsel %vm967, %v3052, 0.0
        %v3060 = vsel %vm967, %v3053, 0.0
        %v3061 = vsel %vm967, %v3054, 0.0
        %v3062 = vsel %vm967, %v3055, 0.0
        %v3063 = vsel %vm967, %v3056, 0.0
        %v3064 = vpack.c.bf16 %v3058, %v3057
        %v3065 = vpack.c.bf16 %v3060, %v3059
        %v3066 = vpack.c.bf16 %v3062, %v3061
        %v3067 = vpack.c.bf16 %v3063, %v3063
        %v3072 = vunpack.c.l.b16 %v3064
        %v3073 = vunpack.c.h.b16 %v3064
        %v3074 = vunpack.c.l.b16 %v3065
        %v3075 = vunpack.c.h.b16 %v3065
        %v3076 = vunpack.c.l.b16 %v3066
        %v3077 = vunpack.c.h.b16 %v3066
        %v3078 = vunpack.c.l.b16 %v3067
        %v3079 = vpack.c.b16 %v3072, %v3072
        %v3080 = vpack.c.b16 %v3073, %v3073
        %v3081 = vpack.c.b16 %v3074, %v3074
        %v3082 = vpack.c.b16 %v3075, %v3075
        %v3083 = vpack.c.b16 %v3076, %v3076
        %v3084 = vpack.c.b16 %v3077, %v3077
        %v3085 = vpack.c.b16 %v3078, %v3078
        %3093 = vst [vmem:[%s456] sm:$0xf] %v3079
        %3094 = vst [vmem:[%s456 + $0x4] sm:$0xf] %v3080
        %3095 = vst [vmem:[%s456 + $0x8] sm:$0xf] %v3081
        %3096 = vst [vmem:[%s456 + $0xc] sm:$0xf] %v3082
        %3097 = vst [vmem:[%s456 + $0x10] sm:$0xf] %v3083
        %3098 = vst [vmem:[%s456 + $0x14] sm:$0xf] %v3084
        %3099 = vst [vmem:[%s456 + $0x18] sm:$0x1] %v3085
        %p3100 = scmp.lt.s32.totalorder %s25, 1
        %s3101 = scalar_select %p3100, %s25, 1
        %s3102 = smul.addr %s3101, 7
        %s3103 = smul.addr %s3102, 4
        %s3104 = scalar_lea.vmem %s11, %s3103
        // Predicated region
        $region85: #{seq2point_forward.2} parent=63 // pred_check
          %p3105 = pneg %p279
        $region86: #{seq2point_forward.2} parent=63 // pred_check_branch
          %3107 = sbr.rel (%p3105) target = $region88
        $region87: #{seq2point_forward.2} parent=63 // pred_region
          _
        $region88: #{seq2point_forward.2} parent=63 // pred_fallthru
          _
      $region64: #{seq2point_forward.2} parent=5 // pred_fallthru
        _
      %p3108 = scmp.le.s32.totalorder 2, %s20
      // Predicated region
      $region89: #{seq2point_forward.2} parent=5 // pred_check
        %p3109 = pneg %p3108
      $region90: #{seq2point_forward.2} parent=5 // pred_check_branch
        %3111 = sbr.rel (%p3109) target = $region92
      $region91: #{seq2point_forward.2} parent=5 // pred_region
        %s3112 = ssub.s32 %s20, 2
        // Predicated region
        $region93: #{seq2point_forward.2} parent=91 // pred_check
          %p3113 = pneg %p285
        $region94: #{seq2point_forward.2} parent=91 // pred_check_branch
          %3115 = sbr.rel (%p3113) target = $region96
        $region95: #{seq2point_forward.2} parent=91 // pred_region
          %p3116 = scmp.lt.s32.totalorder %s26, 1
          %s3117 = scalar_select %p3116, %s26, 1
          %s3118 = smul.addr %s3117, 7
          %s3119 = smul.addr %s3118, 4
          %s3120 = scalar_lea.vmem %s11, %s3119
        $region96: #{seq2point_forward.2} parent=91 // pred_fallthru
          _
      $region92: #{seq2point_forward.2} parent=5 // pred_fallthru
        _
    $region6: #{seq2point_forward.2} parent=1 // loop_footer
      %s24 = sadd.s32 1, %s20
    $region7: #{seq2point_forward.2} parent=1 // loop_footer_branch
      %19 = sbr.rel target = $region3
    $region8: #{seq2point_forward.2} parent=1 // loop_exit
      _
    %3121 = vsyncpa [#allocation5], 1
    %s3122 = scalar_lea.sflag [#allocation5], 1
    %3123 = vsyncpa %s3122, 1
    %3124 = vsyncpa [#allocation7], 1
    %3125 = vsyncpa [#allocation10], 1

</llo_original>
